<compile_context>
chip_gen: v7x
topology: tpu7x:2x2x1
jax: 0.10.0
libtpu: 0.0.40
codegen_flags: <defaults>
</compile_context>

<pallas_src>
import functools

import jax
import jax.numpy as jnp
from jax.experimental import pallas as pl
from jax.experimental.pallas import tpu as pltpu


_VMEM_LIMIT = 48 * 1024 * 1024


def _pick_tile(dim, candidates):
    """Largest aligned candidate that divides `dim`, else the full extent."""
    for c in candidates:
        if dim % c == 0:
            return c
    return dim  # full-extent block is always legal


# ------------------------- fused / tiled linear kernels --------------------- #
def _linear_kernel_acc(x_ref, wt_ref, b_ref, o_ref, acc_ref, *, use_bf16):
    """One (tm, tn) output tile of  y = x @ Wt + b  with a K reduction axis."""
    @pl.when(pl.program_id(3) == 0)
    def _():
        acc_ref[...] = jnp.zeros_like(acc_ref)

    x = x_ref[...]
    wt = wt_ref[...]
    if use_bf16:
        x = x.astype(jnp.bfloat16)
        wt = wt.astype(jnp.bfloat16)
    acc_ref[...] += jnp.dot(x, wt, preferred_element_type=jnp.float32)

    @pl.when(pl.program_id(3) == pl.num_programs(3) - 1)
    def _():
        o_ref[...] = (acc_ref[...] + b_ref[...]).astype(o_ref.dtype)


def _linear_kernel_single(x_ref, wt_ref, b_ref, o_ref, *, use_bf16):
    """Single-K-block variant: no accumulator scratch, no reduction axis."""
    x = x_ref[...]
    wt = wt_ref[...]
    if use_bf16:
        x = x.astype(jnp.bfloat16)
        wt = wt.astype(jnp.bfloat16)
    y = jnp.dot(x, wt, preferred_element_type=jnp.float32) + b_ref[...]
    o_ref[...] = y.astype(o_ref.dtype)


def batched_linear(x, wt, b, *, use_bf16=False):
    """y[g] = x[g] @ wt[g] + b[g]  for all g, in a single pallas_call.

    x: (G, M, K), wt: (G, K, dout) (already transposed), b: (G, 1, dout).
    """
    G, M, K = x.shape
    dout = wt.shape[-1]
    tm = _pick_tile(M, (256, 128, 64, 32, 16, 8))
    tn = _pick_tile(dout, (512, 256, 128))
    tk = _pick_tile(K, (512, 256, 128))
    nk = K // tk

    if nk == 1:
        kernel = functools.partial(_linear_kernel_single, use_bf16=use_bf16)
        return pl.pallas_call(
            kernel,
            out_shape=jax.ShapeDtypeStruct((G, M, dout), x.dtype),
            grid=(G, M // tm, dout // tn),
            in_specs=[
                pl.BlockSpec((pl.Squeezed(), tm, K), lambda g, i, j: (g, i, 0)),
                pl.BlockSpec((pl.Squeezed(), K, tn), lambda g, i, j: (g, 0, j)),
                pl.BlockSpec((pl.Squeezed(), 1, tn), lambda g, i, j: (g, 0, j)),
            ],
            out_specs=pl.BlockSpec((pl.Squeezed(), tm, tn),
                                   lambda g, i, j: (g, i, j)),
            compiler_params=pltpu.CompilerParams(
                dimension_semantics=("parallel", "parallel", "parallel"),
                vmem_limit_bytes=_VMEM_LIMIT),
        )(x, wt, b)

    kernel = functools.partial(_linear_kernel_acc, use_bf16=use_bf16)
    return pl.pallas_call(
        kernel,
        out_shape=jax.ShapeDtypeStruct((G, M, dout), x.dtype),
        grid=(G, M // tm, dout // tn, nk),
        in_specs=[
            pl.BlockSpec((pl.Squeezed(), tm, tk), lambda g, i, j, kk: (g, i, kk)),
            pl.BlockSpec((pl.Squeezed(), tk, tn), lambda g, i, j, kk: (g, kk, j)),
            pl.BlockSpec((pl.Squeezed(), 1, tn), lambda g, i, j, kk: (g, 0, j)),
        ],
        out_specs=pl.BlockSpec((pl.Squeezed(), tm, tn),
                               lambda g, i, j, kk: (g, i, j)),
        scratch_shapes=[pltpu.VMEM((tm, tn), jnp.float32)],
        compiler_params=pltpu.CompilerParams(
            dimension_semantics=("parallel", "parallel", "parallel", "arbitrary"),
            vmem_limit_bytes=_VMEM_LIMIT),
    )(x, wt, b)


# -------------------- RPR attention kernel (one batch / step) -------------- #
def _rpr_attn_kernel(q_ref, k_ref, v_ref, ek_ref, ev_ref, o_ref, *,
                     h, d_k, max_rel, vocab, use_bf16):
    L = q_ref.shape[0]
    f32 = jnp.float32

    def mxu(x):
        return x.astype(jnp.bfloat16) if use_bf16 else x

    # Relative-position bucket ids from in-kernel iotas (never materializes an
    # (L, L, d_k) tensor anywhere).
    row = jax.lax.broadcasted_iota(jnp.int32, (L, L), 0)
    col = jax.lax.broadcasted_iota(jnp.int32, (L, L), 1)
    rel = jnp.clip(col - row, -max_rel, max_rel) + max_rel        # (L, L) int32

    # One-hot bucket masks: computed ONCE per grid step and reused across all
    # heads for both the relative-key skew and the relative-value scatter-add.
    masks = [rel == vid for vid in range(vocab)]

    ek = ek_ref[...]                                              # (vocab, d_k)
    ev = ev_ref[...]                                              # (vocab, d_k)

    outs = []
    for hh in range(h):          # heads share the lane-dense (L, E) block
        sl = slice(hh * d_k, (hh + 1) * d_k)
        q_h = q_ref[:, sl]                                        # (L, d_k)
        k_h = k_ref[:, sl]
        v_h = v_ref[:, sl]

        # Content logits on the MXU: q @ k.T via dot_general (no in-kernel .T).
        logits = jax.lax.dot_general(
            mxu(q_h), mxu(k_h), (((1,), (1,)), ((), ())),
            preferred_element_type=f32)                           # (L, L)

        # Relative-key logits: s_k = q @ embed_K.T on the MXU, then the
        # (L, vocab) -> (L, L) skew realized with the precomputed masks.
        s_k = jax.lax.dot_general(
            mxu(q_h), mxu(ek), (((1,), (1,)), ((), ())),
            preferred_element_type=f32)                           # (L, vocab)
        for vid in range(vocab):
            logits = logits + jnp.where(masks[vid], s_k[:, vid:vid + 1], 0.0)

        # Softmax over keys (the module applies no 1/sqrt(d_k) scaling and the
        # `mask` argument is unused in its forward).
        m = jnp.max(logits, axis=-1, keepdims=True)
        e = jnp.exp(logits - m)
        w = e * pl.reciprocal(jnp.sum(e, axis=-1, keepdims=True), approx=True)
        # TODO(synk): nn.Dropout(p=0.0) is identity; dropout not implemented.

        # Content values on the MXU.
        out_h = jnp.dot(mxu(w), mxu(v_h), preferred_element_type=f32)

        # Relative-value term: bucket-sum w into (L, vocab), then a tiny
        # (L, vocab) @ (vocab, d_k) MXU matmul with the embedding table.
        w_rel = jnp.concatenate(
            [jnp.sum(jnp.where(masks[vid], w, 0.0), axis=-1, keepdims=True)
             for vid in range(vocab)], axis=-1)                   # (L, vocab)
        out_h = out_h + jnp.dot(mxu(w_rel), mxu(ev),
                                preferred_element_type=f32)
        outs.append(out_h)

    # Single lane-dense store of the full (L, E) output block.
    o_ref[...] = jnp.concatenate(outs, axis=-1).astype(o_ref.dtype)


def rpr_attention(q, k, v, emb_k, emb_v, *, h, max_rel, use_bf16=False):
    N, L, E = q.shape
    d_k = E // h
    vocab = emb_k.shape[0]
    kernel = functools.partial(_rpr_attn_kernel, h=h, d_k=d_k,
                               max_rel=max_rel, vocab=vocab, use_bf16=use_bf16)
    act_spec = pl.BlockSpec((pl.Squeezed(), L, E), lambda b: (b, 0, 0))
    emb_spec = pl.BlockSpec((vocab, d_k), lambda b: (0, 0))
    # TODO(synk): for very long L, add a flash-style kv grid axis ("arbitrary")
    # with online-softmax VMEM scratch so the (L, L) logits tile stays bounded.
    return pl.pallas_call(
        kernel,
        out_shape=jax.ShapeDtypeStruct((N, L, E), q.dtype),
        grid=(N,),
        in_specs=[act_spec, act_spec, act_spec, emb_spec, emb_spec],
        out_specs=act_spec,
        compiler_params=pltpu.CompilerParams(
            dimension_semantics=("parallel",),
            vmem_limit_bytes=_VMEM_LIMIT),
    )(q, k, v, emb_k, emb_v)


# ------------------------------ full forward -------------------------------- #
def multi_headed_attention_rpr(params, query, key, value, *, h, max_rel,
                               use_bf16_mxu=False):
    N, L, E = query.shape

    # Fused Q/K/V projection: one pallas_call over a leading projection axis.
    # Weights are pre-transposed on the host so the kernel does x @ Wt directly.
    x3 = jnp.stack([query, key, value], axis=0).reshape(3, N * L, E)
    wt3 = jnp.stack([params["w_q"].T, params["w_k"].T, params["w_v"].T], axis=0)
    b3 = jnp.stack([params["b_q"], params["b_k"], params["b_v"]],
                   axis=0)[:, None, :]
    qkv = batched_linear(x3, wt3, b3, use_bf16=use_bf16_mxu)       # (3, N*L, E)
    q = qkv[0].reshape(N, L, E)
    k = qkv[1].reshape(N, L, E)
    v = qkv[2].reshape(N, L, E)

    # Attention keeps the (N, L, E) layout end-to-end (heads split inside the
    # kernel with static lane slices) — no activation transposes.
    x = rpr_attention(q, k, v, params["embed_K"], params["embed_V"],
                      h=h, max_rel=max_rel, use_bf16=use_bf16_mxu)  # (N, L, E)

    out = batched_linear(x.reshape(1, N * L, E),
                         params["w_o"].T[None],
                         params["b_o"][None, None, :],
                         use_bf16=use_bf16_mxu)
    return out.reshape(N, L, E)


# ----------------------------- pure-JAX reference --------------------------- #
def reference_forward(params, query, key, value, h, max_rel):
    N, L, E = query.shape
    d_k = E // h

    def lin(x, w, b):
        return x @ w.T + b

    def proj(x, w, b):
        return lin(x, w, b).reshape(N, L, h, d_k).transpose(0, 2, 1, 3)

    q = proj(query, params["w_q"], params["b_q"])
    k = proj(key, params["w_k"], params["b_k"])
    v = proj(value, params["w_v"], params["b_v"])

    r = jnp.arange(L)
    idx = jnp.clip(r[None, :] - r[:, None], -max_rel, max_rel) + max_rel
    rel_k = params["embed_K"][idx]
    rel_v = params["embed_V"][idx]

    logits = jnp.einsum("nhid,nhjd->nhij", q, k)
    logits = logits + jnp.einsum("nhid,ijd->nhij", q, rel_k)
    w = jax.nn.softmax(logits, axis=-1)
    x = jnp.einsum("nhij,nhjd->nhid", w, v)
    x = x + jnp.einsum("nhij,ijd->nhid", w, rel_v)
    x = x.transpose(0, 2, 1, 3).reshape(N, L, E)
    return lin(x, params["w_o"], params["b_o"])


# ---------------------------------- main ------------------------------------ #
if __name__ == "__main__":
    N, L, d_model, h, max_rel = 2, 8, 32, 4, 4
    d_k = d_model // h
    vocab = 2 * max_rel + 1

    root = jax.random.PRNGKey(0)
    ks = jax.random.split(root, 16)
    s = 0.1
    params = {
        "w_q": jax.random.normal(ks[0], (d_model, d_model), jnp.float32) * s,
        "b_q": jax.random.normal(ks[1], (d_model,), jnp.float32) * s,
        "w_k": jax.random.normal(ks[2], (d_model, d_model), jnp.float32) * s,
        "b_k": jax.random.normal(ks[3], (d_model,), jnp.float32) * s,
        "w_v": jax.random.normal(ks[4], (d_model, d_model), jnp.float32) * s,
        "b_v": jax.random.normal(ks[5], (d_model,), jnp.float32) * s,
        "w_o": jax.random.normal(ks[6], (d_model, d_model), jnp.float32) * s,
        "b_o": jax.random.normal(ks[7], (d_model,), jnp.float32) * s,
        "embed_K": jax.random.normal(ks[8], (vocab, d_k), jnp.float32) * s,
        "embed_V": jax.random.normal(ks[9], (vocab, d_k), jnp.float32) * s,
    }

    query = jax.random.normal(ks[10], (N, L, d_model), jnp.float32)
    key_in = jax.random.normal(ks[11], (N, L, d_model), jnp.float32)
    value = jax.random.normal(ks[12], (N, L, d_model), jnp.float32)

    fwd = jax.jit(functools.partial(multi_headed_attention_rpr,
                                    h=h, max_rel=max_rel, use_bf16_mxu=False))
    out = jax.block_until_ready(fwd(params, query, key_in, value))

    ref = reference_forward(params, query, key_in, value, h, max_rel)
    assert out.shape == (N, L, d_model), out.shape
    max_err = float(jnp.max(jnp.abs(out - ref)))
    # approx reciprocal in the softmax introduces ~1e-3-level relative error.
    assert max_err < 5e-3, f"max abs err {max_err}"

    print("KERNEL_OK")
</pallas_src>

<mosaic_0001>
module attributes {stable_mosaic.version = 11 : i64} {
  func.func @_linear_kernel_single(%arg0: i32, %arg1: i32, %arg2: i32, %arg3: memref<1x16x32xf32, #tpu.memory_space<vmem>>, %arg4: memref<1x32x32xf32, #tpu.memory_space<vmem>>, %arg5: memref<1x1x32xf32, #tpu.memory_space<vmem>>, %arg6: memref<1x16x32xf32, #tpu.memory_space<vmem>>) attributes {dimension_semantics = [#tpu.dimension_semantics<parallel>, #tpu.dimension_semantics<parallel>, #tpu.dimension_semantics<parallel>], iteration_bounds = array<i64: 3, 1, 1>, scalar_prefetch = 0 : i64, scratch_operands = 0 : i64, tpu.core_type = #tpu.core_type<tc>, window_params = [{transform_indices = @transform_0, window_bounds = array<i64: 1, 16, 32>}, {transform_indices = @transform_1, window_bounds = array<i64: 1, 32, 32>}, {transform_indices = @transform_2, window_bounds = array<i64: 1, 1, 32>}, {transform_indices = @transform_3, window_bounds = array<i64: 1, 16, 32>}]} {
    %c0 = arith.constant 0 : index
    %c0_0 = arith.constant 0 : index
    %c0_1 = arith.constant 0 : index
    %0 = vector.load %arg3[%c0, %c0_0, %c0_1] : memref<1x16x32xf32, #tpu.memory_space<vmem>>, vector<1x16x32xf32>
    %1 = vector.shape_cast %0 : vector<1x16x32xf32> to vector<16x32xf32>
    %c0_2 = arith.constant 0 : index
    %c0_3 = arith.constant 0 : index
    %c0_4 = arith.constant 0 : index
    %2 = vector.load %arg4[%c0_2, %c0_3, %c0_4] : memref<1x32x32xf32, #tpu.memory_space<vmem>>, vector<1x32x32xf32>
    %3 = vector.shape_cast %2 : vector<1x32x32xf32> to vector<32x32xf32>
    %cst = arith.constant dense<0.000000e+00> : vector<16x32xf32>
    %4 = tpu.matmul %1, %3, %cst {dimension_numbers = #tpu.dot_dimension_numbers<[1], [0], [0], [1], [0, 0, 1, 1], [], []>} : vector<16x32xf32>, vector<32x32xf32>, vector<16x32xf32> -> vector<16x32xf32>
    %c0_5 = arith.constant 0 : index
    %c0_6 = arith.constant 0 : index
    %c0_7 = arith.constant 0 : index
    %5 = vector.load %arg5[%c0_5, %c0_6, %c0_7] : memref<1x1x32xf32, #tpu.memory_space<vmem>>, vector<1x1x32xf32>
    %6 = vector.shape_cast %5 : vector<1x1x32xf32> to vector<1x32xf32>
    %7 = vector.broadcast %6 : vector<1x32xf32> to vector<16x32xf32>
    %8 = arith.addf %4, %7 : vector<16x32xf32>
    %c0_8 = arith.constant 0 : index
    %c0_9 = arith.constant 0 : index
    %c0_10 = arith.constant 0 : index
    %9 = vector.load %arg6[%c0_8, %c0_9, %c0_10] : memref<1x16x32xf32, #tpu.memory_space<vmem>>, vector<1x16x32xf32>
    %10 = vector.shape_cast %9 : vector<1x16x32xf32> to vector<16x32xf32>
    %11 = vector.shape_cast %8 : vector<16x32xf32> to vector<1x16x32xf32>
    tpu.vector_store %arg6[%c0_8, %c0_9, %c0_10], %11 {strides = array<i32>} : memref<1x16x32xf32, #tpu.memory_space<vmem>>, vector<1x16x32xf32>,
    return
  }
  func.func @transform_0(%arg0: i32, %arg1: i32, %arg2: i32) -> (i32, i32, i32) {
    %c0_i32 = arith.constant 0 : i32
    %c0_i32_0 = arith.constant 0 : i32
    return %arg0, %arg1, %c0_i32 : i32, i32, i32
  }
  func.func @transform_1(%arg0: i32, %arg1: i32, %arg2: i32) -> (i32, i32, i32) {
    %c0_i32 = arith.constant 0 : i32
    %c0_i32_0 = arith.constant 0 : i32
    return %arg0, %c0_i32, %arg2 : i32, i32, i32
  }
  func.func @transform_2(%arg0: i32, %arg1: i32, %arg2: i32) -> (i32, i32, i32) {
    %c0_i32 = arith.constant 0 : i32
    %c0_i32_0 = arith.constant 0 : i32
    return %arg0, %c0_i32, %arg2 : i32, i32, i32
  }
  func.func @transform_3(%arg0: i32, %arg1: i32, %arg2: i32) -> (i32, i32, i32) {
    %c0_i32 = arith.constant 0 : i32
    return %arg0, %arg1, %arg2 : i32, i32, i32
  }
}

module attributes {stable_mosaic.version = 11 : i64} {
  func.func @_linear_kernel_single(%arg0: i32, %arg1: i32, %arg2: i32, %arg3: memref<1x16x32xf32, #tpu.memory_space<vmem>>, %arg4: memref<1x32x32xf32, #tpu.memory_space<vmem>>, %arg5: memref<1x1x32xf32, #tpu.memory_space<vmem>>, %arg6: memref<1x16x32xf32, #tpu.memory_space<vmem>>) attributes {dimension_semantics = [#tpu.dimension_semantics<parallel>, #tpu.dimension_semantics<parallel>, #tpu.dimension_semantics<parallel>], iteration_bounds = array<i64: 1, 1, 1>, scalar_prefetch = 0 : i64, scratch_operands = 0 : i64, tpu.core_type = #tpu.core_type<tc>, window_params = [{transform_indices = @transform_0, window_bounds = array<i64: 1, 16, 32>}, {transform_indices = @transform_1, window_bounds = array<i64: 1, 32, 32>}, {transform_indices = @transform_2, window_bounds = array<i64: 1, 1, 32>}, {transform_indices = @transform_3, window_bounds = array<i64: 1, 16, 32>}]} {
    %c0 = arith.constant 0 : index
    %c0_0 = arith.constant 0 : index
    %c0_1 = arith.constant 0 : index
    %0 = vector.load %arg3[%c0, %c0_0, %c0_1] : memref<1x16x32xf32, #tpu.memory_space<vmem>>, vector<1x16x32xf32>
    %1 = vector.shape_cast %0 : vector<1x16x32xf32> to vector<16x32xf32>
    %c0_2 = arith.constant 0 : index
    %c0_3 = arith.constant 0 : index
    %c0_4 = arith.constant 0 : index
    %2 = vector.load %arg4[%c0_2, %c0_3, %c0_4] : memref<1x32x32xf32, #tpu.memory_space<vmem>>, vector<1x32x32xf32>
    %3 = vector.shape_cast %2 : vector<1x32x32xf32> to vector<32x32xf32>
    %cst = arith.constant dense<0.000000e+00> : vector<16x32xf32>
    %4 = tpu.matmul %1, %3, %cst {dimension_numbers = #tpu.dot_dimension_numbers<[1], [0], [0], [1], [0, 0, 1, 1], [], []>} : vector<16x32xf32>, vector<32x32xf32>, vector<16x32xf32> -> vector<16x32xf32>
    %c0_5 = arith.constant 0 : index
    %c0_6 = arith.constant 0 : index
    %c0_7 = arith.constant 0 : index
    %5 = vector.load %arg5[%c0_5, %c0_6, %c0_7] : memref<1x1x32xf32, #tpu.memory_space<vmem>>, vector<1x1x32xf32>
    %6 = vector.shape_cast %5 : vector<1x1x32xf32> to vector<1x32xf32>
    %7 = vector.broadcast %6 : vector<1x32xf32> to vector<16x32xf32>
    %8 = arith.addf %4, %7 : vector<16x32xf32>
    %c0_8 = arith.constant 0 : index
    %c0_9 = arith.constant 0 : index
    %c0_10 = arith.constant 0 : index
    %9 = vector.load %arg6[%c0_8, %c0_9, %c0_10] : memref<1x16x32xf32, #tpu.memory_space<vmem>>, vector<1x16x32xf32>
    %10 = vector.shape_cast %9 : vector<1x16x32xf32> to vector<16x32xf32>
    %11 = vector.shape_cast %8 : vector<16x32xf32> to vector<1x16x32xf32>
    tpu.vector_store %arg6[%c0_8, %c0_9, %c0_10], %11 {strides = array<i32>} : memref<1x16x32xf32, #tpu.memory_space<vmem>>, vector<1x16x32xf32>,
    return
  }
  func.func @transform_0(%arg0: i32, %arg1: i32, %arg2: i32) -> (i32, i32, i32) {
    %c0_i32 = arith.constant 0 : i32
    %c0_i32_0 = arith.constant 0 : i32
    return %arg0, %arg1, %c0_i32 : i32, i32, i32
  }
  func.func @transform_1(%arg0: i32, %arg1: i32, %arg2: i32) -> (i32, i32, i32) {
    %c0_i32 = arith.constant 0 : i32
    %c0_i32_0 = arith.constant 0 : i32
    return %arg0, %c0_i32, %arg2 : i32, i32, i32
  }
  func.func @transform_2(%arg0: i32, %arg1: i32, %arg2: i32) -> (i32, i32, i32) {
    %c0_i32 = arith.constant 0 : i32
    %c0_i32_0 = arith.constant 0 : i32
    return %arg0, %c0_i32, %arg2 : i32, i32, i32
  }
  func.func @transform_3(%arg0: i32, %arg1: i32, %arg2: i32) -> (i32, i32, i32) {
    %c0_i32 = arith.constant 0 : i32
    return %arg0, %arg1, %arg2 : i32, i32, i32
  }
}

module attributes {stable_mosaic.version = 11 : i64} {
  func.func @_rpr_attn_kernel(%arg0: i32, %arg1: memref<1x8x32xf32, #tpu.memory_space<vmem>>, %arg2: memref<1x8x32xf32, #tpu.memory_space<vmem>>, %arg3: memref<1x8x32xf32, #tpu.memory_space<vmem>>, %arg4: memref<9x8xf32, #tpu.memory_space<vmem>>, %arg5: memref<9x8xf32, #tpu.memory_space<vmem>>, %arg6: memref<1x8x32xf32, #tpu.memory_space<vmem>>) attributes {dimension_semantics = [#tpu.dimension_semantics<parallel>], iteration_bounds = array<i64: 2>, scalar_prefetch = 0 : i64, scratch_operands = 0 : i64, tpu.core_type = #tpu.core_type<tc>, window_params = [{transform_indices = @transform_0, window_bounds = array<i64: 1, 8, 32>}, {transform_indices = @transform_1, window_bounds = array<i64: 1, 8, 32>}, {transform_indices = @transform_2, window_bounds = array<i64: 1, 8, 32>}, {pipeline_mode = #tpu.pipeline_mode<synchronous>, transform_indices = @transform_3, window_bounds = array<i64: 9, 8>}, {pipeline_mode = #tpu.pipeline_mode<synchronous>, transform_indices = @transform_4, window_bounds = array<i64: 9, 8>}, {transform_indices = @transform_5, window_bounds = array<i64: 1, 8, 32>}]} {
    %0 = tpu.iota {dimensions = array<i32: 0>} : vector<8x8xi32>
    %1 = tpu.iota {dimensions = array<i32: 1>} : vector<8x8xi32>
    %2 = arith.subi %1, %0 : vector<8x8xi32>
    %c-4_i32 = arith.constant -4 : i32
    %c4_i32 = arith.constant 4 : i32
    %3 = vector.broadcast %c-4_i32 : i32 to vector<8x8xi32>
    %4 = arith.maxsi %3, %2 : vector<8x8xi32>
    %5 = vector.broadcast %c4_i32 : i32 to vector<8x8xi32>
    %6 = arith.minsi %5, %4 : vector<8x8xi32>
    %c4_i32_0 = arith.constant 4 : i32
    %7 = vector.broadcast %c4_i32_0 : i32 to vector<8x8xi32>
    %8 = arith.addi %6, %7 : vector<8x8xi32>
    %c0_i32 = arith.constant 0 : i32
    %9 = vector.broadcast %c0_i32 : i32 to vector<8x8xi32>
    %10 = arith.cmpi eq, %8, %9 : vector<8x8xi32>
    %c1_i32 = arith.constant 1 : i32
    %11 = vector.broadcast %c1_i32 : i32 to vector<8x8xi32>
    %12 = arith.cmpi eq, %8, %11 : vector<8x8xi32>
    %c2_i32 = arith.constant 2 : i32
    %13 = vector.broadcast %c2_i32 : i32 to vector<8x8xi32>
    %14 = arith.cmpi eq, %8, %13 : vector<8x8xi32>
    %c3_i32 = arith.constant 3 : i32
    %15 = vector.broadcast %c3_i32 : i32 to vector<8x8xi32>
    %16 = arith.cmpi eq, %8, %15 : vector<8x8xi32>
    %c4_i32_1 = arith.constant 4 : i32
    %17 = vector.broadcast %c4_i32_1 : i32 to vector<8x8xi32>
    %18 = arith.cmpi eq, %8, %17 : vector<8x8xi32>
    %c5_i32 = arith.constant 5 : i32
    %19 = vector.broadcast %c5_i32 : i32 to vector<8x8xi32>
    %20 = arith.cmpi eq, %8, %19 : vector<8x8xi32>
    %c6_i32 = arith.constant 6 : i32
    %21 = vector.broadcast %c6_i32 : i32 to vector<8x8xi32>
    %22 = arith.cmpi eq, %8, %21 : vector<8x8xi32>
    %c7_i32 = arith.constant 7 : i32
    %23 = vector.broadcast %c7_i32 : i32 to vector<8x8xi32>
    %24 = arith.cmpi eq, %8, %23 : vector<8x8xi32>
    %c8_i32 = arith.constant 8 : i32
    %25 = vector.broadcast %c8_i32 : i32 to vector<8x8xi32>
    %26 = arith.cmpi eq, %8, %25 : vector<8x8xi32>
    %c0 = arith.constant 0 : index
    %c0_2 = arith.constant 0 : index
    %27 = vector.load %arg4[%c0, %c0_2] : memref<9x8xf32, #tpu.memory_space<vmem>>, vector<9x8xf32>
    %c0_3 = arith.constant 0 : index
    %c0_4 = arith.constant 0 : index
    %28 = vector.load %arg5[%c0_3, %c0_4] : memref<9x8xf32, #tpu.memory_space<vmem>>, vector<9x8xf32>
    %c0_5 = arith.constant 0 : index
    %c0_6 = arith.constant 0 : index
    %c0_7 = arith.constant 0 : index
    %29 = vector.load %arg1[%c0_5, %c0_6, %c0_7] : memref<1x8x32xf32, #tpu.memory_space<vmem>>, vector<1x8x8xf32>
    %30 = vector.shape_cast %29 : vector<1x8x8xf32> to vector<8x8xf32>
    %c0_8 = arith.constant 0 : index
    %c0_9 = arith.constant 0 : index
    %c0_10 = arith.constant 0 : index
    %31 = vector.load %arg2[%c0_8, %c0_9, %c0_10] : memref<1x8x32xf32, #tpu.memory_space<vmem>>, vector<1x8x8xf32>
    %32 = vector.shape_cast %31 : vector<1x8x8xf32> to vector<8x8xf32>
    %c0_11 = arith.constant 0 : index
    %c0_12 = arith.constant 0 : index
    %c0_13 = arith.constant 0 : index
    %33 = vector.load %arg3[%c0_11, %c0_12, %c0_13] : memref<1x8x32xf32, #tpu.memory_space<vmem>>, vector<1x8x8xf32>
    %34 = vector.shape_cast %33 : vector<1x8x8xf32> to vector<8x8xf32>
    %cst = arith.constant dense<0.000000e+00> : vector<8x8xf32>
    %35 = tpu.matmul %30, %32, %cst {dimension_numbers = #tpu.dot_dimension_numbers<[1], [1], [0], [0], [0, 0, 1, 0], [], []>} : vector<8x8xf32>, vector<8x8xf32>, vector<8x8xf32> -> vector<8x8xf32>
    %cst_14 = arith.constant dense<0.000000e+00> : vector<8x9xf32>
    %36 = tpu.matmul %30, %27, %cst_14 {dimension_numbers = #tpu.dot_dimension_numbers<[1], [1], [0], [0], [0, 0, 1, 0], [], []>} : vector<8x8xf32>, vector<9x8xf32>, vector<8x9xf32> -> vector<8x9xf32>
    %37 = vector.extract_strided_slice %36 {offsets = [0, 0], sizes = [8, 1], strides = [1, 1]} : vector<8x9xf32> to vector<8x1xf32>
    %cst_15 = arith.constant 0.000000e+00 : f32
    %38 = vector.shape_cast %37 : vector<8x1xf32> to vector<8x1xf32>
    %39 = vector.broadcast %38 : vector<8x1xf32> to vector<8x8xf32>
    %40 = vector.broadcast %cst_15 : f32 to vector<8x8xf32>
    %41 = arith.select %10, %39, %40 : vector<8x8xi1>, vector<8x8xf32>
    %42 = arith.addf %35, %41 : vector<8x8xf32>
    %43 = vector.extract_strided_slice %36 {offsets = [0, 1], sizes = [8, 1], strides = [1, 1]} : vector<8x9xf32> to vector<8x1xf32>
    %cst_16 = arith.constant 0.000000e+00 : f32
    %44 = vector.shape_cast %43 : vector<8x1xf32> to vector<8x1xf32>
    %45 = vector.broadcast %44 : vector<8x1xf32> to vector<8x8xf32>
    %46 = vector.broadcast %cst_16 : f32 to vector<8x8xf32>
    %47 = arith.select %12, %45, %46 : vector<8x8xi1>, vector<8x8xf32>
    %48 = arith.addf %42, %47 : vector<8x8xf32>
    %49 = vector.extract_strided_slice %36 {offsets = [0, 2], sizes = [8, 1], strides = [1, 1]} : vector<8x9xf32> to vector<8x1xf32>
    %cst_17 = arith.constant 0.000000e+00 : f32
    %50 = vector.shape_cast %49 : vector<8x1xf32> to vector<8x1xf32>
    %51 = vector.broadcast %50 : vector<8x1xf32> to vector<8x8xf32>
    %52 = vector.broadcast %cst_17 : f32 to vector<8x8xf32>
    %53 = arith.select %14, %51, %52 : vector<8x8xi1>, vector<8x8xf32>
    %54 = arith.addf %48, %53 : vector<8x8xf32>
    %55 = vector.extract_strided_slice %36 {offsets = [0, 3], sizes = [8, 1], strides = [1, 1]} : vector<8x9xf32> to vector<8x1xf32>
    %cst_18 = arith.constant 0.000000e+00 : f32
    %56 = vector.shape_cast %55 : vector<8x1xf32> to vector<8x1xf32>
    %57 = vector.broadcast %56 : vector<8x1xf32> to vector<8x8xf32>
    %58 = vector.broadcast %cst_18 : f32 to vector<8x8xf32>
    %59 = arith.select %16, %57, %58 : vector<8x8xi1>, vector<8x8xf32>
    %60 = arith.addf %54, %59 : vector<8x8xf32>
    %61 = vector.extract_strided_slice %36 {offsets = [0, 4], sizes = [8, 1], strides = [1, 1]} : vector<8x9xf32> to vector<8x1xf32>
    %cst_19 = arith.constant 0.000000e+00 : f32
    %62 = vector.shape_cast %61 : vector<8x1xf32> to vector<8x1xf32>
    %63 = vector.broadcast %62 : vector<8x1xf32> to vector<8x8xf32>
    %64 = vector.broadcast %cst_19 : f32 to vector<8x8xf32>
    %65 = arith.select %18, %63, %64 : vector<8x8xi1>, vector<8x8xf32>
    %66 = arith.addf %60, %65 : vector<8x8xf32>
    %67 = vector.extract_strided_slice %36 {offsets = [0, 5], sizes = [8, 1], strides = [1, 1]} : vector<8x9xf32> to vector<8x1xf32>
    %cst_20 = arith.constant 0.000000e+00 : f32
    %68 = vector.shape_cast %67 : vector<8x1xf32> to vector<8x1xf32>
    %69 = vector.broadcast %68 : vector<8x1xf32> to vector<8x8xf32>
    %70 = vector.broadcast %cst_20 : f32 to vector<8x8xf32>
    %71 = arith.select %20, %69, %70 : vector<8x8xi1>, vector<8x8xf32>
    %72 = arith.addf %66, %71 : vector<8x8xf32>
    %73 = vector.extract_strided_slice %36 {offsets = [0, 6], sizes = [8, 1], strides = [1, 1]} : vector<8x9xf32> to vector<8x1xf32>
    %cst_21 = arith.constant 0.000000e+00 : f32
    %74 = vector.shape_cast %73 : vector<8x1xf32> to vector<8x1xf32>
    %75 = vector.broadcast %74 : vector<8x1xf32> to vector<8x8xf32>
    %76 = vector.broadcast %cst_21 : f32 to vector<8x8xf32>
    %77 = arith.select %22, %75, %76 : vector<8x8xi1>, vector<8x8xf32>
    %78 = arith.addf %72, %77 : vector<8x8xf32>
    %79 = vector.extract_strided_slice %36 {offsets = [0, 7], sizes = [8, 1], strides = [1, 1]} : vector<8x9xf32> to vector<8x1xf32>
    %cst_22 = arith.constant 0.000000e+00 : f32
    %80 = vector.shape_cast %79 : vector<8x1xf32> to vector<8x1xf32>
    %81 = vector.broadcast %80 : vector<8x1xf32> to vector<8x8xf32>
    %82 = vector.broadcast %cst_22 : f32 to vector<8x8xf32>
    %83 = arith.select %24, %81, %82 : vector<8x8xi1>, vector<8x8xf32>
    %84 = arith.addf %78, %83 : vector<8x8xf32>
    %85 = vector.extract_strided_slice %36 {offsets = [0, 8], sizes = [8, 1], strides = [1, 1]} : vector<8x9xf32> to vector<8x1xf32>
    %cst_23 = arith.constant 0.000000e+00 : f32
    %86 = vector.shape_cast %85 : vector<8x1xf32> to vector<8x1xf32>
    %87 = vector.broadcast %86 : vector<8x1xf32> to vector<8x8xf32>
    %88 = vector.broadcast %cst_23 : f32 to vector<8x8xf32>
    %89 = arith.select %26, %87, %88 : vector<8x8xi1>, vector<8x8xf32>
    %90 = arith.addf %84, %89 : vector<8x8xf32>
    %cst_24 = arith.constant dense<0xFF800000> : vector<8xf32>
    %91 = vector.multi_reduction <maximumf>, %90, %cst_24 [1] : vector<8x8xf32> to vector<8xf32>
    %92 = vector.shape_cast %91 : vector<8xf32> to vector<8x1xf32>
    %93 = vector.broadcast %92 : vector<8x1xf32> to vector<8x8xf32>
    %94 = arith.subf %90, %93 : vector<8x8xf32>
    %95 = math.exp %94 : vector<8x8xf32>
    %cst_25 = arith.constant dense<0.000000e+00> : vector<8xf32>
    %96 = vector.multi_reduction <add>, %95, %cst_25 [1] : vector<8x8xf32> to vector<8xf32>
    %97 = vector.shape_cast %96 : vector<8xf32> to vector<8x1xf32>
    %98 = tpu.reciprocal %97 {approx = true} : vector<8x1xf32> -> vector<8x1xf32>
    %99 = vector.broadcast %98 : vector<8x1xf32> to vector<8x8xf32>
    %100 = arith.mulf %95, %99 : vector<8x8xf32>
    %cst_26 = arith.constant dense<0.000000e+00> : vector<8x8xf32>
    %101 = tpu.matmul %100, %34, %cst_26 {dimension_numbers = #tpu.dot_dimension_numbers<[1], [0], [0], [1], [0, 0, 1, 1], [], []>} : vector<8x8xf32>, vector<8x8xf32>, vector<8x8xf32> -> vector<8x8xf32>
    %cst_27 = arith.constant 0.000000e+00 : f32
    %102 = vector.broadcast %cst_27 : f32 to vector<8x8xf32>
    %103 = arith.select %10, %100, %102 : vector<8x8xi1>, vector<8x8xf32>
    %cst_28 = arith.constant dense<0.000000e+00> : vector<8xf32>
    %104 = vector.multi_reduction <add>, %103, %cst_28 [1] : vector<8x8xf32> to vector<8xf32>
    %105 = vector.shape_cast %104 : vector<8xf32> to vector<8x1xf32>
    %cst_29 = arith.constant 0.000000e+00 : f32
    %106 = vector.broadcast %cst_29 : f32 to vector<8x8xf32>
    %107 = arith.select %12, %100, %106 : vector<8x8xi1>, vector<8x8xf32>
    %cst_30 = arith.constant dense<0.000000e+00> : vector<8xf32>
    %108 = vector.multi_reduction <add>, %107, %cst_30 [1] : vector<8x8xf32> to vector<8xf32>
    %109 = vector.shape_cast %108 : vector<8xf32> to vector<8x1xf32>
    %cst_31 = arith.constant 0.000000e+00 : f32
    %110 = vector.broadcast %cst_31 : f32 to vector<8x8xf32>
    %111 = arith.select %14, %100, %110 : vector<8x8xi1>, vector<8x8xf32>
    %cst_32 = arith.constant dense<0.000000e+00> : vector<8xf32>
    %112 = vector.multi_reduction <add>, %111, %cst_32 [1] : vector<8x8xf32> to vector<8xf32>
    %113 = vector.shape_cast %112 : vector<8xf32> to vector<8x1xf32>
    %cst_33 = arith.constant 0.000000e+00 : f32
    %114 = vector.broadcast %cst_33 : f32 to vector<8x8xf32>
    %115 = arith.select %16, %100, %114 : vector<8x8xi1>, vector<8x8xf32>
    %cst_34 = arith.constant dense<0.000000e+00> : vector<8xf32>
    %116 = vector.multi_reduction <add>, %115, %cst_34 [1] : vector<8x8xf32> to vector<8xf32>
    %117 = vector.shape_cast %116 : vector<8xf32> to vector<8x1xf32>
    %cst_35 = arith.constant 0.000000e+00 : f32
    %118 = vector.broadcast %cst_35 : f32 to vector<8x8xf32>
    %119 = arith.select %18, %100, %118 : vector<8x8xi1>, vector<8x8xf32>
    %cst_36 = arith.constant dense<0.000000e+00> : vector<8xf32>
    %120 = vector.multi_reduction <add>, %119, %cst_36 [1] : vector<8x8xf32> to vector<8xf32>
    %121 = vector.shape_cast %120 : vector<8xf32> to vector<8x1xf32>
    %cst_37 = arith.constant 0.000000e+00 : f32
    %122 = vector.broadcast %cst_37 : f32 to vector<8x8xf32>
    %123 = arith.select %20, %100, %122 : vector<8x8xi1>, vector<8x8xf32>
    %cst_38 = arith.constant dense<0.000000e+00> : vector<8xf32>
    %124 = vector.multi_reduction <add>, %123, %cst_38 [1] : vector<8x8xf32> to vector<8xf32>
    %125 = vector.shape_cast %124 : vector<8xf32> to vector<8x1xf32>
    %cst_39 = arith.constant 0.000000e+00 : f32
    %126 = vector.broadcast %cst_39 : f32 to vector<8x8xf32>
    %127 = arith.select %22, %100, %126 : vector<8x8xi1>, vector<8x8xf32>
    %cst_40 = arith.constant dense<0.000000e+00> : vector<8xf32>
    %128 = vector.multi_reduction <add>, %127, %cst_40 [1] : vector<8x8xf32> to vector<8xf32>
    %129 = vector.shape_cast %128 : vector<8xf32> to vector<8x1xf32>
    %cst_41 = arith.constant 0.000000e+00 : f32
    %130 = vector.broadcast %cst_41 : f32 to vector<8x8xf32>
    %131 = arith.select %24, %100, %130 : vector<8x8xi1>, vector<8x8xf32>
    %cst_42 = arith.constant dense<0.000000e+00> : vector<8xf32>
    %132 = vector.multi_reduction <add>, %131, %cst_42 [1] : vector<8x8xf32> to vector<8xf32>
    %133 = vector.shape_cast %132 : vector<8xf32> to vector<8x1xf32>
    %cst_43 = arith.constant 0.000000e+00 : f32
    %134 = vector.broadcast %cst_43 : f32 to vector<8x8xf32>
    %135 = arith.select %26, %100, %134 : vector<8x8xi1>, vector<8x8xf32>
    %cst_44 = arith.constant dense<0.000000e+00> : vector<8xf32>
    %136 = vector.multi_reduction <add>, %135, %cst_44 [1] : vector<8x8xf32> to vector<8xf32>
    %137 = vector.shape_cast %136 : vector<8xf32> to vector<8x1xf32>
    %138 = tpu.concatenate %105, %109, %113, %117, %121, %125, %129, %133, %137 in 1 : vector<8x1xf32>, vector<8x1xf32>, vector<8x1xf32>, vector<8x1xf32>, vector<8x1xf32>, vector<8x1xf32>, vector<8x1xf32>, vector<8x1xf32>, vector<8x1xf32> -> vector<8x9xf32>
    %cst_45 = arith.constant dense<0.000000e+00> : vector<8x8xf32>
    %139 = tpu.matmul %138, %28, %cst_45 {dimension_numbers = #tpu.dot_dimension_numbers<[1], [0], [0], [1], [0, 0, 1, 1], [], []>} : vector<8x9xf32>, vector<9x8xf32>, vector<8x8xf32> -> vector<8x8xf32>
    %140 = arith.addf %101, %139 : vector<8x8xf32>
    %c0_46 = arith.constant 0 : index
    %c0_47 = arith.constant 0 : index
    %c8 = arith.constant 8 : index
    %141 = vector.load %arg1[%c0_46, %c0_47, %c8] : memref<1x8x32xf32, #tpu.memory_space<vmem>>, vector<1x8x8xf32>
    %142 = vector.shape_cast %141 : vector<1x8x8xf32> to vector<8x8xf32>
    %c0_48 = arith.constant 0 : index
    %c0_49 = arith.constant 0 : index
    %c8_50 = arith.constant 8 : index
    %143 = vector.load %arg2[%c0_48, %c0_49, %c8_50] : memref<1x8x32xf32, #tpu.memory_space<vmem>>, vector<1x8x8xf32>
    %144 = vector.shape_cast %143 : vector<1x8x8xf32> to vector<8x8xf32>
    %c0_51 = arith.constant 0 : index
    %c0_52 = arith.constant 0 : index
    %c8_53 = arith.constant 8 : index
    %145 = vector.load %arg3[%c0_51, %c0_52, %c8_53] : memref<1x8x32xf32, #tpu.memory_space<vmem>>, vector<1x8x8xf32>
    %146 = vector.shape_cast %145 : vector<1x8x8xf32> to vector<8x8xf32>
    %cst_54 = arith.constant dense<0.000000e+00> : vector<8x8xf32>
    %147 = tpu.matmul %142, %144, %cst_54 {dimension_numbers = #tpu.dot_dimension_numbers<[1], [1], [0], [0], [0, 0, 1, 0], [], []>} : vector<8x8xf32>, vector<8x8xf32>, vector<8x8xf32> -> vector<8x8xf32>
    %cst_55 = arith.constant dense<0.000000e+00> : vector<8x9xf32>
    %148 = tpu.matmul %142, %27, %cst_55 {dimension_numbers = #tpu.dot_dimension_numbers<[1], [1], [0], [0], [0, 0, 1, 0], [], []>} : vector<8x8xf32>, vector<9x8xf32>, vector<8x9xf32> -> vector<8x9xf32>
    %149 = vector.extract_strided_slice %148 {offsets = [0, 0], sizes = [8, 1], strides = [1, 1]} : vector<8x9xf32> to vector<8x1xf32>
    %cst_56 = arith.constant 0.000000e+00 : f32
    %150 = vector.shape_cast %149 : vector<8x1xf32> to vector<8x1xf32>
    %151 = vector.broadcast %150 : vector<8x1xf32> to vector<8x8xf32>
    %152 = vector.broadcast %cst_56 : f32 to vector<8x8xf32>
    %153 = arith.select %10, %151, %152 : vector<8x8xi1>, vector<8x8xf32>
    %154 = arith.addf %147, %153 : vector<8x8xf32>
    %155 = vector.extract_strided_slice %148 {offsets = [0, 1], sizes = [8, 1], strides = [1, 1]} : vector<8x9xf32> to vector<8x1xf32>
    %cst_57 = arith.constant 0.000000e+00 : f32
    %156 = vector.shape_cast %155 : vector<8x1xf32> to vector<8x1xf32>
    %157 = vector.broadcast %156 : vector<8x1xf32> to vector<8x8xf32>
    %158 = vector.broadcast %cst_57 : f32 to vector<8x8xf32>
    %159 = arith.select %12, %157, %158 : vector<8x8xi1>, vector<8x8xf32>
    %160 = arith.addf %154, %159 : vector<8x8xf32>
    %161 = vector.extract_strided_slice %148 {offsets = [0, 2], sizes = [8, 1], strides = [1, 1]} : vector<8x9xf32> to vector<8x1xf32>
    %cst_58 = arith.constant 0.000000e+00 : f32
    %162 = vector.shape_cast %161 : vector<8x1xf32> to vector<8x1xf32>
    %163 = vector.broadcast %162 : vector<8x1xf32> to vector<8x8xf32>
    %164 = vector.broadcast %cst_58 : f32 to vector<8x8xf32>
    %165 = arith.select %14, %163, %164 : vector<8x8xi1>, vector<8x8xf32>
    %166 = arith.addf %160, %165 : vector<8x8xf32>
    %167 = vector.extract_strided_slice %148 {offsets = [0, 3], sizes = [8, 1], strides = [1, 1]} : vector<8x9xf32> to vector<8x1xf32>
    %cst_59 = arith.constant 0.000000e+00 : f32
    %168 = vector.shape_cast %167 : vector<8x1xf32> to vector<8x1xf32>
    %169 = vector.broadcast %168 : vector<8x1xf32> to vector<8x8xf32>
    %170 = vector.broadcast %cst_59 : f32 to vector<8x8xf32>
    %171 = arith.select %16, %169, %170 : vector<8x8xi1>, vector<8x8xf32>
    %172 = arith.addf %166, %171 : vector<8x8xf32>
    %173 = vector.extract_strided_slice %148 {offsets = [0, 4], sizes = [8, 1], strides = [1, 1]} : vector<8x9xf32> to vector<8x1xf32>
    %cst_60 = arith.constant 0.000000e+00 : f32
    %174 = vector.shape_cast %173 : vector<8x1xf32> to vector<8x1xf32>
    %175 = vector.broadcast %174 : vector<8x1xf32> to vector<8x8xf32>
    %176 = vector.broadcast %cst_60 : f32 to vector<8x8xf32>
    %177 = arith.select %18, %175, %176 : vector<8x8xi1>, vector<8x8xf32>
    %178 = arith.addf %172, %177 : vector<8x8xf32>
    %179 = vector.extract_strided_slice %148 {offsets = [0, 5], sizes = [8, 1], strides = [1, 1]} : vector<8x9xf32> to vector<8x1xf32>
    %cst_61 = arith.constant 0.000000e+00 : f32
    %180 = vector.shape_cast %179 : vector<8x1xf32> to vector<8x1xf32>
    %181 = vector.broadcast %180 : vector<8x1xf32> to vector<8x8xf32>
    %182 = vector.broadcast %cst_61 : f32 to vector<8x8xf32>
    %183 = arith.select %20, %181, %182 : vector<8x8xi1>, vector<8x8xf32>
    %184 = arith.addf %178, %183 : vector<8x8xf32>
    %185 = vector.extract_strided_slice %148 {offsets = [0, 6], sizes = [8, 1], strides = [1, 1]} : vector<8x9xf32> to vector<8x1xf32>
    %cst_62 = arith.constant 0.000000e+00 : f32
    %186 = vector.shape_cast %185 : vector<8x1xf32> to vector<8x1xf32>
    %187 = vector.broadcast %186 : vector<8x1xf32> to vector<8x8xf32>
    %188 = vector.broadcast %cst_62 : f32 to vector<8x8xf32>
    %189 = arith.select %22, %187, %188 : vector<8x8xi1>, vector<8x8xf32>
    %190 = arith.addf %184, %189 : vector<8x8xf32>
    %191 = vector.extract_strided_slice %148 {offsets = [0, 7], sizes = [8, 1], strides = [1, 1]} : vector<8x9xf32> to vector<8x1xf32>
    %cst_63 = arith.constant 0.000000e+00 : f32
    %192 = vector.shape_cast %191 : vector<8x1xf32> to vector<8x1xf32>
    %193 = vector.broadcast %192 : vector<8x1xf32> to vector<8x8xf32>
    %194 = vector.broadcast %cst_63 : f32 to vector<8x8xf32>
    %195 = arith.select %24, %193, %194 : vector<8x8xi1>, vector<8x8xf32>
    %196 = arith.addf %190, %195 : vector<8x8xf32>
    %197 = vector.extract_strided_slice %148 {offsets = [0, 8], sizes = [8, 1], strides = [1, 1]} : vector<8x9xf32> to vector<8x1xf32>
    %cst_64 = arith.constant 0.000000e+00 : f32
    %198 = vector.shape_cast %197 : vector<8x1xf32> to vector<8x1xf32>
    %199 = vector.broadcast %198 : vector<8x1xf32> to vector<8x8xf32>
    %200 = vector.broadcast %cst_64 : f32 to vector<8x8xf32>
    %201 = arith.select %26, %199, %200 : vector<8x8xi1>, vector<8x8xf32>
    %202 = arith.addf %196, %201 : vector<8x8xf32>
    %cst_65 = arith.constant dense<0xFF800000> : vector<8xf32>
    %203 = vector.multi_reduction <maximumf>, %202, %cst_65 [1] : vector<8x8xf32> to vector<8xf32>
    %204 = vector.shape_cast %203 : vector<8xf32> to vector<8x1xf32>
    %205 = vector.broadcast %204 : vector<8x1xf32> to vector<8x8xf32>
    %206 = arith.subf %202, %205 : vector<8x8xf32>
    %207 = math.exp %206 : vector<8x8xf32>
    %cst_66 = arith.constant dense<0.000000e+00> : vector<8xf32>
    %208 = vector.multi_reduction <add>, %207, %cst_66 [1] : vector<8x8xf32> to vector<8xf32>
    %209 = vector.shape_cast %208 : vector<8xf32> to vector<8x1xf32>
    %210 = tpu.reciprocal %209 {approx = true} : vector<8x1xf32> -> vector<8x1xf32>
    %211 = vector.broadcast %210 : vector<8x1xf32> to vector<8x8xf32>
    %212 = arith.mulf %207, %211 : vector<8x8xf32>
    %cst_67 = arith.constant dense<0.000000e+00> : vector<8x8xf32>
    %213 = tpu.matmul %212, %146, %cst_67 {dimension_numbers = #tpu.dot_dimension_numbers<[1], [0], [0], [1], [0, 0, 1, 1], [], []>} : vector<8x8xf32>, vector<8x8xf32>, vector<8x8xf32> -> vector<8x8xf32>
    %cst_68 = arith.constant 0.000000e+00 : f32
    %214 = vector.broadcast %cst_68 : f32 to vector<8x8xf32>
    %215 = arith.select %10, %212, %214 : vector<8x8xi1>, vector<8x8xf32>
    %cst_69 = arith.constant dense<0.000000e+00> : vector<8xf32>
    %216 = vector.multi_reduction <add>, %215, %cst_69 [1] : vector<8x8xf32> to vector<8xf32>
    %217 = vector.shape_cast %216 : vector<8xf32> to vector<8x1xf32>
    %cst_70 = arith.constant 0.000000e+00 : f32
    %218 = vector.broadcast %cst_70 : f32 to vector<8x8xf32>
    %219 = arith.select %12, %212, %218 : vector<8x8xi1>, vector<8x8xf32>
    %cst_71 = arith.constant dense<0.000000e+00> : vector<8xf32>
    %220 = vector.multi_reduction <add>, %219, %cst_71 [1] : vector<8x8xf32> to vector<8xf32>
    %221 = vector.shape_cast %220 : vector<8xf32> to vector<8x1xf32>
    %cst_72 = arith.constant 0.000000e+00 : f32
    %222 = vector.broadcast %cst_72 : f32 to vector<8x8xf32>
    %223 = arith.select %14, %212, %222 : vector<8x8xi1>, vector<8x8xf32>
    %cst_73 = arith.constant dense<0.000000e+00> : vector<8xf32>
    %224 = vector.multi_reduction <add>, %223, %cst_73 [1] : vector<8x8xf32> to vector<8xf32>
    %225 = vector.shape_cast %224 : vector<8xf32> to vector<8x1xf32>
    %cst_74 = arith.constant 0.000000e+00 : f32
    %226 = vector.broadcast %cst_74 : f32 to vector<8x8xf32>
    %227 = arith.select %16, %212, %226 : vector<8x8xi1>, vector<8x8xf32>
    %cst_75 = arith.constant dense<0.000000e+00> : vector<8xf32>
    %228 = vector.multi_reduction <add>, %227, %cst_75 [1] : vector<8x8xf32> to vector<8xf32>
    %229 = vector.shape_cast %228 : vector<8xf32> to vector<8x1xf32>
    %cst_76 = arith.constant 0.000000e+00 : f32
    %230 = vector.broadcast %cst_76 : f32 to vector<8x8xf32>
    %231 = arith.select %18, %212, %230 : vector<8x8xi1>, vector<8x8xf32>
    %cst_77 = arith.constant dense<0.000000e+00> : vector<8xf32>
    %232 = vector.multi_reduction <add>, %231, %cst_77 [1] : vector<8x8xf32> to vector<8xf32>
    %233 = vector.shape_cast %232 : vector<8xf32> to vector<8x1xf32>
    %cst_78 = arith.constant 0.000000e+00 : f32
    %234 = vector.broadcast %cst_78 : f32 to vector<8x8xf32>
    %235 = arith.select %20, %212, %234 : vector<8x8xi1>, vector<8x8xf32>
    %cst_79 = arith.constant dense<0.000000e+00> : vector<8xf32>
    %236 = vector.multi_reduction <add>, %235, %cst_79 [1] : vector<8x8xf32> to vector<8xf32>
    %237 = vector.shape_cast %236 : vector<8xf32> to vector<8x1xf32>
    %cst_80 = arith.constant 0.000000e+00 : f32
    %238 = vector.broadcast %cst_80 : f32 to vector<8x8xf32>
    %239 = arith.select %22, %212, %238 : vector<8x8xi1>, vector<8x8xf32>
    %cst_81 = arith.constant dense<0.000000e+00> : vector<8xf32>
    %240 = vector.multi_reduction <add>, %239, %cst_81 [1] : vector<8x8xf32> to vector<8xf32>
    %241 = vector.shape_cast %240 : vector<8xf32> to vector<8x1xf32>
    %cst_82 = arith.constant 0.000000e+00 : f32
    %242 = vector.broadcast %cst_82 : f32 to vector<8x8xf32>
    %243 = arith.select %24, %212, %242 : vector<8x8xi1>, vector<8x8xf32>
    %cst_83 = arith.constant dense<0.000000e+00> : vector<8xf32>
    %244 = vector.multi_reduction <add>, %243, %cst_83 [1] : vector<8x8xf32> to vector<8xf32>
    %245 = vector.shape_cast %244 : vector<8xf32> to vector<8x1xf32>
    %cst_84 = arith.constant 0.000000e+00 : f32
    %246 = vector.broadcast %cst_84 : f32 to vector<8x8xf32>
    %247 = arith.select %26, %212, %246 : vector<8x8xi1>, vector<8x8xf32>
    %cst_85 = arith.constant dense<0.000000e+00> : vector<8xf32>
    %248 = vector.multi_reduction <add>, %247, %cst_85 [1] : vector<8x8xf32> to vector<8xf32>
    %249 = vector.shape_cast %248 : vector<8xf32> to vector<8x1xf32>
    %250 = tpu.concatenate %217, %221, %225, %229, %233, %237, %241, %245, %249 in 1 : vector<8x1xf32>, vector<8x1xf32>, vector<8x1xf32>, vector<8x1xf32>, vector<8x1xf32>, vector<8x1xf32>, vector<8x1xf32>, vector<8x1xf32>, vector<8x1xf32> -> vector<8x9xf32>
    %cst_86 = arith.constant dense<0.000000e+00> : vector<8x8xf32>
    %251 = tpu.matmul %250, %28, %cst_86 {dimension_numbers = #tpu.dot_dimension_numbers<[1], [0], [0], [1], [0, 0, 1, 1], [], []>} : vector<8x9xf32>, vector<9x8xf32>, vector<8x8xf32> -> vector<8x8xf32>
    %252 = arith.addf %213, %251 : vector<8x8xf32>
    %c0_87 = arith.constant 0 : index
    %c0_88 = arith.constant 0 : index
    %c16 = arith.constant 16 : index
    %253 = vector.load %arg1[%c0_87, %c0_88, %c16] : memref<1x8x32xf32, #tpu.memory_space<vmem>>, vector<1x8x8xf32>
    %254 = vector.shape_cast %253 : vector<1x8x8xf32> to vector<8x8xf32>
    %c0_89 = arith.constant 0 : index
    %c0_90 = arith.constant 0 : index
    %c16_91 = arith.constant 16 : index
    %255 = vector.load %arg2[%c0_89, %c0_90, %c16_91] : memref<1x8x32xf32, #tpu.memory_space<vmem>>, vector<1x8x8xf32>
    %256 = vector.shape_cast %255 : vector<1x8x8xf32> to vector<8x8xf32>
    %c0_92 = arith.constant 0 : index
    %c0_93 = arith.constant 0 : index
    %c16_94 = arith.constant 16 : index
    %257 = vector.load %arg3[%c0_92, %c0_93, %c16_94] : memref<1x8x32xf32, #tpu.memory_space<vmem>>, vector<1x8x8xf32>
    %258 = vector.shape_cast %257 : vector<1x8x8xf32> to vector<8x8xf32>
    %cst_95 = arith.constant dense<0.000000e+00> : vector<8x8xf32>
    %259 = tpu.matmul %254, %256, %cst_95 {dimension_numbers = #tpu.dot_dimension_numbers<[1], [1], [0], [0], [0, 0, 1, 0], [], []>} : vector<8x8xf32>, vector<8x8xf32>, vector<8x8xf32> -> vector<8x8xf32>
    %cst_96 = arith.constant dense<0.000000e+00> : vector<8x9xf32>
    %260 = tpu.matmul %254, %27, %cst_96 {dimension_numbers = #tpu.dot_dimension_numbers<[1], [1], [0], [0], [0, 0, 1, 0], [], []>} : vector<8x8xf32>, vector<9x8xf32>, vector<8x9xf32> -> vector<8x9xf32>
    %261 = vector.extract_strided_slice %260 {offsets = [0, 0], sizes = [8, 1], strides = [1, 1]} : vector<8x9xf32> to vector<8x1xf32>
    %cst_97 = arith.constant 0.000000e+00 : f32
    %262 = vector.shape_cast %261 : vector<8x1xf32> to vector<8x1xf32>
    %263 = vector.broadcast %262 : vector<8x1xf32> to vector<8x8xf32>
    %264 = vector.broadcast %cst_97 : f32 to vector<8x8xf32>
    %265 = arith.select %10, %263, %264 : vector<8x8xi1>, vector<8x8xf32>
    %266 = arith.addf %259, %265 : vector<8x8xf32>
    %267 = vector.extract_strided_slice %260 {offsets = [0, 1], sizes = [8, 1], strides = [1, 1]} : vector<8x9xf32> to vector<8x1xf32>
    %cst_98 = arith.constant 0.000000e+00 : f32
    %268 = vector.shape_cast %267 : vector<8x1xf32> to vector<8x1xf32>
    %269 = vector.broadcast %268 : vector<8x1xf32> to vector<8x8xf32>
    %270 = vector.broadcast %cst_98 : f32 to vector<8x8xf32>
    %271 = arith.select %12, %269, %270 : vector<8x8xi1>, vector<8x8xf32>
    %272 = arith.addf %266, %271 : vector<8x8xf32>
    %273 = vector.extract_strided_slice %260 {offsets = [0, 2], sizes = [8, 1], strides = [1, 1]} : vector<8x9xf32> to vector<8x1xf32>
    %cst_99 = arith.constant 0.000000e+00 : f32
    %274 = vector.shape_cast %273 : vector<8x1xf32> to vector<8x1xf32>
    %275 = vector.broadcast %274 : vector<8x1xf32> to vector<8x8xf32>
    %276 = vector.broadcast %cst_99 : f32 to vector<8x8xf32>
    %277 = arith.select %14, %275, %276 : vector<8x8xi1>, vector<8x8xf32>
    %278 = arith.addf %272, %277 : vector<8x8xf32>
    %279 = vector.extract_strided_slice %260 {offsets = [0, 3], sizes = [8, 1], strides = [1, 1]} : vector<8x9xf32> to vector<8x1xf32>
    %cst_100 = arith.constant 0.000000e+00 : f32
    %280 = vector.shape_cast %279 : vector<8x1xf32> to vector<8x1xf32>
    %281 = vector.broadcast %280 : vector<8x1xf32> to vector<8x8xf32>
    %282 = vector.broadcast %cst_100 : f32 to vector<8x8xf32>
    %283 = arith.select %16, %281, %282 : vector<8x8xi1>, vector<8x8xf32>
    %284 = arith.addf %278, %283 : vector<8x8xf32>
    %285 = vector.extract_strided_slice %260 {offsets = [0, 4], sizes = [8, 1], strides = [1, 1]} : vector<8x9xf32> to vector<8x1xf32>
    %cst_101 = arith.constant 0.000000e+00 : f32
    %286 = vector.shape_cast %285 : vector<8x1xf32> to vector<8x1xf32>
    %287 = vector.broadcast %286 : vector<8x1xf32> to vector<8x8xf32>
    %288 = vector.broadcast %cst_101 : f32 to vector<8x8xf32>
    %289 = arith.select %18, %287, %288 : vector<8x8xi1>, vector<8x8xf32>
    %290 = arith.addf %284, %289 : vector<8x8xf32>
    %291 = vector.extract_strided_slice %260 {offsets = [0, 5], sizes = [8, 1], strides = [1, 1]} : vector<8x9xf32> to vector<8x1xf32>
    %cst_102 = arith.constant 0.000000e+00 : f32
    %292 = vector.shape_cast %291 : vector<8x1xf32> to vector<8x1xf32>
    %293 = vector.broadcast %292 : vector<8x1xf32> to vector<8x8xf32>
    %294 = vector.broadcast %cst_102 : f32 to vector<8x8xf32>
    %295 = arith.select %20, %293, %294 : vector<8x8xi1>, vector<8x8xf32>
    %296 = arith.addf %290, %295 : vector<8x8xf32>
    %297 = vector.extract_strided_slice %260 {offsets = [0, 6], sizes = [8, 1], strides = [1, 1]} : vector<8x9xf32> to vector<8x1xf32>
    %cst_103 = arith.constant 0.000000e+00 : f32
    %298 = vector.shape_cast %297 : vector<8x1xf32> to vector<8x1xf32>
    %299 = vector.broadcast %298 : vector<8x1xf32> to vector<8x8xf32>
    %300 = vector.broadcast %cst_103 : f32 to vector<8x8xf32>
    %301 = arith.select %22, %299, %300 : vector<8x8xi1>, vector<8x8xf32>
    %302 = arith.addf %296, %301 : vector<8x8xf32>
    %303 = vector.extract_strided_slice %260 {offsets = [0, 7], sizes = [8, 1], strides = [1, 1]} : vector<8x9xf32> to vector<8x1xf32>
    %cst_104 = arith.constant 0.000000e+00 : f32
    %304 = vector.shape_cast %303 : vector<8x1xf32> to vector<8x1xf32>
    %305 = vector.broadcast %304 : vector<8x1xf32> to vector<8x8xf32>
    %306 = vector.broadcast %cst_104 : f32 to vector<8x8xf32>
    %307 = arith.select %24, %305, %306 : vector<8x8xi1>, vector<8x8xf32>
    %308 = arith.addf %302, %307 : vector<8x8xf32>
    %309 = vector.extract_strided_slice %260 {offsets = [0, 8], sizes = [8, 1], strides = [1, 1]} : vector<8x9xf32> to vector<8x1xf32>
    %cst_105 = arith.constant 0.000000e+00 : f32
    %310 = vector.shape_cast %309 : vector<8x1xf32> to vector<8x1xf32>
    %311 = vector.broadcast %310 : vector<8x1xf32> to vector<8x8xf32>
    %312 = vector.broadcast %cst_105 : f32 to vector<8x8xf32>
    %313 = arith.select %26, %311, %312 : vector<8x8xi1>, vector<8x8xf32>
    %314 = arith.addf %308, %313 : vector<8x8xf32>
    %cst_106 = arith.constant dense<0xFF800000> : vector<8xf32>
    %315 = vector.multi_reduction <maximumf>, %314, %cst_106 [1] : vector<8x8xf32> to vector<8xf32>
    %316 = vector.shape_cast %315 : vector<8xf32> to vector<8x1xf32>
    %317 = vector.broadcast %316 : vector<8x1xf32> to vector<8x8xf32>
    %318 = arith.subf %314, %317 : vector<8x8xf32>
    %319 = math.exp %318 : vector<8x8xf32>
    %cst_107 = arith.constant dense<0.000000e+00> : vector<8xf32>
    %320 = vector.multi_reduction <add>, %319, %cst_107 [1] : vector<8x8xf32> to vector<8xf32>
    %321 = vector.shape_cast %320 : vector<8xf32> to vector<8x1xf32>
    %322 = tpu.reciprocal %321 {approx = true} : vector<8x1xf32> -> vector<8x1xf32>
    %323 = vector.broadcast %322 : vector<8x1xf32> to vector<8x8xf32>
    %324 = arith.mulf %319, %323 : vector<8x8xf32>
    %cst_108 = arith.constant dense<0.000000e+00> : vector<8x8xf32>
    %325 = tpu.matmul %324, %258, %cst_108 {dimension_numbers = #tpu.dot_dimension_numbers<[1], [0], [0], [1], [0, 0, 1, 1], [], []>} : vector<8x8xf32>, vector<8x8xf32>, vector<8x8xf32> -> vector<8x8xf32>
    %cst_109 = arith.constant 0.000000e+00 : f32
    %326 = vector.broadcast %cst_109 : f32 to vector<8x8xf32>
    %327 = arith.select %10, %324, %326 : vector<8x8xi1>, vector<8x8xf32>
    %cst_110 = arith.constant dense<0.000000e+00> : vector<8xf32>
    %328 = vector.multi_reduction <add>, %327, %cst_110 [1] : vector<8x8xf32> to vector<8xf32>
    %329 = vector.shape_cast %328 : vector<8xf32> to vector<8x1xf32>
    %cst_111 = arith.constant 0.000000e+00 : f32
    %330 = vector.broadcast %cst_111 : f32 to vector<8x8xf32>
    %331 = arith.select %12, %324, %330 : vector<8x8xi1>, vector<8x8xf32>
    %cst_112 = arith.constant dense<0.000000e+00> : vector<8xf32>
    %332 = vector.multi_reduction <add>, %331, %cst_112 [1] : vector<8x8xf32> to vector<8xf32>
    %333 = vector.shape_cast %332 : vector<8xf32> to vector<8x1xf32>
    %cst_113 = arith.constant 0.000000e+00 : f32
    %334 = vector.broadcast %cst_113 : f32 to vector<8x8xf32>
    %335 = arith.select %14, %324, %334 : vector<8x8xi1>, vector<8x8xf32>
    %cst_114 = arith.constant dense<0.000000e+00> : vector<8xf32>
    %336 = vector.multi_reduction <add>, %335, %cst_114 [1] : vector<8x8xf32> to vector<8xf32>
    %337 = vector.shape_cast %336 : vector<8xf32> to vector<8x1xf32>
    %cst_115 = arith.constant 0.000000e+00 : f32
    %338 = vector.broadcast %cst_115 : f32 to vector<8x8xf32>
    %339 = arith.select %16, %324, %338 : vector<8x8xi1>, vector<8x8xf32>
    %cst_116 = arith.constant dense<0.000000e+00> : vector<8xf32>
    %340 = vector.multi_reduction <add>, %339, %cst_116 [1] : vector<8x8xf32> to vector<8xf32>
    %341 = vector.shape_cast %340 : vector<8xf32> to vector<8x1xf32>
    %cst_117 = arith.constant 0.000000e+00 : f32
    %342 = vector.broadcast %cst_117 : f32 to vector<8x8xf32>
    %343 = arith.select %18, %324, %342 : vector<8x8xi1>, vector<8x8xf32>
    %cst_118 = arith.constant dense<0.000000e+00> : vector<8xf32>
    %344 = vector.multi_reduction <add>, %343, %cst_118 [1] : vector<8x8xf32> to vector<8xf32>
    %345 = vector.shape_cast %344 : vector<8xf32> to vector<8x1xf32>
    %cst_119 = arith.constant 0.000000e+00 : f32
    %346 = vector.broadcast %cst_119 : f32 to vector<8x8xf32>
    %347 = arith.select %20, %324, %346 : vector<8x8xi1>, vector<8x8xf32>
    %cst_120 = arith.constant dense<0.000000e+00> : vector<8xf32>
    %348 = vector.multi_reduction <add>, %347, %cst_120 [1] : vector<8x8xf32> to vector<8xf32>
    %349 = vector.shape_cast %348 : vector<8xf32> to vector<8x1xf32>
    %cst_121 = arith.constant 0.000000e+00 : f32
    %350 = vector.broadcast %cst_121 : f32 to vector<8x8xf32>
    %351 = arith.select %22, %324, %350 : vector<8x8xi1>, vector<8x8xf32>
    %cst_122 = arith.constant dense<0.000000e+00> : vector<8xf32>
    %352 = vector.multi_reduction <add>, %351, %cst_122 [1] : vector<8x8xf32> to vector<8xf32>
    %353 = vector.shape_cast %352 : vector<8xf32> to vector<8x1xf32>
    %cst_123 = arith.constant 0.000000e+00 : f32
    %354 = vector.broadcast %cst_123 : f32 to vector<8x8xf32>
    %355 = arith.select %24, %324, %354 : vector<8x8xi1>, vector<8x8xf32>
    %cst_124 = arith.constant dense<0.000000e+00> : vector<8xf32>
    %356 = vector.multi_reduction <add>, %355, %cst_124 [1] : vector<8x8xf32> to vector<8xf32>
    %357 = vector.shape_cast %356 : vector<8xf32> to vector<8x1xf32>
    %cst_125 = arith.constant 0.000000e+00 : f32
    %358 = vector.broadcast %cst_125 : f32 to vector<8x8xf32>
    %359 = arith.select %26, %324, %358 : vector<8x8xi1>, vector<8x8xf32>
    %cst_126 = arith.constant dense<0.000000e+00> : vector<8xf32>
    %360 = vector.multi_reduction <add>, %359, %cst_126 [1] : vector<8x8xf32> to vector<8xf32>
    %361 = vector.shape_cast %360 : vector<8xf32> to vector<8x1xf32>
    %362 = tpu.concatenate %329, %333, %337, %341, %345, %349, %353, %357, %361 in 1 : vector<8x1xf32>, vector<8x1xf32>, vector<8x1xf32>, vector<8x1xf32>, vector<8x1xf32>, vector<8x1xf32>, vector<8x1xf32>, vector<8x1xf32>, vector<8x1xf32> -> vector<8x9xf32>
    %cst_127 = arith.constant dense<0.000000e+00> : vector<8x8xf32>
    %363 = tpu.matmul %362, %28, %cst_127 {dimension_numbers = #tpu.dot_dimension_numbers<[1], [0], [0], [1], [0, 0, 1, 1], [], []>} : vector<8x9xf32>, vector<9x8xf32>, vector<8x8xf32> -> vector<8x8xf32>
    %364 = arith.addf %325, %363 : vector<8x8xf32>
    %c0_128 = arith.constant 0 : index
    %c0_129 = arith.constant 0 : index
    %c24 = arith.constant 24 : index
    %365 = vector.load %arg1[%c0_128, %c0_129, %c24] : memref<1x8x32xf32, #tpu.memory_space<vmem>>, vector<1x8x8xf32>
    %366 = vector.shape_cast %365 : vector<1x8x8xf32> to vector<8x8xf32>
    %c0_130 = arith.constant 0 : index
    %c0_131 = arith.constant 0 : index
    %c24_132 = arith.constant 24 : index
    %367 = vector.load %arg2[%c0_130, %c0_131, %c24_132] : memref<1x8x32xf32, #tpu.memory_space<vmem>>, vector<1x8x8xf32>
    %368 = vector.shape_cast %367 : vector<1x8x8xf32> to vector<8x8xf32>
    %c0_133 = arith.constant 0 : index
    %c0_134 = arith.constant 0 : index
    %c24_135 = arith.constant 24 : index
    %369 = vector.load %arg3[%c0_133, %c0_134, %c24_135] : memref<1x8x32xf32, #tpu.memory_space<vmem>>, vector<1x8x8xf32>
    %370 = vector.shape_cast %369 : vector<1x8x8xf32> to vector<8x8xf32>
    %cst_136 = arith.constant dense<0.000000e+00> : vector<8x8xf32>
    %371 = tpu.matmul %366, %368, %cst_136 {dimension_numbers = #tpu.dot_dimension_numbers<[1], [1], [0], [0], [0, 0, 1, 0], [], []>} : vector<8x8xf32>, vector<8x8xf32>, vector<8x8xf32> -> vector<8x8xf32>
    %cst_137 = arith.constant dense<0.000000e+00> : vector<8x9xf32>
    %372 = tpu.matmul %366, %27, %cst_137 {dimension_numbers = #tpu.dot_dimension_numbers<[1], [1], [0], [0], [0, 0, 1, 0], [], []>} : vector<8x8xf32>, vector<9x8xf32>, vector<8x9xf32> -> vector<8x9xf32>
    %373 = vector.extract_strided_slice %372 {offsets = [0, 0], sizes = [8, 1], strides = [1, 1]} : vector<8x9xf32> to vector<8x1xf32>
    %cst_138 = arith.constant 0.000000e+00 : f32
    %374 = vector.shape_cast %373 : vector<8x1xf32> to vector<8x1xf32>
    %375 = vector.broadcast %374 : vector<8x1xf32> to vector<8x8xf32>
    %376 = vector.broadcast %cst_138 : f32 to vector<8x8xf32>
    %377 = arith.select %10, %375, %376 : vector<8x8xi1>, vector<8x8xf32>
    %378 = arith.addf %371, %377 : vector<8x8xf32>
    %379 = vector.extract_strided_slice %372 {offsets = [0, 1], sizes = [8, 1], strides = [1, 1]} : vector<8x9xf32> to vector<8x1xf32>
    %cst_139 = arith.constant 0.000000e+00 : f32
    %380 = vector.shape_cast %379 : vector<8x1xf32> to vector<8x1xf32>
    %381 = vector.broadcast %380 : vector<8x1xf32> to vector<8x8xf32>
    %382 = vector.broadcast %cst_139 : f32 to vector<8x8xf32>
    %383 = arith.select %12, %381, %382 : vector<8x8xi1>, vector<8x8xf32>
    %384 = arith.addf %378, %383 : vector<8x8xf32>
    %385 = vector.extract_strided_slice %372 {offsets = [0, 2], sizes = [8, 1], strides = [1, 1]} : vector<8x9xf32> to vector<8x1xf32>
    %cst_140 = arith.constant 0.000000e+00 : f32
    %386 = vector.shape_cast %385 : vector<8x1xf32> to vector<8x1xf32>
    %387 = vector.broadcast %386 : vector<8x1xf32> to vector<8x8xf32>
    %388 = vector.broadcast %cst_140 : f32 to vector<8x8xf32>
    %389 = arith.select %14, %387, %388 : vector<8x8xi1>, vector<8x8xf32>
    %390 = arith.addf %384, %389 : vector<8x8xf32>
    %391 = vector.extract_strided_slice %372 {offsets = [0, 3], sizes = [8, 1], strides = [1, 1]} : vector<8x9xf32> to vector<8x1xf32>
    %cst_141 = arith.constant 0.000000e+00 : f32
    %392 = vector.shape_cast %391 : vector<8x1xf32> to vector<8x1xf32>
    %393 = vector.broadcast %392 : vector<8x1xf32> to vector<8x8xf32>
    %394 = vector.broadcast %cst_141 : f32 to vector<8x8xf32>
    %395 = arith.select %16, %393, %394 : vector<8x8xi1>, vector<8x8xf32>
    %396 = arith.addf %390, %395 : vector<8x8xf32>
    %397 = vector.extract_strided_slice %372 {offsets = [0, 4], sizes = [8, 1], strides = [1, 1]} : vector<8x9xf32> to vector<8x1xf32>
    %cst_142 = arith.constant 0.000000e+00 : f32
    %398 = vector.shape_cast %397 : vector<8x1xf32> to vector<8x1xf32>
    %399 = vector.broadcast %398 : vector<8x1xf32> to vector<8x8xf32>
    %400 = vector.broadcast %cst_142 : f32 to vector<8x8xf32>
    %401 = arith.select %18, %399, %400 : vector<8x8xi1>, vector<8x8xf32>
    %402 = arith.addf %396, %401 : vector<8x8xf32>
    %403 = vector.extract_strided_slice %372 {offsets = [0, 5], sizes = [8, 1], strides = [1, 1]} : vector<8x9xf32> to vector<8x1xf32>
    %cst_143 = arith.constant 0.000000e+00 : f32
    %404 = vector.shape_cast %403 : vector<8x1xf32> to vector<8x1xf32>
    %405 = vector.broadcast %404 : vector<8x1xf32> to vector<8x8xf32>
    %406 = vector.broadcast %cst_143 : f32 to vector<8x8xf32>
    %407 = arith.select %20, %405, %406 : vector<8x8xi1>, vector<8x8xf32>
    %408 = arith.addf %402, %407 : vector<8x8xf32>
    %409 = vector.extract_strided_slice %372 {offsets = [0, 6], sizes = [8, 1], strides = [1, 1]} : vector<8x9xf32> to vector<8x1xf32>
    %cst_144 = arith.constant 0.000000e+00 : f32
    %410 = vector.shape_cast %409 : vector<8x1xf32> to vector<8x1xf32>
    %411 = vector.broadcast %410 : vector<8x1xf32> to vector<8x8xf32>
    %412 = vector.broadcast %cst_144 : f32 to vector<8x8xf32>
    %413 = arith.select %22, %411, %412 : vector<8x8xi1>, vector<8x8xf32>
    %414 = arith.addf %408, %413 : vector<8x8xf32>
    %415 = vector.extract_strided_slice %372 {offsets = [0, 7], sizes = [8, 1], strides = [1, 1]} : vector<8x9xf32> to vector<8x1xf32>
    %cst_145 = arith.constant 0.000000e+00 : f32
    %416 = vector.shape_cast %415 : vector<8x1xf32> to vector<8x1xf32>
    %417 = vector.broadcast %416 : vector<8x1xf32> to vector<8x8xf32>
    %418 = vector.broadcast %cst_145 : f32 to vector<8x8xf32>
    %419 = arith.select %24, %417, %418 : vector<8x8xi1>, vector<8x8xf32>
    %420 = arith.addf %414, %419 : vector<8x8xf32>
    %421 = vector.extract_strided_slice %372 {offsets = [0, 8], sizes = [8, 1], strides = [1, 1]} : vector<8x9xf32> to vector<8x1xf32>
    %cst_146 = arith.constant 0.000000e+00 : f32
    %422 = vector.shape_cast %421 : vector<8x1xf32> to vector<8x1xf32>
    %423 = vector.broadcast %422 : vector<8x1xf32> to vector<8x8xf32>
    %424 = vector.broadcast %cst_146 : f32 to vector<8x8xf32>
    %425 = arith.select %26, %423, %424 : vector<8x8xi1>, vector<8x8xf32>
    %426 = arith.addf %420, %425 : vector<8x8xf32>
    %cst_147 = arith.constant dense<0xFF800000> : vector<8xf32>
    %427 = vector.multi_reduction <maximumf>, %426, %cst_147 [1] : vector<8x8xf32> to vector<8xf32>
    %428 = vector.shape_cast %427 : vector<8xf32> to vector<8x1xf32>
    %429 = vector.broadcast %428 : vector<8x1xf32> to vector<8x8xf32>
    %430 = arith.subf %426, %429 : vector<8x8xf32>
    %431 = math.exp %430 : vector<8x8xf32>
    %cst_148 = arith.constant dense<0.000000e+00> : vector<8xf32>
    %432 = vector.multi_reduction <add>, %431, %cst_148 [1] : vector<8x8xf32> to vector<8xf32>
    %433 = vector.shape_cast %432 : vector<8xf32> to vector<8x1xf32>
    %434 = tpu.reciprocal %433 {approx = true} : vector<8x1xf32> -> vector<8x1xf32>
    %435 = vector.broadcast %434 : vector<8x1xf32> to vector<8x8xf32>
    %436 = arith.mulf %431, %435 : vector<8x8xf32>
    %cst_149 = arith.constant dense<0.000000e+00> : vector<8x8xf32>
    %437 = tpu.matmul %436, %370, %cst_149 {dimension_numbers = #tpu.dot_dimension_numbers<[1], [0], [0], [1], [0, 0, 1, 1], [], []>} : vector<8x8xf32>, vector<8x8xf32>, vector<8x8xf32> -> vector<8x8xf32>
    %cst_150 = arith.constant 0.000000e+00 : f32
    %438 = vector.broadcast %cst_150 : f32 to vector<8x8xf32>
    %439 = arith.select %10, %436, %438 : vector<8x8xi1>, vector<8x8xf32>
    %cst_151 = arith.constant dense<0.000000e+00> : vector<8xf32>
    %440 = vector.multi_reduction <add>, %439, %cst_151 [1] : vector<8x8xf32> to vector<8xf32>
    %441 = vector.shape_cast %440 : vector<8xf32> to vector<8x1xf32>
    %cst_152 = arith.constant 0.000000e+00 : f32
    %442 = vector.broadcast %cst_152 : f32 to vector<8x8xf32>
    %443 = arith.select %12, %436, %442 : vector<8x8xi1>, vector<8x8xf32>
    %cst_153 = arith.constant dense<0.000000e+00> : vector<8xf32>
    %444 = vector.multi_reduction <add>, %443, %cst_153 [1] : vector<8x8xf32> to vector<8xf32>
    %445 = vector.shape_cast %444 : vector<8xf32> to vector<8x1xf32>
    %cst_154 = arith.constant 0.000000e+00 : f32
    %446 = vector.broadcast %cst_154 : f32 to vector<8x8xf32>
    %447 = arith.select %14, %436, %446 : vector<8x8xi1>, vector<8x8xf32>
    %cst_155 = arith.constant dense<0.000000e+00> : vector<8xf32>
    %448 = vector.multi_reduction <add>, %447, %cst_155 [1] : vector<8x8xf32> to vector<8xf32>
    %449 = vector.shape_cast %448 : vector<8xf32> to vector<8x1xf32>
    %cst_156 = arith.constant 0.000000e+00 : f32
    %450 = vector.broadcast %cst_156 : f32 to vector<8x8xf32>
    %451 = arith.select %16, %436, %450 : vector<8x8xi1>, vector<8x8xf32>
    %cst_157 = arith.constant dense<0.000000e+00> : vector<8xf32>
    %452 = vector.multi_reduction <add>, %451, %cst_157 [1] : vector<8x8xf32> to vector<8xf32>
    %453 = vector.shape_cast %452 : vector<8xf32> to vector<8x1xf32>
    %cst_158 = arith.constant 0.000000e+00 : f32
    %454 = vector.broadcast %cst_158 : f32 to vector<8x8xf32>
    %455 = arith.select %18, %436, %454 : vector<8x8xi1>, vector<8x8xf32>
    %cst_159 = arith.constant dense<0.000000e+00> : vector<8xf32>
    %456 = vector.multi_reduction <add>, %455, %cst_159 [1] : vector<8x8xf32> to vector<8xf32>
    %457 = vector.shape_cast %456 : vector<8xf32> to vector<8x1xf32>
    %cst_160 = arith.constant 0.000000e+00 : f32
    %458 = vector.broadcast %cst_160 : f32 to vector<8x8xf32>
    %459 = arith.select %20, %436, %458 : vector<8x8xi1>, vector<8x8xf32>
    %cst_161 = arith.constant dense<0.000000e+00> : vector<8xf32>
    %460 = vector.multi_reduction <add>, %459, %cst_161 [1] : vector<8x8xf32> to vector<8xf32>
    %461 = vector.shape_cast %460 : vector<8xf32> to vector<8x1xf32>
    %cst_162 = arith.constant 0.000000e+00 : f32
    %462 = vector.broadcast %cst_162 : f32 to vector<8x8xf32>
    %463 = arith.select %22, %436, %462 : vector<8x8xi1>, vector<8x8xf32>
    %cst_163 = arith.constant dense<0.000000e+00> : vector<8xf32>
    %464 = vector.multi_reduction <add>, %463, %cst_163 [1] : vector<8x8xf32> to vector<8xf32>
    %465 = vector.shape_cast %464 : vector<8xf32> to vector<8x1xf32>
    %cst_164 = arith.constant 0.000000e+00 : f32
    %466 = vector.broadcast %cst_164 : f32 to vector<8x8xf32>
    %467 = arith.select %24, %436, %466 : vector<8x8xi1>, vector<8x8xf32>
    %cst_165 = arith.constant dense<0.000000e+00> : vector<8xf32>
    %468 = vector.multi_reduction <add>, %467, %cst_165 [1] : vector<8x8xf32> to vector<8xf32>
    %469 = vector.shape_cast %468 : vector<8xf32> to vector<8x1xf32>
    %cst_166 = arith.constant 0.000000e+00 : f32
    %470 = vector.broadcast %cst_166 : f32 to vector<8x8xf32>
    %471 = arith.select %26, %436, %470 : vector<8x8xi1>, vector<8x8xf32>
    %cst_167 = arith.constant dense<0.000000e+00> : vector<8xf32>
    %472 = vector.multi_reduction <add>, %471, %cst_167 [1] : vector<8x8xf32> to vector<8xf32>
    %473 = vector.shape_cast %472 : vector<8xf32> to vector<8x1xf32>
    %474 = tpu.concatenate %441, %445, %449, %453, %457, %461, %465, %469, %473 in 1 : vector<8x1xf32>, vector<8x1xf32>, vector<8x1xf32>, vector<8x1xf32>, vector<8x1xf32>, vector<8x1xf32>, vector<8x1xf32>, vector<8x1xf32>, vector<8x1xf32> -> vector<8x9xf32>
    %cst_168 = arith.constant dense<0.000000e+00> : vector<8x8xf32>
    %475 = tpu.matmul %474, %28, %cst_168 {dimension_numbers = #tpu.dot_dimension_numbers<[1], [0], [0], [1], [0, 0, 1, 1], [], []>} : vector<8x9xf32>, vector<9x8xf32>, vector<8x8xf32> -> vector<8x8xf32>
    %476 = arith.addf %437, %475 : vector<8x8xf32>
    %477 = tpu.concatenate %140, %252, %364, %476 in 1 : vector<8x8xf32>, vector<8x8xf32>, vector<8x8xf32>, vector<8x8xf32> -> vector<8x32xf32>
    %c0_169 = arith.constant 0 : index
    %c0_170 = arith.constant 0 : index
    %c0_171 = arith.constant 0 : index
    %478 = vector.load %arg6[%c0_169, %c0_170, %c0_171] : memref<1x8x32xf32, #tpu.memory_space<vmem>>, vector<1x8x32xf32>
    %479 = vector.shape_cast %478 : vector<1x8x32xf32> to vector<8x32xf32>
    %480 = vector.shape_cast %477 : vector<8x32xf32> to vector<1x8x32xf32>
    tpu.vector_store %arg6[%c0_169, %c0_170, %c0_171], %480 {strides = array<i32>} : memref<1x8x32xf32, #tpu.memory_space<vmem>>, vector<1x8x32xf32>,
    return
  }
  func.func @transform_0(%arg0: i32) -> (i32, i32, i32) {
    %c0_i32 = arith.constant 0 : i32
    %c0_i32_0 = arith.constant 0 : i32
    %c0_i32_1 = arith.constant 0 : i32
    return %arg0, %c0_i32, %c0_i32_0 : i32, i32, i32
  }
  func.func @transform_1(%arg0: i32) -> (i32, i32, i32) {
    %c0_i32 = arith.constant 0 : i32
    %c0_i32_0 = arith.constant 0 : i32
    %c0_i32_1 = arith.constant 0 : i32
    return %arg0, %c0_i32, %c0_i32_0 : i32, i32, i32
  }
  func.func @transform_2(%arg0: i32) -> (i32, i32, i32) {
    %c0_i32 = arith.constant 0 : i32
    %c0_i32_0 = arith.constant 0 : i32
    %c0_i32_1 = arith.constant 0 : i32
    return %arg0, %c0_i32, %c0_i32_0 : i32, i32, i32
  }
  func.func @transform_3(%arg0: i32) -> (i32, i32) {
    %c0_i32 = arith.constant 0 : i32
    %c0_i32_0 = arith.constant 0 : i32
    %c0_i32_1 = arith.constant 0 : i32
    return %c0_i32, %c0_i32_0 : i32, i32
  }
  func.func @transform_4(%arg0: i32) -> (i32, i32) {
    %c0_i32 = arith.constant 0 : i32
    %c0_i32_0 = arith.constant 0 : i32
    %c0_i32_1 = arith.constant 0 : i32
    return %c0_i32, %c0_i32_0 : i32, i32
  }
  func.func @transform_5(%arg0: i32) -> (i32, i32, i32) {
    %c0_i32 = arith.constant 0 : i32
    %c0_i32_0 = arith.constant 0 : i32
    %c0_i32_1 = arith.constant 0 : i32
    return %arg0, %c0_i32, %c0_i32_0 : i32, i32, i32
  }
}

</mosaic_0001>

<llo_original>
// kernel: multi_headed_attention_rpr.5
$region0: #{multi_headed_attention_rpr.5}
  #allocation0 [shape = 'u32[]', space=smem, size = 0x4, offset = 0x4, fixed_abs, tag = 'smem constant byte address 0x4 - core index']
  #allocation1 [shape = 'u32[144,128]{1,0:T(1,128)}', space=vmem, size = 0x12000, scoped, tag = 'internal scratch']
  %s0 = inlined_call_operand.vmem [shape: f32[1,16,32], index: 0, kind: input, shape index: {}]
  %s1 = inlined_call_operand.vmem [shape: f32[1,32,32], index: 1, kind: input, shape index: {}]
  %s2 = inlined_call_operand.vmem [shape: f32[1,1,32], index: 2, kind: input, shape index: {}]
  %s3 = inlined_call_operand.hbm [shape: f32[1,16,32], index: 3, kind: output, shape index: {}]
  %s4 = sld [smem:[#allocation0]]
  $region22: #{multi_headed_attention_rpr.5} parent=0
    _
  %s6 = ssub.s32 1, %s4
  %s7 = scalar_select 0, %s6, %s4
  $region1: #{multi_headed_attention_rpr.5} parent=0
    #allocation2 [shape = 'u8[8192]{0}', space=vmem, size = 0x2000, scoped, tag = 'output window, operand 0, single buffered']
    #allocation3 [shape = 's32[1]{0}', space=sflag, size = 0x4, scoped, tag = 'scoped memory for multi_headed_attention_rpr.5']
    %8 = vsyncpa [#allocation3], 0
    // Predicated region
    $region2: #{multi_headed_attention_rpr.5} parent=1 // pred_check
      _
    $region3: #{multi_headed_attention_rpr.5} parent=1 // pred_check_branch
      %10 = sbr.rel (0) target = $region5
    $region4: #{multi_headed_attention_rpr.5} parent=1 // pred_region
      _
    $region5: #{multi_headed_attention_rpr.5} parent=1 // pred_fallthru
      _
    // Predicated region
    $region6: #{multi_headed_attention_rpr.5} parent=1 // pred_check
      _
    $region7: #{multi_headed_attention_rpr.5} parent=1 // pred_check_branch
      %12 = sbr.rel (0) target = $region9
    $region8: #{multi_headed_attention_rpr.5} parent=1 // pred_region
      _
    $region9: #{multi_headed_attention_rpr.5} parent=1 // pred_fallthru
      _
    // Predicated region
    $region10: #{multi_headed_attention_rpr.5} parent=1 // pred_check
      _
    $region11: #{multi_headed_attention_rpr.5} parent=1 // pred_check_branch
      %14 = sbr.rel (0) target = $region13
    $region12: #{multi_headed_attention_rpr.5} parent=1 // pred_region
      _
    $region13: #{multi_headed_attention_rpr.5} parent=1 // pred_fallthru
      _
    %v15 = vld [vmem:[%s0] sm:$0xff]
    %v16 = vld [vmem:[%s0 + $0x8] sm:$0xff]
    %v17 = vld [vmem:[%s1] sm:$0xff]
    %v18 = vld [vmem:[%s1 + $0x8] sm:$0xff]
    %v19 = vld [vmem:[%s1 + $0x10] sm:$0xff]
    %v20 = vld [vmem:[%s1 + $0x18] sm:$0xff]
    %v21 = vld [vmem:[%s2] sm:$0x1]
    %v23 = vlaneseq
    %v24 = vshrl.u32 %v23, 7
    %v25 = vsub.s32 0, %v24
    %v26 = vrot.slane %v21, %v25
    %vm28 = vcmask 261120
    %v30 = vsel %vm28, %v15, 0
    %v33 = vsel %vm28, %v16, 0
    %35 = vmatprep.subr.mxu0 0.0
    %36 = vmatpush1.msra.mxu0 %v17
    %37 = vmatprep.subr.mxu0 0.0
    %38 = vmatpush1.msra.mxu0 %v18
    %39 = vmatprep.subr.mxu0 0.0
    %40 = vmatpush1.msra.mxu0 %v19
    %41 = vmatprep.subr.mxu0 0.0
    %42 = vmatpush1.msra.mxu0 %v20
    %43 = vmatprep.subr.mxu0 0.0
    %44 = vmatpush1.msra.mxu0 0.0
    %45 = vmatprep.subr.mxu0 0.0
    %46 = vmatpush1.msra.mxu0 0.0
    %47 = vmatprep.subr.mxu0 0.0
    %48 = vmatpush1.msra.mxu0 0.0
    %49 = vmatprep.subr.mxu0 0.0
    %50 = vmatpush1.msra.mxu0 0.0
    %51 = vmatprep.subr.mxu0 0.0
    %52 = vmatpush1.msra.mxu0 0.0
    %53 = vmatprep.subr.mxu0 0.0
    %54 = vmatpush1.msra.mxu0 0.0
    %55 = vmatprep.subr.mxu0 0.0
    %56 = vmatpush1.msra.mxu0 0.0
    %57 = vmatprep.subr.mxu0 0.0
    %58 = vmatpush1.msra.mxu0 0.0
    %59 = vmatprep.subr.mxu0 0.0
    %60 = vmatpush1.msra.mxu0 0.0
    %61 = vmatprep.subr.mxu0 0.0
    %62 = vmatpush1.msra.mxu0 0.0
    %63 = vmatprep.subr.mxu0 0.0
    %64 = vmatpush1.msra.mxu0 0.0
    %65 = vmatprep.subr.mxu0 0.0
    %66 = vmatpush1.msra.mxu0 0.0
    %67 = vmatprep.subr.mxu0 0.0
    %68 = vmatpush1.msra.mxu0 0.0
    %69 = vmatprep.subr.mxu0 0.0
    %70 = vmatpush1.msra.mxu0 0.0
    %71 = vmatprep.subr.mxu0 0.0
    %72 = vmatpush1.msra.mxu0 0.0
    %73 = vmatprep.subr.mxu0 0.0
    %74 = vmatpush1.msra.mxu0 0.0
    %75 = vmatprep.subr.mxu0 0.0
    %76 = vmatpush1.msra.mxu0 0.0
    %77 = vmatprep.subr.mxu0 0.0
    %78 = vmatpush1.msra.mxu0 0.0
    %79 = vmatprep.subr.mxu0 0.0
    %80 = vmatpush1.msra.mxu0 0.0
    %81 = vmatprep.subr.mxu0 0.0
    %82 = vmatpush1.msra.mxu0 0.0
    %83 = vmatprep.subr.mxu0 0.0
    %84 = vmatpush1.msra.mxu0 0.0
    %85 = vmatprep.subr.mxu0 0.0
    %86 = vmatpush1.msra.mxu0 0.0
    %87 = vmatprep.subr.mxu0 0.0
    %88 = vmatpush1.msra.mxu0 0.0
    %89 = vmatprep.subr.mxu0 0.0
    %90 = vmatpush1.msra.mxu0 0.0
    %91 = vmatprep.subr.mxu0 0.0
    %92 = vmatpush1.msra.mxu0 0.0
    %93 = vmatprep.subr.mxu0 0.0
    %94 = vmatpush1.msra.mxu0 0.0
    %95 = vmatprep.subr.mxu0 0.0
    %96 = vmatpush1.msra.mxu0 0.0
    %97 = vmatprep.subr.mxu0 0.0
    %98 = vmatpush1.msra.mxu0 0.0
    %99 = vmatprep.mubr.f32.mxu0 0.0
    %100 = vmatmul.mubr.f32.gmra.mrb[0].mxu0 %v30
    %v101 = vpop.f32.mrb[0].mxu0
    %v102 = vadd.f32 %v26, %v101
    %v103 = vpop.f32.mrb[0].mxu0
    %104 = vmatprep.mubr.f32.mxu0 0.0
    %105 = vmatmul.mubr.f32.gmra.mrb[0].mxu0 %v33
    %v106 = vpop.f32.mrb[0].mxu0
    %v107 = vadd.f32 %v26, %v106
    %v108 = vpop.f32.mrb[0].mxu0
    %109 = vdwg.mxu0
    %110 = vst.msk [vmem:[#allocation2] sm:$0xff] %vm28, %v102
    %111 = vst.msk [vmem:[#allocation2 + $0x8] sm:$0xff] %vm28, %v107
    // Predicated region
    $region14: #{multi_headed_attention_rpr.5} parent=1 // pred_check
      _
    $region15: #{multi_headed_attention_rpr.5} parent=1 // pred_check_branch
      %113 = sbr.rel (0) target = $region17
    $region16: #{multi_headed_attention_rpr.5} parent=1 // pred_region
      %s115 = ssub.s32 256, 256
      %116 = vsyncadd [#allocation3], %s115
      %s117 = sshll.u32 [#allocation2], 4
      %s118 = int_to_ptr.vmem [resolvable:$true] %s117
      %123 = dma.vmem_to_hbm [thread:$0]  %s118, 256, %s3, [#allocation3], 128, 128, 8
    $region17: #{multi_headed_attention_rpr.5} parent=1 // pred_fallthru
      _
    // Predicated region
    $region18: #{multi_headed_attention_rpr.5} parent=1 // pred_check
      _
    $region19: #{multi_headed_attention_rpr.5} parent=1 // pred_check_branch
      %125 = sbr.rel (0) target = $region21
    $region20: #{multi_headed_attention_rpr.5} parent=1 // pred_region
      %126 = dma.done [#allocation3], 256
    $region21: #{multi_headed_attention_rpr.5} parent=1 // pred_fallthru
      _
    %127 = vsyncpa [#allocation3], 1

// kernel: multi_headed_attention_rpr.3
$region0: #{multi_headed_attention_rpr.3}
  #allocation0 [shape = 'u32[]', space=smem, size = 0x4, offset = 0x4, fixed_abs, tag = 'smem constant byte address 0x4 - core index']
  #allocation1 [shape = 'u32[144,128]{1,0:T(1,128)}', space=vmem, size = 0x12000, scoped, tag = 'internal scratch']
  %s0 = inlined_call_operand.vmem [shape: f32[3,16,32], index: 0, kind: input, shape index: {}]
  %s1 = inlined_call_operand.vmem [shape: f32[3,32,32], index: 1, kind: input, shape index: {}]
  %s2 = inlined_call_operand.vmem [shape: f32[3,1,32], index: 2, kind: input, shape index: {}]
  %s3 = inlined_call_operand.vmem [shape: f32[3,16,32], index: 3, kind: output, shape index: {}]
  %s4 = sld [smem:[#allocation0]]
  $region45: #{multi_headed_attention_rpr.3} parent=0
    _
  %s6 = ssub.s32 1, %s4
  %s7 = scalar_select 0, %s6, %s4
  loop: start=0, step=1, limit=5
  $region2: #{multi_headed_attention_rpr.3} parent=0 // loop_pre_header
    _
  $region3: #{multi_headed_attention_rpr.3} parent=0 // loop_header
    %s9 = sphi 0, %s13
    %p10 = scmp.ge.s32.totalorder %s9, 5
    %s16 = sphi 0, %s35
    %s17 = sphi 0, %s31
    %s18 = sphi 0, %s27
    %s19 = sphi 0, %s16
    %s20 = sphi 0, %s17
    %s21 = sphi 0, %s18
    %s22 = sphi 0, %s19
    %s23 = sphi 0, %s20
    %s24 = sphi 0, %s21
    %s40 = sphi 0, %s42
    %s43 = sphi 0, %s40
    %s44 = sphi 0, %s43
    %s60 = sphi 0, %s44
    %s68 = sphi 0, %s70
    %s71 = sphi 0, %s68
    %s72 = sphi 0, %s71
    %s88 = sphi 0, %s72
    %s96 = sphi 0, %s98
    %s99 = sphi 0, %s96
    %s100 = sphi 0, %s99
    %s116 = sphi 0, %s100
    %s126 = sphi 0, %s128
    %s129 = sphi 0, %s126
    %s130 = sphi 0, %s129
    %s146 = sphi 0, %s130
  $region4: #{multi_headed_attention_rpr.3} parent=0 // loop_header_branch
    %12 = sbr.rel (%p10) target = $region8
  $region5: #{multi_headed_attention_rpr.3} parent=0 // loop_body
    %s14 = ssub.s32 %s9, 1
    %s15 = ssub.s32 %s9, 2
    %s25 = sadd.s32 1, %s18
    %p26 = scmp.ge.s32.totalorder %s25, 1
    %s27 = scalar_select %p26, 0, %s25
    %s28 = sadd.s32 1, %s17
    %s29 = scalar_select %p26, %s28, %s17
    %p30 = scmp.ge.s32.totalorder %s29, 1
    %s31 = scalar_select %p30, 0, %s29
    %s32 = sadd.s32 1, %s16
    %s33 = scalar_select %p30, %s32, %s16
    %p34 = scmp.ge.s32.totalorder %s33, 3
    %s35 = scalar_select %p34, 0, %s33
    %s36 = ssub.s32 %s16, %s35
    %s37 = ssub.s32 %s17, %s31
    %s38 = sor.u32 %s36, %s37
    %p39 = scmp.eq.s32.totalorder %s38, 0
    %s41 = sadd.s32 %s40, 1
    %s42 = scalar_select %p39, %s40, %s41
    %p45 = pneg %p39
    %p46 = scmp.eq.s32.totalorder %s9, 2
    %p47 = por %p45, %p46
    %p48 = scmp.ne.s32.totalorder %s40, %s43
    %p49 = scmp.eq.s32.totalorder %s9, 0
    %p50 = por %p48, %p49
    %p51 = scmp.ne.s32.totalorder %s40, %s43
    %p52 = scmp.eq.s32.totalorder %s14, 2
    %p53 = por %p51, %p52
    %p54 = scmp.ne.s32.totalorder %s43, %s44
    %p55 = scmp.eq.s32.totalorder %s14, 0
    %p56 = por %p54, %p55
    %p57 = scmp.ne.s32.totalorder %s43, %s44
    %p58 = scmp.eq.s32.totalorder %s15, 2
    %p59 = por %p57, %p58
    %p61 = scmp.ne.s32.totalorder %s44, %s60
    %p62 = scmp.eq.s32.totalorder %s15, 0
    %p63 = por %p61, %p62
    %s64 = ssub.s32 %s16, %s35
    %s65 = ssub.s32 %s18, %s27
    %s66 = sor.u32 %s64, %s65
    %p67 = scmp.eq.s32.totalorder %s66, 0
    %s69 = sadd.s32 %s68, 1
    %s70 = scalar_select %p67, %s68, %s69
    %p73 = pneg %p67
    %p74 = scmp.eq.s32.totalorder %s9, 2
    %p75 = por %p73, %p74
    %p76 = scmp.ne.s32.totalorder %s68, %s71
    %p77 = scmp.eq.s32.totalorder %s9, 0
    %p78 = por %p76, %p77
    %p79 = scmp.ne.s32.totalorder %s68, %s71
    %p80 = scmp.eq.s32.totalorder %s14, 2
    %p81 = por %p79, %p80
    %p82 = scmp.ne.s32.totalorder %s71, %s72
    %p83 = scmp.eq.s32.totalorder %s14, 0
    %p84 = por %p82, %p83
    %p85 = scmp.ne.s32.totalorder %s71, %s72
    %p86 = scmp.eq.s32.totalorder %s15, 2
    %p87 = por %p85, %p86
    %p89 = scmp.ne.s32.totalorder %s72, %s88
    %p90 = scmp.eq.s32.totalorder %s15, 0
    %p91 = por %p89, %p90
    %s92 = ssub.s32 %s16, %s35
    %s93 = ssub.s32 %s18, %s27
    %s94 = sor.u32 %s92, %s93
    %p95 = scmp.eq.s32.totalorder %s94, 0
    %s97 = sadd.s32 %s96, 1
    %s98 = scalar_select %p95, %s96, %s97
    %p101 = pneg %p95
    %p102 = scmp.eq.s32.totalorder %s9, 2
    %p103 = por %p101, %p102
    %p104 = scmp.ne.s32.totalorder %s96, %s99
    %p105 = scmp.eq.s32.totalorder %s9, 0
    %p106 = por %p104, %p105
    %p107 = scmp.ne.s32.totalorder %s96, %s99
    %p108 = scmp.eq.s32.totalorder %s14, 2
    %p109 = por %p107, %p108
    %p110 = scmp.ne.s32.totalorder %s99, %s100
    %p111 = scmp.eq.s32.totalorder %s14, 0
    %p112 = por %p110, %p111
    %p113 = scmp.ne.s32.totalorder %s99, %s100
    %p114 = scmp.eq.s32.totalorder %s15, 2
    %p115 = por %p113, %p114
    %p117 = scmp.ne.s32.totalorder %s100, %s116
    %p118 = scmp.eq.s32.totalorder %s15, 0
    %p119 = por %p117, %p118
    %s120 = ssub.s32 %s16, %s35
    %s121 = ssub.s32 %s17, %s31
    %s122 = sor.u32 %s120, %s121
    %s123 = ssub.s32 %s18, %s27
    %s124 = sor.u32 %s122, %s123
    %p125 = scmp.eq.s32.totalorder %s124, 0
    %s127 = sadd.s32 %s126, 1
    %s128 = scalar_select %p125, %s126, %s127
    %p131 = pneg %p125
    %p132 = scmp.eq.s32.totalorder %s9, 2
    %p133 = por %p131, %p132
    %p134 = scmp.ne.s32.totalorder %s126, %s129
    %p135 = scmp.eq.s32.totalorder %s9, 0
    %p136 = por %p134, %p135
    %p137 = scmp.ne.s32.totalorder %s126, %s129
    %p138 = scmp.eq.s32.totalorder %s14, 2
    %p139 = por %p137, %p138
    %p140 = scmp.ne.s32.totalorder %s129, %s130
    %p141 = scmp.eq.s32.totalorder %s14, 0
    %p142 = por %p140, %p141
    %p143 = scmp.ne.s32.totalorder %s129, %s130
    %p144 = scmp.eq.s32.totalorder %s15, 2
    %p145 = por %p143, %p144
    %p147 = scmp.ne.s32.totalorder %s130, %s146
    %p148 = scmp.eq.s32.totalorder %s15, 0
    %p149 = por %p147, %p148
    %p150 = scmp.le.s32.totalorder 1, %s9
    %p151 = scmp.lt.s32.totalorder %s9, 4
    %p152 = pnand %p150, %p151
    %p153 = pneg %p152
    // Predicated region
    $region9: #{multi_headed_attention_rpr.3} parent=5 // pred_check
      _
    $region10: #{multi_headed_attention_rpr.3} parent=5 // pred_check_branch
      %155 = sbr.rel (%p152) target = $region12
    $region11: #{multi_headed_attention_rpr.3} parent=5 // pred_region
      %s156 = ssub.s32 %s9, 1
    $region12: #{multi_headed_attention_rpr.3} parent=5 // pred_fallthru
      _
    %p157 = scmp.lt.s32.totalorder %s9, 3
    // Predicated region
    $region13: #{multi_headed_attention_rpr.3} parent=5 // pred_check
      %p158 = pneg %p157
    $region14: #{multi_headed_attention_rpr.3} parent=5 // pred_check_branch
      %160 = sbr.rel (%p158) target = $region16
    $region15: #{multi_headed_attention_rpr.3} parent=5 // pred_region
      // Predicated region
      $region17: #{multi_headed_attention_rpr.3} parent=15 // pred_check
        %p161 = pneg %p50
      $region18: #{multi_headed_attention_rpr.3} parent=15 // pred_check_branch
        %163 = sbr.rel (%p161) target = $region20
      $region19: #{multi_headed_attention_rpr.3} parent=15 // pred_region
        %s164 = smul.u32 2, %s17
        %p165 = scmp.lt.s32.totalorder %s16, 2
        %s166 = scalar_select %p165, %s16, 2
        %p167 = scmp.lt.s32.totalorder %s164, 1
        %s168 = scalar_select %p167, %s164, 1
        %s169 = smul.addr %s166, 2
        %s170 = sadd.s32 %s168, %s169
        %s171 = smul.addr %s170, 8
        %s172 = scalar_lea.vmem %s0, %s171
        %s173 = smul.u32 2, %s17
      $region20: #{multi_headed_attention_rpr.3} parent=15 // pred_fallthru
        _
      // Predicated region
      $region21: #{multi_headed_attention_rpr.3} parent=15 // pred_check
        %p174 = pneg %p78
      $region22: #{multi_headed_attention_rpr.3} parent=15 // pred_check_branch
        %176 = sbr.rel (%p174) target = $region24
      $region23: #{multi_headed_attention_rpr.3} parent=15 // pred_region
        %p177 = scmp.lt.s32.totalorder %s16, 2
        %s178 = scalar_select %p177, %s16, 2
        %p179 = scmp.lt.s32.totalorder %s18, 0
        %s180 = scalar_select %p179, %s18, 0
        %s181 = smul.addr %s178, 4
        %s182 = sadd.s32 %s180, %s181
        %s183 = smul.addr %s182, 8
        %s184 = scalar_lea.vmem %s1, %s183
      $region24: #{multi_headed_attention_rpr.3} parent=15 // pred_fallthru
        _
      // Predicated region
      $region25: #{multi_headed_attention_rpr.3} parent=15 // pred_check
        %p185 = pneg %p106
      $region26: #{multi_headed_attention_rpr.3} parent=15 // pred_check_branch
        %187 = sbr.rel (%p185) target = $region28
      $region27: #{multi_headed_attention_rpr.3} parent=15 // pred_region
        %p188 = scmp.lt.s32.totalorder %s16, 2
        %s189 = scalar_select %p188, %s16, 2
        %p190 = scmp.lt.s32.totalorder %s18, 0
        %s191 = scalar_select %p190, %s18, 0
        %s192 = sadd.s32 %s191, %s189
        %s193 = scalar_lea.vmem %s2, %s192
      $region28: #{multi_headed_attention_rpr.3} parent=15 // pred_fallthru
        _
    $region16: #{multi_headed_attention_rpr.3} parent=5 // pred_fallthru
      _
    %p194 = scmp.le.s32.totalorder 1, %s9
    %p195 = scmp.lt.s32.totalorder %s9, 4
    %p196 = pnand %p194, %p195
    %p197 = pneg %p196
    // Predicated region
    $region29: #{multi_headed_attention_rpr.3} parent=5 // pred_check
      _
    $region30: #{multi_headed_attention_rpr.3} parent=5 // pred_check_branch
      %199 = sbr.rel (%p196) target = $region32
    $region31: #{multi_headed_attention_rpr.3} parent=5 // pred_region
      %s200 = ssub.s32 %s9, 1
      %s201 = smul.u32 2, %s20
      %p202 = scmp.lt.s32.totalorder %s19, 2
      %s203 = scalar_select %p202, %s19, 2
      %p204 = scmp.lt.s32.totalorder %s201, 1
      %s205 = scalar_select %p204, %s201, 1
      %s206 = smul.addr %s203, 2
      %s207 = sadd.s32 %s205, %s206
      %s208 = smul.addr %s207, 8
      %s209 = scalar_lea.vmem %s0, %s208
      %p210 = pneg %p56
      %p211 = pneg %p53
      %p212 = scmp.lt.s32.totalorder %s19, 2
      %s213 = scalar_select %p212, %s19, 2
      %p214 = scmp.lt.s32.totalorder %s21, 0
      %s215 = scalar_select %p214, %s21, 0
      %s216 = smul.addr %s213, 4
      %s217 = sadd.s32 %s215, %s216
      %s218 = smul.addr %s217, 8
      %s219 = scalar_lea.vmem %s1, %s218
      %p220 = pneg %p84
      %p221 = pneg %p81
      %p222 = scmp.lt.s32.totalorder %s19, 2
      %s223 = scalar_select %p222, %s19, 2
      %p224 = scmp.lt.s32.totalorder %s21, 0
      %s225 = scalar_select %p224, %s21, 0
      %s226 = sadd.s32 %s225, %s223
      %s227 = scalar_lea.vmem %s2, %s226
      %p228 = pneg %p112
      %p229 = pneg %p109
      %p230 = pneg %p142
      %p231 = pneg %p139
      %s232 = smul.u32 2, %s20
      %p233 = scmp.lt.s32.totalorder %s19, 2
      %s234 = scalar_select %p233, %s19, 2
      %p235 = scmp.lt.s32.totalorder %s232, 1
      %s236 = scalar_select %p235, %s232, 1
      %p237 = scmp.lt.s32.totalorder %s21, 0
      %s238 = scalar_select %p237, %s21, 0
      %s239 = sadd.s32 %s238, %s236
      %s240 = smul.addr %s234, 2
      %s241 = sadd.s32 %s239, %s240
      %s242 = smul.addr %s241, 8
      %s243 = scalar_lea.vmem %s3, %s242
      %s244 = smul.u32 2, %s20
      %p245 = scmp.lt.s32.totalorder %s19, 2
      %s246 = scalar_select %p245, %s19, 2
      %p247 = scmp.lt.s32.totalorder %s244, 1
      %s248 = scalar_select %p247, %s244, 1
      %s249 = smul.addr %s246, 2
      %s250 = sadd.s32 %s248, %s249
      %s251 = smul.addr %s250, 8
      %s252 = scalar_lea.vmem %s0, %s251
      %s253 = smul.u32 2, %s20
      %p254 = scmp.lt.s32.totalorder %s19, 2
      %s255 = scalar_select %p254, %s19, 2
      %p256 = scmp.lt.s32.totalorder %s21, 0
      %s257 = scalar_select %p256, %s21, 0
      %s258 = smul.addr %s255, 4
      %s259 = sadd.s32 %s257, %s258
      %s260 = smul.addr %s259, 8
      %s261 = scalar_lea.vmem %s1, %s260
      %p262 = scmp.lt.s32.totalorder %s19, 2
      %s263 = scalar_select %p262, %s19, 2
      %p264 = scmp.lt.s32.totalorder %s21, 0
      %s265 = scalar_select %p264, %s21, 0
      %s266 = sadd.s32 %s265, %s263
      %s267 = scalar_lea.vmem %s2, %s266
      %s268 = smul.u32 2, %s20
      %p269 = scmp.lt.s32.totalorder %s19, 2
      %s270 = scalar_select %p269, %s19, 2
      %p271 = scmp.lt.s32.totalorder %s268, 1
      %s272 = scalar_select %p271, %s268, 1
      %p273 = scmp.lt.s32.totalorder %s21, 0
      %s274 = scalar_select %p273, %s21, 0
      %s275 = sadd.s32 %s274, %s272
      %s276 = smul.addr %s270, 2
      %s277 = sadd.s32 %s275, %s276
      %s278 = smul.addr %s277, 8
      %s279 = scalar_lea.vmem %s3, %s278
      %s280 = smul.u32 2, %s20
      %v281 = vld [vmem:[%s252] sm:$0xff]
      %v282 = vld [vmem:[%s252 + $0x8] sm:$0xff]
      %v283 = vld [vmem:[%s261] sm:$0xff]
      %v284 = vld [vmem:[%s261 + $0x8] sm:$0xff]
      %v285 = vld [vmem:[%s261 + $0x10] sm:$0xff]
      %v286 = vld [vmem:[%s261 + $0x18] sm:$0xff]
      %v287 = vld [vmem:[%s267] sm:$0x1]
      %v289 = vlaneseq
      %v290 = vshrl.u32 %v289, 7
      %v291 = vsub.s32 0, %v290
      %v292 = vrot.slane %v287, %v291
      %vm294 = vcmask 261120
      %v296 = vsel %vm294, %v281, 0
      %v299 = vsel %vm294, %v282, 0
      %301 = vmatprep.subr.mxu0 0.0
      %302 = vmatpush1.msra.mxu0 %v283
      %303 = vmatprep.subr.mxu0 0.0
      %304 = vmatpush1.msra.mxu0 %v284
      %305 = vmatprep.subr.mxu0 0.0
      %306 = vmatpush1.msra.mxu0 %v285
      %307 = vmatprep.subr.mxu0 0.0
      %308 = vmatpush1.msra.mxu0 %v286
      %309 = vmatprep.subr.mxu0 0.0
      %310 = vmatpush1.msra.mxu0 0.0
      %311 = vmatprep.subr.mxu0 0.0
      %312 = vmatpush1.msra.mxu0 0.0
      %313 = vmatprep.subr.mxu0 0.0
      %314 = vmatpush1.msra.mxu0 0.0
      %315 = vmatprep.subr.mxu0 0.0
      %316 = vmatpush1.msra.mxu0 0.0
      %317 = vmatprep.subr.mxu0 0.0
      %318 = vmatpush1.msra.mxu0 0.0
      %319 = vmatprep.subr.mxu0 0.0
      %320 = vmatpush1.msra.mxu0 0.0
      %321 = vmatprep.subr.mxu0 0.0
      %322 = vmatpush1.msra.mxu0 0.0
      %323 = vmatprep.subr.mxu0 0.0
      %324 = vmatpush1.msra.mxu0 0.0
      %325 = vmatprep.subr.mxu0 0.0
      %326 = vmatpush1.msra.mxu0 0.0
      %327 = vmatprep.subr.mxu0 0.0
      %328 = vmatpush1.msra.mxu0 0.0
      %329 = vmatprep.subr.mxu0 0.0
      %330 = vmatpush1.msra.mxu0 0.0
      %331 = vmatprep.subr.mxu0 0.0
      %332 = vmatpush1.msra.mxu0 0.0
      %333 = vmatprep.subr.mxu0 0.0
      %334 = vmatpush1.msra.mxu0 0.0
      %335 = vmatprep.subr.mxu0 0.0
      %336 = vmatpush1.msra.mxu0 0.0
      %337 = vmatprep.subr.mxu0 0.0
      %338 = vmatpush1.msra.mxu0 0.0
      %339 = vmatprep.subr.mxu0 0.0
      %340 = vmatpush1.msra.mxu0 0.0
      %341 = vmatprep.subr.mxu0 0.0
      %342 = vmatpush1.msra.mxu0 0.0
      %343 = vmatprep.subr.mxu0 0.0
      %344 = vmatpush1.msra.mxu0 0.0
      %345 = vmatprep.subr.mxu0 0.0
      %346 = vmatpush1.msra.mxu0 0.0
      %347 = vmatprep.subr.mxu0 0.0
      %348 = vmatpush1.msra.mxu0 0.0
      %349 = vmatprep.subr.mxu0 0.0
      %350 = vmatpush1.msra.mxu0 0.0
      %351 = vmatprep.subr.mxu0 0.0
      %352 = vmatpush1.msra.mxu0 0.0
      %353 = vmatprep.subr.mxu0 0.0
      %354 = vmatpush1.msra.mxu0 0.0
      %355 = vmatprep.subr.mxu0 0.0
      %356 = vmatpush1.msra.mxu0 0.0
      %357 = vmatprep.subr.mxu0 0.0
      %358 = vmatpush1.msra.mxu0 0.0
      %359 = vmatprep.subr.mxu0 0.0
      %360 = vmatpush1.msra.mxu0 0.0
      %361 = vmatprep.subr.mxu0 0.0
      %362 = vmatpush1.msra.mxu0 0.0
      %363 = vmatprep.subr.mxu0 0.0
      %364 = vmatpush1.msra.mxu0 0.0
      %365 = vmatprep.mubr.f32.mxu0 0.0
      %366 = vmatmul.mubr.f32.gmra.mrb[0].mxu0 %v296
      %v367 = vpop.f32.mrb[0].mxu0
      %v368 = vadd.f32 %v292, %v367
      %v369 = vpop.f32.mrb[0].mxu0
      %370 = vmatprep.mubr.f32.mxu0 0.0
      %371 = vmatmul.mubr.f32.gmra.mrb[0].mxu0 %v299
      %v372 = vpop.f32.mrb[0].mxu0
      %v373 = vadd.f32 %v292, %v372
      %v374 = vpop.f32.mrb[0].mxu0
      %375 = vdwg.mxu0
      %376 = vst.msk [vmem:[%s279] sm:$0xff] %vm294, %v368
      %377 = vst.msk [vmem:[%s279 + $0x8] sm:$0xff] %vm294, %v373
      %s378 = smul.u32 2, %s20
      %p379 = scmp.lt.s32.totalorder %s19, 2
      %s380 = scalar_select %p379, %s19, 2
      %p381 = scmp.lt.s32.totalorder %s378, 1
      %s382 = scalar_select %p381, %s378, 1
      %p383 = scmp.lt.s32.totalorder %s21, 0
      %s384 = scalar_select %p383, %s21, 0
      %s385 = sadd.s32 %s384, %s382
      %s386 = smul.addr %s380, 2
      %s387 = sadd.s32 %s385, %s386
      %s388 = smul.addr %s387, 8
      %s389 = scalar_lea.vmem %s3, %s388
      // Predicated region
      $region33: #{multi_headed_attention_rpr.3} parent=31 // pred_check
        %p390 = pneg %p139
      $region34: #{multi_headed_attention_rpr.3} parent=31 // pred_check_branch
        %392 = sbr.rel (%p390) target = $region36
      $region35: #{multi_headed_attention_rpr.3} parent=31 // pred_region
        %s393 = smul.u32 2, %s20
      $region36: #{multi_headed_attention_rpr.3} parent=31 // pred_fallthru
        _
    $region32: #{multi_headed_attention_rpr.3} parent=5 // pred_fallthru
      _
    %p394 = scmp.le.s32.totalorder 2, %s9
    // Predicated region
    $region37: #{multi_headed_attention_rpr.3} parent=5 // pred_check
      %p395 = pneg %p394
    $region38: #{multi_headed_attention_rpr.3} parent=5 // pred_check_branch
      %397 = sbr.rel (%p395) target = $region40
    $region39: #{multi_headed_attention_rpr.3} parent=5 // pred_region
      %s398 = ssub.s32 %s9, 2
      // Predicated region
      $region41: #{multi_headed_attention_rpr.3} parent=39 // pred_check
        %p399 = pneg %p145
      $region42: #{multi_headed_attention_rpr.3} parent=39 // pred_check_branch
        %401 = sbr.rel (%p399) target = $region44
      $region43: #{multi_headed_attention_rpr.3} parent=39 // pred_region
        %s402 = smul.u32 2, %s23
        %p403 = scmp.lt.s32.totalorder %s22, 2
        %s404 = scalar_select %p403, %s22, 2
        %p405 = scmp.lt.s32.totalorder %s402, 1
        %s406 = scalar_select %p405, %s402, 1
        %p407 = scmp.lt.s32.totalorder %s24, 0
        %s408 = scalar_select %p407, %s24, 0
        %s409 = sadd.s32 %s408, %s406
        %s410 = smul.addr %s404, 2
        %s411 = sadd.s32 %s409, %s410
        %s412 = smul.addr %s411, 8
        %s413 = scalar_lea.vmem %s3, %s412
      $region44: #{multi_headed_attention_rpr.3} parent=39 // pred_fallthru
        _
    $region40: #{multi_headed_attention_rpr.3} parent=5 // pred_fallthru
      _
  $region6: #{multi_headed_attention_rpr.3} parent=0 // loop_footer
    %s13 = sadd.s32 1, %s9
  $region7: #{multi_headed_attention_rpr.3} parent=0 // loop_footer_branch
    %8 = sbr.rel target = $region3
  $region8: #{multi_headed_attention_rpr.3} parent=0 // loop_exit
    _

// kernel: multi_headed_attention_rpr.4
$region0: #{multi_headed_attention_rpr.4}
  #allocation0 [shape = 'u32[]', space=smem, size = 0x4, offset = 0x4, fixed_abs, tag = 'smem constant byte address 0x4 - core index']
  #allocation1 [shape = 'u32[144,128]{1,0:T(1,128)}', space=vmem, size = 0x12000, scoped, tag = 'internal scratch']
  %s0 = inlined_call_operand.vmem [shape: f32[2,8,32], index: 0, kind: input, shape index: {}]
  %s1 = inlined_call_operand.vmem [shape: f32[2,8,32], index: 1, kind: input, shape index: {}]
  %s2 = inlined_call_operand.vmem [shape: f32[2,8,32], index: 2, kind: input, shape index: {}]
  %s3 = inlined_call_operand.vmem [shape: f32[9,8], index: 3, kind: input, shape index: {}]
  %s4 = inlined_call_operand.vmem [shape: f32[9,8], index: 4, kind: input, shape index: {}]
  %s5 = inlined_call_operand.vmem [shape: f32[2,8,32], index: 5, kind: output, shape index: {}]
  %s6 = sld [smem:[#allocation0]]
  $region53: #{multi_headed_attention_rpr.4} parent=0
    _
  %s8 = ssub.s32 1, %s6
  %s9 = scalar_select 0, %s8, %s6
  loop: start=0, step=1, limit=4
  $region2: #{multi_headed_attention_rpr.4} parent=0 // loop_pre_header
    _
  $region3: #{multi_headed_attention_rpr.4} parent=0 // loop_header
    %s11 = sphi 0, %s15
    %p12 = scmp.ge.s32.totalorder %s11, 4
    %s21 = sphi 0, %s23
    %s24 = sphi 0, %s21
    %s25 = sphi 0, %s24
    %s41 = sphi 0, %s25
    %s47 = sphi 0, %s49
    %s50 = sphi 0, %s47
    %s51 = sphi 0, %s50
    %s67 = sphi 0, %s51
    %s73 = sphi 0, %s75
    %s76 = sphi 0, %s73
    %s77 = sphi 0, %s76
    %s93 = sphi 0, %s77
    %s97 = sphi 0, %s97
    %s99 = sphi 0, %s97
    %s100 = sphi 0, %s99
    %s114 = sphi 0, %s100
    %s118 = sphi 0, %s118
    %s120 = sphi 0, %s118
    %s121 = sphi 0, %s120
    %s135 = sphi 0, %s121
    %s141 = sphi 0, %s143
    %s144 = sphi 0, %s141
    %s145 = sphi 0, %s144
    %s161 = sphi 0, %s145
  $region4: #{multi_headed_attention_rpr.4} parent=0 // loop_header_branch
    %14 = sbr.rel (%p12) target = $region8
  $region5: #{multi_headed_attention_rpr.4} parent=0 // loop_body
    %s16 = ssub.s32 %s11, 1
    %s17 = ssub.s32 %s11, 2
    %s18 = sadd.s32 %s11, 1
    %s19 = ssub.s32 %s11, %s18
    %p20 = scmp.eq.s32.totalorder %s19, 0
    %s22 = sadd.s32 %s21, 1
    %s23 = scalar_select %p20, %s21, %s22
    %p26 = pneg %p20
    %p27 = scmp.eq.s32.totalorder %s11, 1
    %p28 = por %p26, %p27
    %p29 = scmp.ne.s32.totalorder %s21, %s24
    %p30 = scmp.eq.s32.totalorder %s11, 0
    %p31 = por %p29, %p30
    %p32 = scmp.ne.s32.totalorder %s21, %s24
    %p33 = scmp.eq.s32.totalorder %s16, 1
    %p34 = por %p32, %p33
    %p35 = scmp.ne.s32.totalorder %s24, %s25
    %p36 = scmp.eq.s32.totalorder %s16, 0
    %p37 = por %p35, %p36
    %p38 = scmp.ne.s32.totalorder %s24, %s25
    %p39 = scmp.eq.s32.totalorder %s17, 1
    %p40 = por %p38, %p39
    %p42 = scmp.ne.s32.totalorder %s25, %s41
    %p43 = scmp.eq.s32.totalorder %s17, 0
    %p44 = por %p42, %p43
    %s45 = ssub.s32 %s11, %s18
    %p46 = scmp.eq.s32.totalorder %s45, 0
    %s48 = sadd.s32 %s47, 1
    %s49 = scalar_select %p46, %s47, %s48
    %p52 = pneg %p46
    %p53 = scmp.eq.s32.totalorder %s11, 1
    %p54 = por %p52, %p53
    %p55 = scmp.ne.s32.totalorder %s47, %s50
    %p56 = scmp.eq.s32.totalorder %s11, 0
    %p57 = por %p55, %p56
    %p58 = scmp.ne.s32.totalorder %s47, %s50
    %p59 = scmp.eq.s32.totalorder %s16, 1
    %p60 = por %p58, %p59
    %p61 = scmp.ne.s32.totalorder %s50, %s51
    %p62 = scmp.eq.s32.totalorder %s16, 0
    %p63 = por %p61, %p62
    %p64 = scmp.ne.s32.totalorder %s50, %s51
    %p65 = scmp.eq.s32.totalorder %s17, 1
    %p66 = por %p64, %p65
    %p68 = scmp.ne.s32.totalorder %s51, %s67
    %p69 = scmp.eq.s32.totalorder %s17, 0
    %p70 = por %p68, %p69
    %s71 = ssub.s32 %s11, %s18
    %p72 = scmp.eq.s32.totalorder %s71, 0
    %s74 = sadd.s32 %s73, 1
    %s75 = scalar_select %p72, %s73, %s74
    %p78 = pneg %p72
    %p79 = scmp.eq.s32.totalorder %s11, 1
    %p80 = por %p78, %p79
    %p81 = scmp.ne.s32.totalorder %s73, %s76
    %p82 = scmp.eq.s32.totalorder %s11, 0
    %p83 = por %p81, %p82
    %p84 = scmp.ne.s32.totalorder %s73, %s76
    %p85 = scmp.eq.s32.totalorder %s16, 1
    %p86 = por %p84, %p85
    %p87 = scmp.ne.s32.totalorder %s76, %s77
    %p88 = scmp.eq.s32.totalorder %s16, 0
    %p89 = por %p87, %p88
    %p90 = scmp.ne.s32.totalorder %s76, %s77
    %p91 = scmp.eq.s32.totalorder %s17, 1
    %p92 = por %p90, %p91
    %p94 = scmp.ne.s32.totalorder %s77, %s93
    %p95 = scmp.eq.s32.totalorder %s17, 0
    %p96 = por %p94, %p95
    %s98 = sadd.s32 %s97, 1
    %p101 = scmp.eq.s32.totalorder %s11, 1
    %p102 = scmp.ne.s32.totalorder %s97, %s99
    %p103 = scmp.eq.s32.totalorder %s11, 0
    %p104 = por %p102, %p103
    %p105 = scmp.ne.s32.totalorder %s97, %s99
    %p106 = scmp.eq.s32.totalorder %s16, 1
    %p107 = por %p105, %p106
    %p108 = scmp.ne.s32.totalorder %s99, %s100
    %p109 = scmp.eq.s32.totalorder %s16, 0
    %p110 = por %p108, %p109
    %p111 = scmp.ne.s32.totalorder %s99, %s100
    %p112 = scmp.eq.s32.totalorder %s17, 1
    %p113 = por %p111, %p112
    %p115 = scmp.ne.s32.totalorder %s100, %s114
    %p116 = scmp.eq.s32.totalorder %s17, 0
    %p117 = por %p115, %p116
    %s119 = sadd.s32 %s118, 1
    %p122 = scmp.eq.s32.totalorder %s11, 1
    %p123 = scmp.ne.s32.totalorder %s118, %s120
    %p124 = scmp.eq.s32.totalorder %s11, 0
    %p125 = por %p123, %p124
    %p126 = scmp.ne.s32.totalorder %s118, %s120
    %p127 = scmp.eq.s32.totalorder %s16, 1
    %p128 = por %p126, %p127
    %p129 = scmp.ne.s32.totalorder %s120, %s121
    %p130 = scmp.eq.s32.totalorder %s16, 0
    %p131 = por %p129, %p130
    %p132 = scmp.ne.s32.totalorder %s120, %s121
    %p133 = scmp.eq.s32.totalorder %s17, 1
    %p134 = por %p132, %p133
    %p136 = scmp.ne.s32.totalorder %s121, %s135
    %p137 = scmp.eq.s32.totalorder %s17, 0
    %p138 = por %p136, %p137
    %s139 = ssub.s32 %s11, %s18
    %p140 = scmp.eq.s32.totalorder %s139, 0
    %s142 = sadd.s32 %s141, 1
    %s143 = scalar_select %p140, %s141, %s142
    %p146 = pneg %p140
    %p147 = scmp.eq.s32.totalorder %s11, 1
    %p148 = por %p146, %p147
    %p149 = scmp.ne.s32.totalorder %s141, %s144
    %p150 = scmp.eq.s32.totalorder %s11, 0
    %p151 = por %p149, %p150
    %p152 = scmp.ne.s32.totalorder %s141, %s144
    %p153 = scmp.eq.s32.totalorder %s16, 1
    %p154 = por %p152, %p153
    %p155 = scmp.ne.s32.totalorder %s144, %s145
    %p156 = scmp.eq.s32.totalorder %s16, 0
    %p157 = por %p155, %p156
    %p158 = scmp.ne.s32.totalorder %s144, %s145
    %p159 = scmp.eq.s32.totalorder %s17, 1
    %p160 = por %p158, %p159
    %p162 = scmp.ne.s32.totalorder %s145, %s161
    %p163 = scmp.eq.s32.totalorder %s17, 0
    %p164 = por %p162, %p163
    %p165 = scmp.le.s32.totalorder 1, %s11
    %p166 = scmp.lt.s32.totalorder %s11, 3
    %p167 = pnand %p165, %p166
    %p168 = pneg %p167
    // Predicated region
    $region9: #{multi_headed_attention_rpr.4} parent=5 // pred_check
      _
    $region10: #{multi_headed_attention_rpr.4} parent=5 // pred_check_branch
      %170 = sbr.rel (%p167) target = $region12
    $region11: #{multi_headed_attention_rpr.4} parent=5 // pred_region
      %s171 = ssub.s32 %s11, 1
      // Predicated region
      $region13: #{multi_headed_attention_rpr.4} parent=11 // pred_check
        %p172 = pneg %p110
      $region14: #{multi_headed_attention_rpr.4} parent=11 // pred_check_branch
        %174 = sbr.rel (%p172) target = $region16
      $region15: #{multi_headed_attention_rpr.4} parent=11 // pred_region
        _
      $region16: #{multi_headed_attention_rpr.4} parent=11 // pred_fallthru
        _
      // Predicated region
      $region17: #{multi_headed_attention_rpr.4} parent=11 // pred_check
        %p175 = pneg %p131
      $region18: #{multi_headed_attention_rpr.4} parent=11 // pred_check_branch
        %177 = sbr.rel (%p175) target = $region20
      $region19: #{multi_headed_attention_rpr.4} parent=11 // pred_region
        _
      $region20: #{multi_headed_attention_rpr.4} parent=11 // pred_fallthru
        _
    $region12: #{multi_headed_attention_rpr.4} parent=5 // pred_fallthru
      _
    %p178 = scmp.lt.s32.totalorder %s11, 2
    // Predicated region
    $region21: #{multi_headed_attention_rpr.4} parent=5 // pred_check
      %p179 = pneg %p178
    $region22: #{multi_headed_attention_rpr.4} parent=5 // pred_check_branch
      %181 = sbr.rel (%p179) target = $region24
    $region23: #{multi_headed_attention_rpr.4} parent=5 // pred_region
      // Predicated region
      $region25: #{multi_headed_attention_rpr.4} parent=23 // pred_check
        %p182 = pneg %p31
      $region26: #{multi_headed_attention_rpr.4} parent=23 // pred_check_branch
        %184 = sbr.rel (%p182) target = $region28
      $region27: #{multi_headed_attention_rpr.4} parent=23 // pred_region
        %p185 = scmp.lt.s32.totalorder %s11, 1
        %s186 = scalar_select %p185, %s11, 1
        %s187 = smul.addr %s186, 8
        %s188 = scalar_lea.vmem %s0, %s187
      $region28: #{multi_headed_attention_rpr.4} parent=23 // pred_fallthru
        _
      // Predicated region
      $region29: #{multi_headed_attention_rpr.4} parent=23 // pred_check
        %p189 = pneg %p57
      $region30: #{multi_headed_attention_rpr.4} parent=23 // pred_check_branch
        %191 = sbr.rel (%p189) target = $region32
      $region31: #{multi_headed_attention_rpr.4} parent=23 // pred_region
        %p192 = scmp.lt.s32.totalorder %s11, 1
        %s193 = scalar_select %p192, %s11, 1
        %s194 = smul.addr %s193, 8
        %s195 = scalar_lea.vmem %s1, %s194
      $region32: #{multi_headed_attention_rpr.4} parent=23 // pred_fallthru
        _
      // Predicated region
      $region33: #{multi_headed_attention_rpr.4} parent=23 // pred_check
        %p196 = pneg %p83
      $region34: #{multi_headed_attention_rpr.4} parent=23 // pred_check_branch
        %198 = sbr.rel (%p196) target = $region36
      $region35: #{multi_headed_attention_rpr.4} parent=23 // pred_region
        %p199 = scmp.lt.s32.totalorder %s11, 1
        %s200 = scalar_select %p199, %s11, 1
        %s201 = smul.addr %s200, 8
        %s202 = scalar_lea.vmem %s2, %s201
      $region36: #{multi_headed_attention_rpr.4} parent=23 // pred_fallthru
        _
    $region24: #{multi_headed_attention_rpr.4} parent=5 // pred_fallthru
      _
    %p203 = scmp.le.s32.totalorder 1, %s11
    %p204 = scmp.lt.s32.totalorder %s11, 3
    %p205 = pnand %p203, %p204
    %p206 = pneg %p205
    // Predicated region
    $region37: #{multi_headed_attention_rpr.4} parent=5 // pred_check
      _
    $region38: #{multi_headed_attention_rpr.4} parent=5 // pred_check_branch
      %208 = sbr.rel (%p205) target = $region40
    $region39: #{multi_headed_attention_rpr.4} parent=5 // pred_region
      %s209 = ssub.s32 %s11, 1
      %p210 = scmp.lt.s32.totalorder %s16, 1
      %s211 = scalar_select %p210, %s16, 1
      %s212 = smul.addr %s211, 8
      %s213 = scalar_lea.vmem %s0, %s212
      %p214 = pneg %p37
      %p215 = pneg %p34
      %p216 = scmp.lt.s32.totalorder %s16, 1
      %s217 = scalar_select %p216, %s16, 1
      %s218 = smul.addr %s217, 8
      %s219 = scalar_lea.vmem %s1, %s218
      %p220 = pneg %p63
      %p221 = pneg %p60
      %p222 = scmp.lt.s32.totalorder %s16, 1
      %s223 = scalar_select %p222, %s16, 1
      %s224 = smul.addr %s223, 8
      %s225 = scalar_lea.vmem %s2, %s224
      %p226 = pneg %p89
      %p227 = pneg %p86
      %p228 = pneg %p110
      %p229 = pneg %p107
      %p230 = pneg %p131
      %p231 = pneg %p128
      %p232 = pneg %p157
      %p233 = pneg %p154
      %p234 = scmp.lt.s32.totalorder %s16, 1
      %s235 = scalar_select %p234, %s16, 1
      %s236 = smul.addr %s235, 8
      %s237 = scalar_lea.vmem %s5, %s236
      %p238 = scmp.lt.s32.totalorder %s16, 1
      %s239 = scalar_select %p238, %s16, 1
      %s240 = smul.addr %s239, 8
      %s241 = scalar_lea.vmem %s0, %s240
      %p242 = scmp.lt.s32.totalorder %s16, 1
      %s243 = scalar_select %p242, %s16, 1
      %s244 = smul.addr %s243, 8
      %s245 = scalar_lea.vmem %s1, %s244
      %p246 = scmp.lt.s32.totalorder %s16, 1
      %s247 = scalar_select %p246, %s16, 1
      %s248 = smul.addr %s247, 8
      %s249 = scalar_lea.vmem %s2, %s248
      %p250 = scmp.lt.s32.totalorder %s16, 1
      %s251 = scalar_select %p250, %s16, 1
      %s252 = smul.addr %s251, 8
      %s253 = scalar_lea.vmem %s5, %s252
      %v254 = vlaneseq
      %v255 = vshrl.u32 %v254, 7
      %v256 = vlaneseq
      %v257 = vand.u32 %v256, 127
      %v258 = vsub.s32 %v257, %v255
      %vm259 = vcmp.gt.s32.totalorder %v258, 4294967292
      %v260 = vsel %vm259, %v258, 4294967292
      %vm261 = vcmp.lt.s32.totalorder %v260, 4
      %v262 = vsel %vm261, %v260, 4
      %v263 = vadd.s32 %v262, 4
      %vm264 = vcmp.eq.s32.totalorder %v263, 0
      %vm265 = vcmp.eq.s32.totalorder %v263, 1
      %vm266 = vcmp.eq.s32.totalorder %v263, 2
      %vm267 = vcmp.eq.s32.totalorder %v263, 3
      %vm268 = vcmp.eq.s32.totalorder %v263, 4
      %vm269 = vcmp.eq.s32.totalorder %v263, 5
      %vm270 = vcmp.eq.s32.totalorder %v263, 6
      %vm271 = vcmp.eq.s32.totalorder %v263, 7
      %vm272 = vcmp.eq.s32.totalorder %v263, 8
      %v273 = vld [vmem:[%s3] sm:$0xff]
      %v274 = vld [vmem:[%s3 + $0x8] sm:$0x1]
      %v275 = vld [vmem:[%s4] sm:$0xff]
      %v276 = vld [vmem:[%s4 + $0x8] sm:$0x1]
      %v277 = vld [vmem:[%s241] sm:$0xff]
      %v278 = vld [vmem:[%s245] sm:$0xff]
      %v279 = vld [vmem:[%s249] sm:$0xff]
      %vm280 = vcmask 64512
      %v282 = vsel %vm280, %v277, 0
      %v285 = vsel %vm280, %v273, 0
      %v288 = vsel %vm280, %v274, 0
      %290 = vmatprep.subr.mxu0 0.0
      %291 = vmatpush1.xpose.msra.mxu0 %v285
      %292 = vmatprep.subr.mxu0 0.0
      %293 = vmatpush1.xpose.msra.mxu0 %v288
      %294 = vmatprep.subr.mxu0 0.0
      %295 = vmatpush1.xpose.msra.mxu0 0.0
      %296 = vmatprep.subr.mxu0 0.0
      %297 = vmatpush1.xpose.msra.mxu0 0.0
      %298 = vmatprep.subr.mxu0 0.0
      %299 = vmatpush1.xpose.msra.mxu0 0.0
      %300 = vmatprep.subr.mxu0 0.0
      %301 = vmatpush1.xpose.msra.mxu0 0.0
      %302 = vmatprep.subr.mxu0 0.0
      %303 = vmatpush1.xpose.msra.mxu0 0.0
      %304 = vmatprep.subr.mxu0 0.0
      %305 = vmatpush1.xpose.msra.mxu0 0.0
      %306 = vmatprep.subr.mxu0 0.0
      %307 = vmatpush1.xpose.msra.mxu0 0.0
      %308 = vmatprep.subr.mxu0 0.0
      %309 = vmatpush1.xpose.msra.mxu0 0.0
      %310 = vmatprep.subr.mxu0 0.0
      %311 = vmatpush1.xpose.msra.mxu0 0.0
      %312 = vmatprep.subr.mxu0 0.0
      %313 = vmatpush1.xpose.msra.mxu0 0.0
      %314 = vmatprep.subr.mxu0 0.0
      %315 = vmatpush1.xpose.msra.mxu0 0.0
      %316 = vmatprep.subr.mxu0 0.0
      %317 = vmatpush1.xpose.msra.mxu0 0.0
      %318 = vmatprep.subr.mxu0 0.0
      %319 = vmatpush1.xpose.msra.mxu0 0.0
      %320 = vmatprep.subr.mxu0 0.0
      %321 = vmatpush1.xpose.msra.mxu0 0.0
      %322 = vmatprep.subr.mxu0 0.0
      %323 = vmatpush1.xpose.msra.mxu0 0.0
      %324 = vmatprep.subr.mxu0 0.0
      %325 = vmatpush1.xpose.msra.mxu0 0.0
      %326 = vmatprep.subr.mxu0 0.0
      %327 = vmatpush1.xpose.msra.mxu0 0.0
      %328 = vmatprep.subr.mxu0 0.0
      %329 = vmatpush1.xpose.msra.mxu0 0.0
      %330 = vmatprep.subr.mxu0 0.0
      %331 = vmatpush1.xpose.msra.mxu0 0.0
      %332 = vmatprep.subr.mxu0 0.0
      %333 = vmatpush1.xpose.msra.mxu0 0.0
      %334 = vmatprep.subr.mxu0 0.0
      %335 = vmatpush1.xpose.msra.mxu0 0.0
      %336 = vmatprep.subr.mxu0 0.0
      %337 = vmatpush1.xpose.msra.mxu0 0.0
      %338 = vmatprep.subr.mxu0 0.0
      %339 = vmatpush1.xpose.msra.mxu0 0.0
      %340 = vmatprep.subr.mxu0 0.0
      %341 = vmatpush1.xpose.msra.mxu0 0.0
      %342 = vmatprep.subr.mxu0 0.0
      %343 = vmatpush1.xpose.msra.mxu0 0.0
      %344 = vmatprep.subr.mxu0 0.0
      %345 = vmatpush1.xpose.msra.mxu0 0.0
      %346 = vmatprep.subr.mxu0 0.0
      %347 = vmatpush1.xpose.msra.mxu0 0.0
      %348 = vmatprep.subr.mxu0 0.0
      %349 = vmatpush1.xpose.msra.mxu0 0.0
      %350 = vmatprep.subr.mxu0 0.0
      %351 = vmatpush1.xpose.msra.mxu0 0.0
      %352 = vmatprep.subr.mxu0 0.0
      %353 = vmatpush1.xpose.msra.mxu0 0.0
      %354 = vmatprep.mubr.f32.mxu0 0.0
      %355 = vmatmul.mubr.f32.gmra.mrb[0].mxu0 %v282
      %v356 = vpop.f32.mrb[0].mxu0
      %v357 = vadd.f32 0.0, %v356
      %v358 = vpop.f32.mrb[0].mxu0
      %359 = vdwg.mxu0
      %361 = vset.pattern.permute.xlu0 0
      %362 = vperm.xlu0 %361, %v357
      %v363 = vpop.permute.xlu0 %362
      %v365 = vsel %vm264, %v363, 0.0
      %v367 = vsel %vm280, %v278, 0
      %369 = vmatprep.subr.mxu0 0.0
      %370 = vmatpush1.xpose.msra.mxu0 %v367
      %371 = vmatprep.subr.mxu0 0.0
      %372 = vmatpush1.xpose.msra.mxu0 0.0
      %373 = vmatprep.subr.mxu0 0.0
      %374 = vmatpush1.xpose.msra.mxu0 0.0
      %375 = vmatprep.subr.mxu0 0.0
      %376 = vmatpush1.xpose.msra.mxu0 0.0
      %377 = vmatprep.subr.mxu0 0.0
      %378 = vmatpush1.xpose.msra.mxu0 0.0
      %379 = vmatprep.subr.mxu0 0.0
      %380 = vmatpush1.xpose.msra.mxu0 0.0
      %381 = vmatprep.subr.mxu0 0.0
      %382 = vmatpush1.xpose.msra.mxu0 0.0
      %383 = vmatprep.subr.mxu0 0.0
      %384 = vmatpush1.xpose.msra.mxu0 0.0
      %385 = vmatprep.subr.mxu0 0.0
      %386 = vmatpush1.xpose.msra.mxu0 0.0
      %387 = vmatprep.subr.mxu0 0.0
      %388 = vmatpush1.xpose.msra.mxu0 0.0
      %389 = vmatprep.subr.mxu0 0.0
      %390 = vmatpush1.xpose.msra.mxu0 0.0
      %391 = vmatprep.subr.mxu0 0.0
      %392 = vmatpush1.xpose.msra.mxu0 0.0
      %393 = vmatprep.subr.mxu0 0.0
      %394 = vmatpush1.xpose.msra.mxu0 0.0
      %395 = vmatprep.subr.mxu0 0.0
      %396 = vmatpush1.xpose.msra.mxu0 0.0
      %397 = vmatprep.subr.mxu0 0.0
      %398 = vmatpush1.xpose.msra.mxu0 0.0
      %399 = vmatprep.subr.mxu0 0.0
      %400 = vmatpush1.xpose.msra.mxu0 0.0
      %401 = vmatprep.subr.mxu0 0.0
      %402 = vmatpush1.xpose.msra.mxu0 0.0
      %403 = vmatprep.subr.mxu0 0.0
      %404 = vmatpush1.xpose.msra.mxu0 0.0
      %405 = vmatprep.subr.mxu0 0.0
      %406 = vmatpush1.xpose.msra.mxu0 0.0
      %407 = vmatprep.subr.mxu0 0.0
      %408 = vmatpush1.xpose.msra.mxu0 0.0
      %409 = vmatprep.subr.mxu0 0.0
      %410 = vmatpush1.xpose.msra.mxu0 0.0
      %411 = vmatprep.subr.mxu0 0.0
      %412 = vmatpush1.xpose.msra.mxu0 0.0
      %413 = vmatprep.subr.mxu0 0.0
      %414 = vmatpush1.xpose.msra.mxu0 0.0
      %415 = vmatprep.subr.mxu0 0.0
      %416 = vmatpush1.xpose.msra.mxu0 0.0
      %417 = vmatprep.subr.mxu0 0.0
      %418 = vmatpush1.xpose.msra.mxu0 0.0
      %419 = vmatprep.subr.mxu0 0.0
      %420 = vmatpush1.xpose.msra.mxu0 0.0
      %421 = vmatprep.subr.mxu0 0.0
      %422 = vmatpush1.xpose.msra.mxu0 0.0
      %423 = vmatprep.subr.mxu0 0.0
      %424 = vmatpush1.xpose.msra.mxu0 0.0
      %425 = vmatprep.subr.mxu0 0.0
      %426 = vmatpush1.xpose.msra.mxu0 0.0
      %427 = vmatprep.subr.mxu0 0.0
      %428 = vmatpush1.xpose.msra.mxu0 0.0
      %429 = vmatprep.subr.mxu0 0.0
      %430 = vmatpush1.xpose.msra.mxu0 0.0
      %431 = vmatprep.subr.mxu0 0.0
      %432 = vmatpush1.xpose.msra.mxu0 0.0
      %433 = vmatprep.mubr.f32.mxu0 0.0
      %434 = vmatmul.mubr.f32.gmra.mrb[0].mxu0 %v282
      %v435 = vpop.f32.mrb[0].mxu0
      %v436 = vadd.f32 %v365, %v435
      %v437 = vpop.f32.mrb[0].mxu0
      %438 = vdwg.mxu0
      %439 = vset.pattern.permute.xlu0 1
      %440 = vperm.xlu0 %439, %v357
      %v441 = vpop.permute.xlu0 %440
      %v443 = vsel %vm265, %v441, 0.0
      %v444 = vadd.f32 %v436, %v443
      %445 = vset.pattern.permute.xlu0 2
      %446 = vperm.xlu0 %445, %v357
      %v447 = vpop.permute.xlu0 %446
      %v449 = vsel %vm266, %v447, 0.0
      %v450 = vadd.f32 %v444, %v449
      %451 = vset.pattern.permute.xlu0 3
      %452 = vperm.xlu0 %451, %v357
      %v453 = vpop.permute.xlu0 %452
      %v455 = vsel %vm267, %v453, 0.0
      %v456 = vadd.f32 %v450, %v455
      %457 = vset.pattern.permute.xlu0 4
      %458 = vperm.xlu0 %457, %v357
      %v459 = vpop.permute.xlu0 %458
      %v461 = vsel %vm268, %v459, 0.0
      %v462 = vadd.f32 %v456, %v461
      %463 = vset.pattern.permute.xlu0 5
      %464 = vperm.xlu0 %463, %v357
      %v465 = vpop.permute.xlu0 %464
      %v467 = vsel %vm269, %v465, 0.0
      %v468 = vadd.f32 %v462, %v467
      %469 = vset.pattern.permute.xlu0 6
      %470 = vperm.xlu0 %469, %v357
      %v471 = vpop.permute.xlu0 %470
      %v473 = vsel %vm270, %v471, 0.0
      %v474 = vadd.f32 %v468, %v473
      %475 = vset.pattern.permute.xlu0 7
      %476 = vperm.xlu0 %475, %v357
      %v477 = vpop.permute.xlu0 %476
      %v479 = vsel %vm271, %v477, 0.0
      %v480 = vadd.f32 %v474, %v479
      %481 = vset.pattern.permute.xlu0 8
      %482 = vperm.xlu0 %481, %v357
      %v483 = vpop.permute.xlu0 %482
      %v485 = vsel %vm272, %v483, 0.0
      %v486 = vadd.f32 %v480, %v485
      %v487 = vsel %vm280, %v486, -inf
      %488 = vmax.xlane.f32.xlu0 %v487
      %v489 = vpop.xlane.xlu0 %488
      %v490 = vsub.f32 %v486, %v489
      %v491 = vmul.f32 %v490, 1.442695
      %v492 = vpow.pop %v491
      %v493 = vsel %vm280, %v492, 0.0
      %494 = vadd.xlane.f32.xlu0 %v493
      %v495 = vpop.xlane.xlu0 %494
      %v496 = vrcp.pop %v495
      %v497 = vmul.f32 %v492, %v496
      %v498 = vsel %vm264, %v497, 0.0
      %v499 = vsel %vm280, %v498, 0.0
      %500 = vadd.xlane.f32.xlu0 %v499
      %v501 = vpop.xlane.xlu0 %500
      %v502 = vsel %vm265, %v497, 0.0
      %v503 = vsel %vm280, %v502, 0.0
      %504 = vadd.xlane.f32.xlu0 %v503
      %v505 = vpop.xlane.xlu0 %504
      %v506 = vsel %vm266, %v497, 0.0
      %v507 = vsel %vm280, %v506, 0.0
      %508 = vadd.xlane.f32.xlu0 %v507
      %v509 = vpop.xlane.xlu0 %508
      %v510 = vsel %vm267, %v497, 0.0
      %v511 = vsel %vm280, %v510, 0.0
      %512 = vadd.xlane.f32.xlu0 %v511
      %v513 = vpop.xlane.xlu0 %512
      %v514 = vsel %vm268, %v497, 0.0
      %v515 = vsel %vm280, %v514, 0.0
      %516 = vadd.xlane.f32.xlu0 %v515
      %v517 = vpop.xlane.xlu0 %516
      %v518 = vsel %vm269, %v497, 0.0
      %v519 = vsel %vm280, %v518, 0.0
      %520 = vadd.xlane.f32.xlu0 %v519
      %v521 = vpop.xlane.xlu0 %520
      %v522 = vsel %vm270, %v497, 0.0
      %v523 = vsel %vm280, %v522, 0.0
      %524 = vadd.xlane.f32.xlu0 %v523
      %v525 = vpop.xlane.xlu0 %524
      %v526 = vsel %vm271, %v497, 0.0
      %v527 = vsel %vm280, %v526, 0.0
      %528 = vadd.xlane.f32.xlu0 %v527
      %v529 = vpop.xlane.xlu0 %528
      %v530 = vsel %vm272, %v497, 0.0
      %v531 = vsel %vm280, %v530, 0.0
      %532 = vadd.xlane.f32.xlu0 %v531
      %v533 = vpop.xlane.xlu0 %532
      %vm534 = vcmask 7168
      %v535 = vsel %vm534, %v501, %v505
      %vm536 = vcmask 15360
      %v537 = vsel %vm536, %v535, %v509
      %vm538 = vcmask 23552
      %v539 = vsel %vm538, %v537, %v513
      %vm540 = vcmask 31744
      %v541 = vsel %vm540, %v539, %v517
      %vm542 = vcmask 39936
      %v543 = vsel %vm542, %v541, %v521
      %vm544 = vcmask 48128
      %v545 = vsel %vm544, %v543, %v525
      %vm546 = vcmask 56320
      %v547 = vsel %vm546, %v545, %v529
      %v548 = vsel %vm280, %v547, %v533
      %vm549 = vcmask 72704
      %v551 = vsel %vm549, %v548, 0
      %vm553 = vcmask 1040384
      %v555 = vsel %vm553, %v276, 0
      %557 = vmatprep.subr.mxu0 0.0
      %558 = vmatpush1.msra.mxu0 %v275
      %559 = vmatprep.subr.mxu0 0.0
      %560 = vmatpush1.msra.mxu0 %v555
      %561 = vmatprep.subr.mxu0 0.0
      %562 = vmatpush1.msra.mxu0 0.0
      %563 = vmatprep.subr.mxu0 0.0
      %564 = vmatpush1.msra.mxu0 0.0
      %565 = vmatprep.subr.mxu0 0.0
      %566 = vmatpush1.msra.mxu0 0.0
      %567 = vmatprep.subr.mxu0 0.0
      %568 = vmatpush1.msra.mxu0 0.0
      %569 = vmatprep.subr.mxu0 0.0
      %570 = vmatpush1.msra.mxu0 0.0
      %571 = vmatprep.subr.mxu0 0.0
      %572 = vmatpush1.msra.mxu0 0.0
      %573 = vmatprep.subr.mxu0 0.0
      %574 = vmatpush1.msra.mxu0 0.0
      %575 = vmatprep.subr.mxu0 0.0
      %576 = vmatpush1.msra.mxu0 0.0
      %577 = vmatprep.subr.mxu0 0.0
      %578 = vmatpush1.msra.mxu0 0.0
      %579 = vmatprep.subr.mxu0 0.0
      %580 = vmatpush1.msra.mxu0 0.0
      %581 = vmatprep.subr.mxu0 0.0
      %582 = vmatpush1.msra.mxu0 0.0
      %583 = vmatprep.subr.mxu0 0.0
      %584 = vmatpush1.msra.mxu0 0.0
      %585 = vmatprep.subr.mxu0 0.0
      %586 = vmatpush1.msra.mxu0 0.0
      %587 = vmatprep.subr.mxu0 0.0
      %588 = vmatpush1.msra.mxu0 0.0
      %589 = vmatprep.subr.mxu0 0.0
      %590 = vmatpush1.msra.mxu0 0.0
      %591 = vmatprep.subr.mxu0 0.0
      %592 = vmatpush1.msra.mxu0 0.0
      %593 = vmatprep.subr.mxu0 0.0
      %594 = vmatpush1.msra.mxu0 0.0
      %595 = vmatprep.subr.mxu0 0.0
      %596 = vmatpush1.msra.mxu0 0.0
      %597 = vmatprep.subr.mxu0 0.0
      %598 = vmatpush1.msra.mxu0 0.0
      %599 = vmatprep.subr.mxu0 0.0
      %600 = vmatpush1.msra.mxu0 0.0
      %601 = vmatprep.subr.mxu0 0.0
      %602 = vmatpush1.msra.mxu0 0.0
      %603 = vmatprep.subr.mxu0 0.0
      %604 = vmatpush1.msra.mxu0 0.0
      %605 = vmatprep.subr.mxu0 0.0
      %606 = vmatpush1.msra.mxu0 0.0
      %607 = vmatprep.subr.mxu0 0.0
      %608 = vmatpush1.msra.mxu0 0.0
      %609 = vmatprep.subr.mxu0 0.0
      %610 = vmatpush1.msra.mxu0 0.0
      %611 = vmatprep.subr.mxu0 0.0
      %612 = vmatpush1.msra.mxu0 0.0
      %613 = vmatprep.subr.mxu0 0.0
      %614 = vmatpush1.msra.mxu0 0.0
      %615 = vmatprep.subr.mxu0 0.0
      %616 = vmatpush1.msra.mxu0 0.0
      %617 = vmatprep.subr.mxu0 0.0
      %618 = vmatpush1.msra.mxu0 0.0
      %619 = vmatprep.subr.mxu0 0.0
      %620 = vmatpush1.msra.mxu0 0.0
      %621 = vmatprep.mubr.f32.mxu0 0.0
      %622 = vmatmul.mubr.f32.gmra.mrb[0].mxu0 %v551
      %v623 = vpop.f32.mrb[0].mxu0
      %v624 = vadd.f32 0.0, %v623
      %v625 = vpop.f32.mrb[0].mxu0
      %626 = vdwg.mxu0
      %v628 = vsel %vm280, %v497, 0
      %630 = vmatprep.subr.mxu0 0.0
      %631 = vmatpush1.msra.mxu0 %v279
      %632 = vmatprep.subr.mxu0 0.0
      %633 = vmatpush1.msra.mxu0 0.0
      %634 = vmatprep.subr.mxu0 0.0
      %635 = vmatpush1.msra.mxu0 0.0
      %636 = vmatprep.subr.mxu0 0.0
      %637 = vmatpush1.msra.mxu0 0.0
      %638 = vmatprep.subr.mxu0 0.0
      %639 = vmatpush1.msra.mxu0 0.0
      %640 = vmatprep.subr.mxu0 0.0
      %641 = vmatpush1.msra.mxu0 0.0
      %642 = vmatprep.subr.mxu0 0.0
      %643 = vmatpush1.msra.mxu0 0.0
      %644 = vmatprep.subr.mxu0 0.0
      %645 = vmatpush1.msra.mxu0 0.0
      %646 = vmatprep.subr.mxu0 0.0
      %647 = vmatpush1.msra.mxu0 0.0
      %648 = vmatprep.subr.mxu0 0.0
      %649 = vmatpush1.msra.mxu0 0.0
      %650 = vmatprep.subr.mxu0 0.0
      %651 = vmatpush1.msra.mxu0 0.0
      %652 = vmatprep.subr.mxu0 0.0
      %653 = vmatpush1.msra.mxu0 0.0
      %654 = vmatprep.subr.mxu0 0.0
      %655 = vmatpush1.msra.mxu0 0.0
      %656 = vmatprep.subr.mxu0 0.0
      %657 = vmatpush1.msra.mxu0 0.0
      %658 = vmatprep.subr.mxu0 0.0
      %659 = vmatpush1.msra.mxu0 0.0
      %660 = vmatprep.subr.mxu0 0.0
      %661 = vmatpush1.msra.mxu0 0.0
      %662 = vmatprep.subr.mxu0 0.0
      %663 = vmatpush1.msra.mxu0 0.0
      %664 = vmatprep.subr.mxu0 0.0
      %665 = vmatpush1.msra.mxu0 0.0
      %666 = vmatprep.subr.mxu0 0.0
      %667 = vmatpush1.msra.mxu0 0.0
      %668 = vmatprep.subr.mxu0 0.0
      %669 = vmatpush1.msra.mxu0 0.0
      %670 = vmatprep.subr.mxu0 0.0
      %671 = vmatpush1.msra.mxu0 0.0
      %672 = vmatprep.subr.mxu0 0.0
      %673 = vmatpush1.msra.mxu0 0.0
      %674 = vmatprep.subr.mxu0 0.0
      %675 = vmatpush1.msra.mxu0 0.0
      %676 = vmatprep.subr.mxu0 0.0
      %677 = vmatpush1.msra.mxu0 0.0
      %678 = vmatprep.subr.mxu0 0.0
      %679 = vmatpush1.msra.mxu0 0.0
      %680 = vmatprep.subr.mxu0 0.0
      %681 = vmatpush1.msra.mxu0 0.0
      %682 = vmatprep.subr.mxu0 0.0
      %683 = vmatpush1.msra.mxu0 0.0
      %684 = vmatprep.subr.mxu0 0.0
      %685 = vmatpush1.msra.mxu0 0.0
      %686 = vmatprep.subr.mxu0 0.0
      %687 = vmatpush1.msra.mxu0 0.0
      %688 = vmatprep.subr.mxu0 0.0
      %689 = vmatpush1.msra.mxu0 0.0
      %690 = vmatprep.subr.mxu0 0.0
      %691 = vmatpush1.msra.mxu0 0.0
      %692 = vmatprep.subr.mxu0 0.0
      %693 = vmatpush1.msra.mxu0 0.0
      %694 = vmatprep.mubr.f32.mxu0 0.0
      %695 = vmatmul.mubr.f32.gmra.mrb[0].mxu0 %v628
      %v696 = vpop.f32.mrb[0].mxu0
      %v697 = vadd.f32 %v624, %v696
      %v698 = vpop.f32.mrb[0].mxu0
      %699 = vdwg.mxu0
      %700 = vrot.lane.b32.xlu0 %v277, 120
      %v701 = vpop.permute.xlu0 %700
      %v702 = vsel %vm280, %v701, 0
      %704 = vmatprep.subr.mxu0 0.0
      %705 = vmatpush1.xpose.msra.mxu0 %v285
      %706 = vmatprep.subr.mxu0 0.0
      %707 = vmatpush1.xpose.msra.mxu0 %v288
      %708 = vmatprep.subr.mxu0 0.0
      %709 = vmatpush1.xpose.msra.mxu0 0.0
      %710 = vmatprep.subr.mxu0 0.0
      %711 = vmatpush1.xpose.msra.mxu0 0.0
      %712 = vmatprep.subr.mxu0 0.0
      %713 = vmatpush1.xpose.msra.mxu0 0.0
      %714 = vmatprep.subr.mxu0 0.0
      %715 = vmatpush1.xpose.msra.mxu0 0.0
      %716 = vmatprep.subr.mxu0 0.0
      %717 = vmatpush1.xpose.msra.mxu0 0.0
      %718 = vmatprep.subr.mxu0 0.0
      %719 = vmatpush1.xpose.msra.mxu0 0.0
      %720 = vmatprep.subr.mxu0 0.0
      %721 = vmatpush1.xpose.msra.mxu0 0.0
      %722 = vmatprep.subr.mxu0 0.0
      %723 = vmatpush1.xpose.msra.mxu0 0.0
      %724 = vmatprep.subr.mxu0 0.0
      %725 = vmatpush1.xpose.msra.mxu0 0.0
      %726 = vmatprep.subr.mxu0 0.0
      %727 = vmatpush1.xpose.msra.mxu0 0.0
      %728 = vmatprep.subr.mxu0 0.0
      %729 = vmatpush1.xpose.msra.mxu0 0.0
      %730 = vmatprep.subr.mxu0 0.0
      %731 = vmatpush1.xpose.msra.mxu0 0.0
      %732 = vmatprep.subr.mxu0 0.0
      %733 = vmatpush1.xpose.msra.mxu0 0.0
      %734 = vmatprep.subr.mxu0 0.0
      %735 = vmatpush1.xpose.msra.mxu0 0.0
      %736 = vmatprep.subr.mxu0 0.0
      %737 = vmatpush1.xpose.msra.mxu0 0.0
      %738 = vmatprep.subr.mxu0 0.0
      %739 = vmatpush1.xpose.msra.mxu0 0.0
      %740 = vmatprep.subr.mxu0 0.0
      %741 = vmatpush1.xpose.msra.mxu0 0.0
      %742 = vmatprep.subr.mxu0 0.0
      %743 = vmatpush1.xpose.msra.mxu0 0.0
      %744 = vmatprep.subr.mxu0 0.0
      %745 = vmatpush1.xpose.msra.mxu0 0.0
      %746 = vmatprep.subr.mxu0 0.0
      %747 = vmatpush1.xpose.msra.mxu0 0.0
      %748 = vmatprep.subr.mxu0 0.0
      %749 = vmatpush1.xpose.msra.mxu0 0.0
      %750 = vmatprep.subr.mxu0 0.0
      %751 = vmatpush1.xpose.msra.mxu0 0.0
      %752 = vmatprep.subr.mxu0 0.0
      %753 = vmatpush1.xpose.msra.mxu0 0.0
      %754 = vmatprep.subr.mxu0 0.0
      %755 = vmatpush1.xpose.msra.mxu0 0.0
      %756 = vmatprep.subr.mxu0 0.0
      %757 = vmatpush1.xpose.msra.mxu0 0.0
      %758 = vmatprep.subr.mxu0 0.0
      %759 = vmatpush1.xpose.msra.mxu0 0.0
      %760 = vmatprep.subr.mxu0 0.0
      %761 = vmatpush1.xpose.msra.mxu0 0.0
      %762 = vmatprep.subr.mxu0 0.0
      %763 = vmatpush1.xpose.msra.mxu0 0.0
      %764 = vmatprep.subr.mxu0 0.0
      %765 = vmatpush1.xpose.msra.mxu0 0.0
      %766 = vmatprep.subr.mxu0 0.0
      %767 = vmatpush1.xpose.msra.mxu0 0.0
      %768 = vmatprep.mubr.f32.mxu0 0.0
      %769 = vmatmul.mubr.f32.gmra.mrb[0].mxu0 %v702
      %v770 = vpop.f32.mrb[0].mxu0
      %v771 = vadd.f32 0.0, %v770
      %v772 = vpop.f32.mrb[0].mxu0
      %773 = vdwg.mxu0
      %775 = vset.pattern.permute.xlu0 0
      %776 = vperm.xlu0 %775, %v771
      %v777 = vpop.permute.xlu0 %776
      %v779 = vsel %vm264, %v777, 0.0
      %780 = vrot.lane.b32.xlu0 %v278, 120
      %v781 = vpop.permute.xlu0 %780
      %v782 = vsel %vm280, %v781, 0
      %784 = vmatprep.subr.mxu0 0.0
      %785 = vmatpush1.xpose.msra.mxu0 %v782
      %786 = vmatprep.subr.mxu0 0.0
      %787 = vmatpush1.xpose.msra.mxu0 0.0
      %788 = vmatprep.subr.mxu0 0.0
      %789 = vmatpush1.xpose.msra.mxu0 0.0
      %790 = vmatprep.subr.mxu0 0.0
      %791 = vmatpush1.xpose.msra.mxu0 0.0
      %792 = vmatprep.subr.mxu0 0.0
      %793 = vmatpush1.xpose.msra.mxu0 0.0
      %794 = vmatprep.subr.mxu0 0.0
      %795 = vmatpush1.xpose.msra.mxu0 0.0
      %796 = vmatprep.subr.mxu0 0.0
      %797 = vmatpush1.xpose.msra.mxu0 0.0
      %798 = vmatprep.subr.mxu0 0.0
      %799 = vmatpush1.xpose.msra.mxu0 0.0
      %800 = vmatprep.subr.mxu0 0.0
      %801 = vmatpush1.xpose.msra.mxu0 0.0
      %802 = vmatprep.subr.mxu0 0.0
      %803 = vmatpush1.xpose.msra.mxu0 0.0
      %804 = vmatprep.subr.mxu0 0.0
      %805 = vmatpush1.xpose.msra.mxu0 0.0
      %806 = vmatprep.subr.mxu0 0.0
      %807 = vmatpush1.xpose.msra.mxu0 0.0
      %808 = vmatprep.subr.mxu0 0.0
      %809 = vmatpush1.xpose.msra.mxu0 0.0
      %810 = vmatprep.subr.mxu0 0.0
      %811 = vmatpush1.xpose.msra.mxu0 0.0
      %812 = vmatprep.subr.mxu0 0.0
      %813 = vmatpush1.xpose.msra.mxu0 0.0
      %814 = vmatprep.subr.mxu0 0.0
      %815 = vmatpush1.xpose.msra.mxu0 0.0
      %816 = vmatprep.subr.mxu0 0.0
      %817 = vmatpush1.xpose.msra.mxu0 0.0
      %818 = vmatprep.subr.mxu0 0.0
      %819 = vmatpush1.xpose.msra.mxu0 0.0
      %820 = vmatprep.subr.mxu0 0.0
      %821 = vmatpush1.xpose.msra.mxu0 0.0
      %822 = vmatprep.subr.mxu0 0.0
      %823 = vmatpush1.xpose.msra.mxu0 0.0
      %824 = vmatprep.subr.mxu0 0.0
      %825 = vmatpush1.xpose.msra.mxu0 0.0
      %826 = vmatprep.subr.mxu0 0.0
      %827 = vmatpush1.xpose.msra.mxu0 0.0
      %828 = vmatprep.subr.mxu0 0.0
      %829 = vmatpush1.xpose.msra.mxu0 0.0
      %830 = vmatprep.subr.mxu0 0.0
      %831 = vmatpush1.xpose.msra.mxu0 0.0
      %832 = vmatprep.subr.mxu0 0.0
      %833 = vmatpush1.xpose.msra.mxu0 0.0
      %834 = vmatprep.subr.mxu0 0.0
      %835 = vmatpush1.xpose.msra.mxu0 0.0
      %836 = vmatprep.subr.mxu0 0.0
      %837 = vmatpush1.xpose.msra.mxu0 0.0
      %838 = vmatprep.subr.mxu0 0.0
      %839 = vmatpush1.xpose.msra.mxu0 0.0
      %840 = vmatprep.subr.mxu0 0.0
      %841 = vmatpush1.xpose.msra.mxu0 0.0
      %842 = vmatprep.subr.mxu0 0.0
      %843 = vmatpush1.xpose.msra.mxu0 0.0
      %844 = vmatprep.subr.mxu0 0.0
      %845 = vmatpush1.xpose.msra.mxu0 0.0
      %846 = vmatprep.subr.mxu0 0.0
      %847 = vmatpush1.xpose.msra.mxu0 0.0
      %848 = vmatprep.mubr.f32.mxu0 0.0
      %849 = vmatmul.mubr.f32.gmra.mrb[0].mxu0 %v702
      %v850 = vpop.f32.mrb[0].mxu0
      %v851 = vadd.f32 %v779, %v850
      %v852 = vpop.f32.mrb[0].mxu0
      %853 = vdwg.mxu0
      %854 = vset.pattern.permute.xlu0 1
      %855 = vperm.xlu0 %854, %v771
      %v856 = vpop.permute.xlu0 %855
      %v858 = vsel %vm265, %v856, 0.0
      %v859 = vadd.f32 %v851, %v858
      %860 = vset.pattern.permute.xlu0 2
      %861 = vperm.xlu0 %860, %v771
      %v862 = vpop.permute.xlu0 %861
      %v864 = vsel %vm266, %v862, 0.0
      %v865 = vadd.f32 %v859, %v864
      %866 = vset.pattern.permute.xlu0 3
      %867 = vperm.xlu0 %866, %v771
      %v868 = vpop.permute.xlu0 %867
      %v870 = vsel %vm267, %v868, 0.0
      %v871 = vadd.f32 %v865, %v870
      %872 = vset.pattern.permute.xlu0 4
      %873 = vperm.xlu0 %872, %v771
      %v874 = vpop.permute.xlu0 %873
      %v876 = vsel %vm268, %v874, 0.0
      %v877 = vadd.f32 %v871, %v876
      %878 = vset.pattern.permute.xlu0 5
      %879 = vperm.xlu0 %878, %v771
      %v880 = vpop.permute.xlu0 %879
      %v882 = vsel %vm269, %v880, 0.0
      %v883 = vadd.f32 %v877, %v882
      %884 = vset.pattern.permute.xlu0 6
      %885 = vperm.xlu0 %884, %v771
      %v886 = vpop.permute.xlu0 %885
      %v888 = vsel %vm270, %v886, 0.0
      %v889 = vadd.f32 %v883, %v888
      %890 = vset.pattern.permute.xlu0 7
      %891 = vperm.xlu0 %890, %v771
      %v892 = vpop.permute.xlu0 %891
      %v894 = vsel %vm271, %v892, 0.0
      %v895 = vadd.f32 %v889, %v894
      %896 = vset.pattern.permute.xlu0 8
      %897 = vperm.xlu0 %896, %v771
      %v898 = vpop.permute.xlu0 %897
      %v900 = vsel %vm272, %v898, 0.0
      %v901 = vadd.f32 %v895, %v900
      %v902 = vsel %vm280, %v901, -inf
      %903 = vmax.xlane.f32.xlu0 %v902
      %v904 = vpop.xlane.xlu0 %903
      %v905 = vsub.f32 %v901, %v904
      %v906 = vmul.f32 %v905, 1.442695
      %v907 = vpow.pop %v906
      %v908 = vsel %vm280, %v907, 0.0
      %909 = vadd.xlane.f32.xlu0 %v908
      %v910 = vpop.xlane.xlu0 %909
      %v911 = vrcp.pop %v910
      %v912 = vmul.f32 %v907, %v911
      %v913 = vsel %vm264, %v912, 0.0
      %v914 = vsel %vm280, %v913, 0.0
      %915 = vadd.xlane.f32.xlu0 %v914
      %v916 = vpop.xlane.xlu0 %915
      %v917 = vsel %vm265, %v912, 0.0
      %v918 = vsel %vm280, %v917, 0.0
      %919 = vadd.xlane.f32.xlu0 %v918
      %v920 = vpop.xlane.xlu0 %919
      %v921 = vsel %vm266, %v912, 0.0
      %v922 = vsel %vm280, %v921, 0.0
      %923 = vadd.xlane.f32.xlu0 %v922
      %v924 = vpop.xlane.xlu0 %923
      %v925 = vsel %vm267, %v912, 0.0
      %v926 = vsel %vm280, %v925, 0.0
      %927 = vadd.xlane.f32.xlu0 %v926
      %v928 = vpop.xlane.xlu0 %927
      %v929 = vsel %vm268, %v912, 0.0
      %v930 = vsel %vm280, %v929, 0.0
      %931 = vadd.xlane.f32.xlu0 %v930
      %v932 = vpop.xlane.xlu0 %931
      %v933 = vsel %vm269, %v912, 0.0
      %v934 = vsel %vm280, %v933, 0.0
      %935 = vadd.xlane.f32.xlu0 %v934
      %v936 = vpop.xlane.xlu0 %935
      %v937 = vsel %vm270, %v912, 0.0
      %v938 = vsel %vm280, %v937, 0.0
      %939 = vadd.xlane.f32.xlu0 %v938
      %v940 = vpop.xlane.xlu0 %939
      %v941 = vsel %vm271, %v912, 0.0
      %v942 = vsel %vm280, %v941, 0.0
      %943 = vadd.xlane.f32.xlu0 %v942
      %v944 = vpop.xlane.xlu0 %943
      %v945 = vsel %vm272, %v912, 0.0
      %v946 = vsel %vm280, %v945, 0.0
      %947 = vadd.xlane.f32.xlu0 %v946
      %v948 = vpop.xlane.xlu0 %947
      %v949 = vsel %vm534, %v916, %v920
      %v950 = vsel %vm536, %v949, %v924
      %v951 = vsel %vm538, %v950, %v928
      %v952 = vsel %vm540, %v951, %v932
      %v953 = vsel %vm542, %v952, %v936
      %v954 = vsel %vm544, %v953, %v940
      %v955 = vsel %vm546, %v954, %v944
      %v956 = vsel %vm280, %v955, %v948
      %v958 = vsel %vm549, %v956, 0
      %960 = vmatprep.subr.mxu0 0.0
      %961 = vmatpush1.msra.mxu0 %v275
      %962 = vmatprep.subr.mxu0 0.0
      %963 = vmatpush1.msra.mxu0 %v555
      %964 = vmatprep.subr.mxu0 0.0
      %965 = vmatpush1.msra.mxu0 0.0
      %966 = vmatprep.subr.mxu0 0.0
      %967 = vmatpush1.msra.mxu0 0.0
      %968 = vmatprep.subr.mxu0 0.0
      %969 = vmatpush1.msra.mxu0 0.0
      %970 = vmatprep.subr.mxu0 0.0
      %971 = vmatpush1.msra.mxu0 0.0
      %972 = vmatprep.subr.mxu0 0.0
      %973 = vmatpush1.msra.mxu0 0.0
      %974 = vmatprep.subr.mxu0 0.0
      %975 = vmatpush1.msra.mxu0 0.0
      %976 = vmatprep.subr.mxu0 0.0
      %977 = vmatpush1.msra.mxu0 0.0
      %978 = vmatprep.subr.mxu0 0.0
      %979 = vmatpush1.msra.mxu0 0.0
      %980 = vmatprep.subr.mxu0 0.0
      %981 = vmatpush1.msra.mxu0 0.0
      %982 = vmatprep.subr.mxu0 0.0
      %983 = vmatpush1.msra.mxu0 0.0
      %984 = vmatprep.subr.mxu0 0.0
      %985 = vmatpush1.msra.mxu0 0.0
      %986 = vmatprep.subr.mxu0 0.0
      %987 = vmatpush1.msra.mxu0 0.0
      %988 = vmatprep.subr.mxu0 0.0
      %989 = vmatpush1.msra.mxu0 0.0
      %990 = vmatprep.subr.mxu0 0.0
      %991 = vmatpush1.msra.mxu0 0.0
      %992 = vmatprep.subr.mxu0 0.0
      %993 = vmatpush1.msra.mxu0 0.0
      %994 = vmatprep.subr.mxu0 0.0
      %995 = vmatpush1.msra.mxu0 0.0
      %996 = vmatprep.subr.mxu0 0.0
      %997 = vmatpush1.msra.mxu0 0.0
      %998 = vmatprep.subr.mxu0 0.0
      %999 = vmatpush1.msra.mxu0 0.0
      %1000 = vmatprep.subr.mxu0 0.0
      %1001 = vmatpush1.msra.mxu0 0.0
      %1002 = vmatprep.subr.mxu0 0.0
      %1003 = vmatpush1.msra.mxu0 0.0
      %1004 = vmatprep.subr.mxu0 0.0
      %1005 = vmatpush1.msra.mxu0 0.0
      %1006 = vmatprep.subr.mxu0 0.0
      %1007 = vmatpush1.msra.mxu0 0.0
      %1008 = vmatprep.subr.mxu0 0.0
      %1009 = vmatpush1.msra.mxu0 0.0
      %1010 = vmatprep.subr.mxu0 0.0
      %1011 = vmatpush1.msra.mxu0 0.0
      %1012 = vmatprep.subr.mxu0 0.0
      %1013 = vmatpush1.msra.mxu0 0.0
      %1014 = vmatprep.subr.mxu0 0.0
      %1015 = vmatpush1.msra.mxu0 0.0
      %1016 = vmatprep.subr.mxu0 0.0
      %1017 = vmatpush1.msra.mxu0 0.0
      %1018 = vmatprep.subr.mxu0 0.0
      %1019 = vmatpush1.msra.mxu0 0.0
      %1020 = vmatprep.subr.mxu0 0.0
      %1021 = vmatpush1.msra.mxu0 0.0
      %1022 = vmatprep.subr.mxu0 0.0
      %1023 = vmatpush1.msra.mxu0 0.0
      %1024 = vmatprep.mubr.f32.mxu0 0.0
      %1025 = vmatmul.mubr.f32.gmra.mrb[0].mxu0 %v958
      %v1026 = vpop.f32.mrb[0].mxu0
      %v1027 = vadd.f32 0.0, %v1026
      %v1028 = vpop.f32.mrb[0].mxu0
      %1029 = vdwg.mxu0
      %1031 = vrot.lane.b32.xlu0 %v279, 120
      %v1032 = vpop.permute.xlu0 %1031
      %v1035 = vsel %vm280, %v912, 0
      %1037 = vmatprep.subr.mxu0 0.0
      %1038 = vmatpush1.msra.mxu0 %v1032
      %1039 = vmatprep.subr.mxu0 0.0
      %1040 = vmatpush1.msra.mxu0 0.0
      %1041 = vmatprep.subr.mxu0 0.0
      %1042 = vmatpush1.msra.mxu0 0.0
      %1043 = vmatprep.subr.mxu0 0.0
      %1044 = vmatpush1.msra.mxu0 0.0
      %1045 = vmatprep.subr.mxu0 0.0
      %1046 = vmatpush1.msra.mxu0 0.0
      %1047 = vmatprep.subr.mxu0 0.0
      %1048 = vmatpush1.msra.mxu0 0.0
      %1049 = vmatprep.subr.mxu0 0.0
      %1050 = vmatpush1.msra.mxu0 0.0
      %1051 = vmatprep.subr.mxu0 0.0
      %1052 = vmatpush1.msra.mxu0 0.0
      %1053 = vmatprep.subr.mxu0 0.0
      %1054 = vmatpush1.msra.mxu0 0.0
      %1055 = vmatprep.subr.mxu0 0.0
      %1056 = vmatpush1.msra.mxu0 0.0
      %1057 = vmatprep.subr.mxu0 0.0
      %1058 = vmatpush1.msra.mxu0 0.0
      %1059 = vmatprep.subr.mxu0 0.0
      %1060 = vmatpush1.msra.mxu0 0.0
      %1061 = vmatprep.subr.mxu0 0.0
      %1062 = vmatpush1.msra.mxu0 0.0
      %1063 = vmatprep.subr.mxu0 0.0
      %1064 = vmatpush1.msra.mxu0 0.0
      %1065 = vmatprep.subr.mxu0 0.0
      %1066 = vmatpush1.msra.mxu0 0.0
      %1067 = vmatprep.subr.mxu0 0.0
      %1068 = vmatpush1.msra.mxu0 0.0
      %1069 = vmatprep.subr.mxu0 0.0
      %1070 = vmatpush1.msra.mxu0 0.0
      %1071 = vmatprep.subr.mxu0 0.0
      %1072 = vmatpush1.msra.mxu0 0.0
      %1073 = vmatprep.subr.mxu0 0.0
      %1074 = vmatpush1.msra.mxu0 0.0
      %1075 = vmatprep.subr.mxu0 0.0
      %1076 = vmatpush1.msra.mxu0 0.0
      %1077 = vmatprep.subr.mxu0 0.0
      %1078 = vmatpush1.msra.mxu0 0.0
      %1079 = vmatprep.subr.mxu0 0.0
      %1080 = vmatpush1.msra.mxu0 0.0
      %1081 = vmatprep.subr.mxu0 0.0
      %1082 = vmatpush1.msra.mxu0 0.0
      %1083 = vmatprep.subr.mxu0 0.0
      %1084 = vmatpush1.msra.mxu0 0.0
      %1085 = vmatprep.subr.mxu0 0.0
      %1086 = vmatpush1.msra.mxu0 0.0
      %1087 = vmatprep.subr.mxu0 0.0
      %1088 = vmatpush1.msra.mxu0 0.0
      %1089 = vmatprep.subr.mxu0 0.0
      %1090 = vmatpush1.msra.mxu0 0.0
      %1091 = vmatprep.subr.mxu0 0.0
      %1092 = vmatpush1.msra.mxu0 0.0
      %1093 = vmatprep.subr.mxu0 0.0
      %1094 = vmatpush1.msra.mxu0 0.0
      %1095 = vmatprep.subr.mxu0 0.0
      %1096 = vmatpush1.msra.mxu0 0.0
      %1097 = vmatprep.subr.mxu0 0.0
      %1098 = vmatpush1.msra.mxu0 0.0
      %1099 = vmatprep.subr.mxu0 0.0
      %1100 = vmatpush1.msra.mxu0 0.0
      %1101 = vmatprep.mubr.f32.mxu0 0.0
      %1102 = vmatmul.mubr.f32.gmra.mrb[0].mxu0 %v1035
      %v1103 = vpop.f32.mrb[0].mxu0
      %v1104 = vadd.f32 %v1027, %v1103
      %v1105 = vpop.f32.mrb[0].mxu0
      %1106 = vdwg.mxu0
      %1107 = vrot.lane.b32.xlu0 %v277, 112
      %v1108 = vpop.permute.xlu0 %1107
      %v1109 = vsel %vm280, %v1108, 0
      %1111 = vmatprep.subr.mxu0 0.0
      %1112 = vmatpush1.xpose.msra.mxu0 %v285
      %1113 = vmatprep.subr.mxu0 0.0
      %1114 = vmatpush1.xpose.msra.mxu0 %v288
      %1115 = vmatprep.subr.mxu0 0.0
      %1116 = vmatpush1.xpose.msra.mxu0 0.0
      %1117 = vmatprep.subr.mxu0 0.0
      %1118 = vmatpush1.xpose.msra.mxu0 0.0
      %1119 = vmatprep.subr.mxu0 0.0
      %1120 = vmatpush1.xpose.msra.mxu0 0.0
      %1121 = vmatprep.subr.mxu0 0.0
      %1122 = vmatpush1.xpose.msra.mxu0 0.0
      %1123 = vmatprep.subr.mxu0 0.0
      %1124 = vmatpush1.xpose.msra.mxu0 0.0
      %1125 = vmatprep.subr.mxu0 0.0
      %1126 = vmatpush1.xpose.msra.mxu0 0.0
      %1127 = vmatprep.subr.mxu0 0.0
      %1128 = vmatpush1.xpose.msra.mxu0 0.0
      %1129 = vmatprep.subr.mxu0 0.0
      %1130 = vmatpush1.xpose.msra.mxu0 0.0
      %1131 = vmatprep.subr.mxu0 0.0
      %1132 = vmatpush1.xpose.msra.mxu0 0.0
      %1133 = vmatprep.subr.mxu0 0.0
      %1134 = vmatpush1.xpose.msra.mxu0 0.0
      %1135 = vmatprep.subr.mxu0 0.0
      %1136 = vmatpush1.xpose.msra.mxu0 0.0
      %1137 = vmatprep.subr.mxu0 0.0
      %1138 = vmatpush1.xpose.msra.mxu0 0.0
      %1139 = vmatprep.subr.mxu0 0.0
      %1140 = vmatpush1.xpose.msra.mxu0 0.0
      %1141 = vmatprep.subr.mxu0 0.0
      %1142 = vmatpush1.xpose.msra.mxu0 0.0
      %1143 = vmatprep.subr.mxu0 0.0
      %1144 = vmatpush1.xpose.msra.mxu0 0.0
      %1145 = vmatprep.subr.mxu0 0.0
      %1146 = vmatpush1.xpose.msra.mxu0 0.0
      %1147 = vmatprep.subr.mxu0 0.0
      %1148 = vmatpush1.xpose.msra.mxu0 0.0
      %1149 = vmatprep.subr.mxu0 0.0
      %1150 = vmatpush1.xpose.msra.mxu0 0.0
      %1151 = vmatprep.subr.mxu0 0.0
      %1152 = vmatpush1.xpose.msra.mxu0 0.0
      %1153 = vmatprep.subr.mxu0 0.0
      %1154 = vmatpush1.xpose.msra.mxu0 0.0
      %1155 = vmatprep.subr.mxu0 0.0
      %1156 = vmatpush1.xpose.msra.mxu0 0.0
      %1157 = vmatprep.subr.mxu0 0.0
      %1158 = vmatpush1.xpose.msra.mxu0 0.0
      %1159 = vmatprep.subr.mxu0 0.0
      %1160 = vmatpush1.xpose.msra.mxu0 0.0
      %1161 = vmatprep.subr.mxu0 0.0
      %1162 = vmatpush1.xpose.msra.mxu0 0.0
      %1163 = vmatprep.subr.mxu0 0.0
      %1164 = vmatpush1.xpose.msra.mxu0 0.0
      %1165 = vmatprep.subr.mxu0 0.0
      %1166 = vmatpush1.xpose.msra.mxu0 0.0
      %1167 = vmatprep.subr.mxu0 0.0
      %1168 = vmatpush1.xpose.msra.mxu0 0.0
      %1169 = vmatprep.subr.mxu0 0.0
      %1170 = vmatpush1.xpose.msra.mxu0 0.0
      %1171 = vmatprep.subr.mxu0 0.0
      %1172 = vmatpush1.xpose.msra.mxu0 0.0
      %1173 = vmatprep.subr.mxu0 0.0
      %1174 = vmatpush1.xpose.msra.mxu0 0.0
      %1175 = vmatprep.mubr.f32.mxu0 0.0
      %1176 = vmatmul.mubr.f32.gmra.mrb[0].mxu0 %v1109
      %v1177 = vpop.f32.mrb[0].mxu0
      %v1178 = vadd.f32 0.0, %v1177
      %v1179 = vpop.f32.mrb[0].mxu0
      %1180 = vdwg.mxu0
      %1182 = vset.pattern.permute.xlu0 0
      %1183 = vperm.xlu0 %1182, %v1178
      %v1184 = vpop.permute.xlu0 %1183
      %v1186 = vsel %vm264, %v1184, 0.0
      %1187 = vrot.lane.b32.xlu0 %v278, 112
      %v1188 = vpop.permute.xlu0 %1187
      %v1189 = vsel %vm280, %v1188, 0
      %1191 = vmatprep.subr.mxu0 0.0
      %1192 = vmatpush1.xpose.msra.mxu0 %v1189
      %1193 = vmatprep.subr.mxu0 0.0
      %1194 = vmatpush1.xpose.msra.mxu0 0.0
      %1195 = vmatprep.subr.mxu0 0.0
      %1196 = vmatpush1.xpose.msra.mxu0 0.0
      %1197 = vmatprep.subr.mxu0 0.0
      %1198 = vmatpush1.xpose.msra.mxu0 0.0
      %1199 = vmatprep.subr.mxu0 0.0
      %1200 = vmatpush1.xpose.msra.mxu0 0.0
      %1201 = vmatprep.subr.mxu0 0.0
      %1202 = vmatpush1.xpose.msra.mxu0 0.0
      %1203 = vmatprep.subr.mxu0 0.0
      %1204 = vmatpush1.xpose.msra.mxu0 0.0
      %1205 = vmatprep.subr.mxu0 0.0
      %1206 = vmatpush1.xpose.msra.mxu0 0.0
      %1207 = vmatprep.subr.mxu0 0.0
      %1208 = vmatpush1.xpose.msra.mxu0 0.0
      %1209 = vmatprep.subr.mxu0 0.0
      %1210 = vmatpush1.xpose.msra.mxu0 0.0
      %1211 = vmatprep.subr.mxu0 0.0
      %1212 = vmatpush1.xpose.msra.mxu0 0.0
      %1213 = vmatprep.subr.mxu0 0.0
      %1214 = vmatpush1.xpose.msra.mxu0 0.0
      %1215 = vmatprep.subr.mxu0 0.0
      %1216 = vmatpush1.xpose.msra.mxu0 0.0
      %1217 = vmatprep.subr.mxu0 0.0
      %1218 = vmatpush1.xpose.msra.mxu0 0.0
      %1219 = vmatprep.subr.mxu0 0.0
      %1220 = vmatpush1.xpose.msra.mxu0 0.0
      %1221 = vmatprep.subr.mxu0 0.0
      %1222 = vmatpush1.xpose.msra.mxu0 0.0
      %1223 = vmatprep.subr.mxu0 0.0
      %1224 = vmatpush1.xpose.msra.mxu0 0.0
      %1225 = vmatprep.subr.mxu0 0.0
      %1226 = vmatpush1.xpose.msra.mxu0 0.0
      %1227 = vmatprep.subr.mxu0 0.0
      %1228 = vmatpush1.xpose.msra.mxu0 0.0
      %1229 = vmatprep.subr.mxu0 0.0
      %1230 = vmatpush1.xpose.msra.mxu0 0.0
      %1231 = vmatprep.subr.mxu0 0.0
      %1232 = vmatpush1.xpose.msra.mxu0 0.0
      %1233 = vmatprep.subr.mxu0 0.0
      %1234 = vmatpush1.xpose.msra.mxu0 0.0
      %1235 = vmatprep.subr.mxu0 0.0
      %1236 = vmatpush1.xpose.msra.mxu0 0.0
      %1237 = vmatprep.subr.mxu0 0.0
      %1238 = vmatpush1.xpose.msra.mxu0 0.0
      %1239 = vmatprep.subr.mxu0 0.0
      %1240 = vmatpush1.xpose.msra.mxu0 0.0
      %1241 = vmatprep.subr.mxu0 0.0
      %1242 = vmatpush1.xpose.msra.mxu0 0.0
      %1243 = vmatprep.subr.mxu0 0.0
      %1244 = vmatpush1.xpose.msra.mxu0 0.0
      %1245 = vmatprep.subr.mxu0 0.0
      %1246 = vmatpush1.xpose.msra.mxu0 0.0
      %1247 = vmatprep.subr.mxu0 0.0
      %1248 = vmatpush1.xpose.msra.mxu0 0.0
      %1249 = vmatprep.subr.mxu0 0.0
      %1250 = vmatpush1.xpose.msra.mxu0 0.0
      %1251 = vmatprep.subr.mxu0 0.0
      %1252 = vmatpush1.xpose.msra.mxu0 0.0
      %1253 = vmatprep.subr.mxu0 0.0
      %1254 = vmatpush1.xpose.msra.mxu0 0.0
      %1255 = vmatprep.mubr.f32.mxu0 0.0
      %1256 = vmatmul.mubr.f32.gmra.mrb[0].mxu0 %v1109
      %v1257 = vpop.f32.mrb[0].mxu0
      %v1258 = vadd.f32 %v1186, %v1257
      %v1259 = vpop.f32.mrb[0].mxu0
      %1260 = vdwg.mxu0
      %1261 = vset.pattern.permute.xlu0 1
      %1262 = vperm.xlu0 %1261, %v1178
      %v1263 = vpop.permute.xlu0 %1262
      %v1265 = vsel %vm265, %v1263, 0.0
      %v1266 = vadd.f32 %v1258, %v1265
      %1267 = vset.pattern.permute.xlu0 2
      %1268 = vperm.xlu0 %1267, %v1178
      %v1269 = vpop.permute.xlu0 %1268
      %v1271 = vsel %vm266, %v1269, 0.0
      %v1272 = vadd.f32 %v1266, %v1271
      %1273 = vset.pattern.permute.xlu0 3
      %1274 = vperm.xlu0 %1273, %v1178
      %v1275 = vpop.permute.xlu0 %1274
      %v1277 = vsel %vm267, %v1275, 0.0
      %v1278 = vadd.f32 %v1272, %v1277
      %1279 = vset.pattern.permute.xlu0 4
      %1280 = vperm.xlu0 %1279, %v1178
      %v1281 = vpop.permute.xlu0 %1280
      %v1283 = vsel %vm268, %v1281, 0.0
      %v1284 = vadd.f32 %v1278, %v1283
      %1285 = vset.pattern.permute.xlu0 5
      %1286 = vperm.xlu0 %1285, %v1178
      %v1287 = vpop.permute.xlu0 %1286
      %v1289 = vsel %vm269, %v1287, 0.0
      %v1290 = vadd.f32 %v1284, %v1289
      %1291 = vset.pattern.permute.xlu0 6
      %1292 = vperm.xlu0 %1291, %v1178
      %v1293 = vpop.permute.xlu0 %1292
      %v1295 = vsel %vm270, %v1293, 0.0
      %v1296 = vadd.f32 %v1290, %v1295
      %1297 = vset.pattern.permute.xlu0 7
      %1298 = vperm.xlu0 %1297, %v1178
      %v1299 = vpop.permute.xlu0 %1298
      %v1301 = vsel %vm271, %v1299, 0.0
      %v1302 = vadd.f32 %v1296, %v1301
      %1303 = vset.pattern.permute.xlu0 8
      %1304 = vperm.xlu0 %1303, %v1178
      %v1305 = vpop.permute.xlu0 %1304
      %v1307 = vsel %vm272, %v1305, 0.0
      %v1308 = vadd.f32 %v1302, %v1307
      %v1309 = vsel %vm280, %v1308, -inf
      %1310 = vmax.xlane.f32.xlu0 %v1309
      %v1311 = vpop.xlane.xlu0 %1310
      %v1312 = vsub.f32 %v1308, %v1311
      %v1313 = vmul.f32 %v1312, 1.442695
      %v1314 = vpow.pop %v1313
      %v1315 = vsel %vm280, %v1314, 0.0
      %1316 = vadd.xlane.f32.xlu0 %v1315
      %v1317 = vpop.xlane.xlu0 %1316
      %v1318 = vrcp.pop %v1317
      %v1319 = vmul.f32 %v1314, %v1318
      %v1320 = vsel %vm264, %v1319, 0.0
      %v1321 = vsel %vm280, %v1320, 0.0
      %1322 = vadd.xlane.f32.xlu0 %v1321
      %v1323 = vpop.xlane.xlu0 %1322
      %v1324 = vsel %vm265, %v1319, 0.0
      %v1325 = vsel %vm280, %v1324, 0.0
      %1326 = vadd.xlane.f32.xlu0 %v1325
      %v1327 = vpop.xlane.xlu0 %1326
      %v1328 = vsel %vm266, %v1319, 0.0
      %v1329 = vsel %vm280, %v1328, 0.0
      %1330 = vadd.xlane.f32.xlu0 %v1329
      %v1331 = vpop.xlane.xlu0 %1330
      %v1332 = vsel %vm267, %v1319, 0.0
      %v1333 = vsel %vm280, %v1332, 0.0
      %1334 = vadd.xlane.f32.xlu0 %v1333
      %v1335 = vpop.xlane.xlu0 %1334
      %v1336 = vsel %vm268, %v1319, 0.0
      %v1337 = vsel %vm280, %v1336, 0.0
      %1338 = vadd.xlane.f32.xlu0 %v1337
      %v1339 = vpop.xlane.xlu0 %1338
      %v1340 = vsel %vm269, %v1319, 0.0
      %v1341 = vsel %vm280, %v1340, 0.0
      %1342 = vadd.xlane.f32.xlu0 %v1341
      %v1343 = vpop.xlane.xlu0 %1342
      %v1344 = vsel %vm270, %v1319, 0.0
      %v1345 = vsel %vm280, %v1344, 0.0
      %1346 = vadd.xlane.f32.xlu0 %v1345
      %v1347 = vpop.xlane.xlu0 %1346
      %v1348 = vsel %vm271, %v1319, 0.0
      %v1349 = vsel %vm280, %v1348, 0.0
      %1350 = vadd.xlane.f32.xlu0 %v1349
      %v1351 = vpop.xlane.xlu0 %1350
      %v1352 = vsel %vm272, %v1319, 0.0
      %v1353 = vsel %vm280, %v1352, 0.0
      %1354 = vadd.xlane.f32.xlu0 %v1353
      %v1355 = vpop.xlane.xlu0 %1354
      %v1356 = vsel %vm534, %v1323, %v1327
      %v1357 = vsel %vm536, %v1356, %v1331
      %v1358 = vsel %vm538, %v1357, %v1335
      %v1359 = vsel %vm540, %v1358, %v1339
      %v1360 = vsel %vm542, %v1359, %v1343
      %v1361 = vsel %vm544, %v1360, %v1347
      %v1362 = vsel %vm546, %v1361, %v1351
      %v1363 = vsel %vm280, %v1362, %v1355
      %v1365 = vsel %vm549, %v1363, 0
      %1367 = vmatprep.subr.mxu0 0.0
      %1368 = vmatpush1.msra.mxu0 %v275
      %1369 = vmatprep.subr.mxu0 0.0
      %1370 = vmatpush1.msra.mxu0 %v555
      %1371 = vmatprep.subr.mxu0 0.0
      %1372 = vmatpush1.msra.mxu0 0.0
      %1373 = vmatprep.subr.mxu0 0.0
      %1374 = vmatpush1.msra.mxu0 0.0
      %1375 = vmatprep.subr.mxu0 0.0
      %1376 = vmatpush1.msra.mxu0 0.0
      %1377 = vmatprep.subr.mxu0 0.0
      %1378 = vmatpush1.msra.mxu0 0.0
      %1379 = vmatprep.subr.mxu0 0.0
      %1380 = vmatpush1.msra.mxu0 0.0
      %1381 = vmatprep.subr.mxu0 0.0
      %1382 = vmatpush1.msra.mxu0 0.0
      %1383 = vmatprep.subr.mxu0 0.0
      %1384 = vmatpush1.msra.mxu0 0.0
      %1385 = vmatprep.subr.mxu0 0.0
      %1386 = vmatpush1.msra.mxu0 0.0
      %1387 = vmatprep.subr.mxu0 0.0
      %1388 = vmatpush1.msra.mxu0 0.0
      %1389 = vmatprep.subr.mxu0 0.0
      %1390 = vmatpush1.msra.mxu0 0.0
      %1391 = vmatprep.subr.mxu0 0.0
      %1392 = vmatpush1.msra.mxu0 0.0
      %1393 = vmatprep.subr.mxu0 0.0
      %1394 = vmatpush1.msra.mxu0 0.0
      %1395 = vmatprep.subr.mxu0 0.0
      %1396 = vmatpush1.msra.mxu0 0.0
      %1397 = vmatprep.subr.mxu0 0.0
      %1398 = vmatpush1.msra.mxu0 0.0
      %1399 = vmatprep.subr.mxu0 0.0
      %1400 = vmatpush1.msra.mxu0 0.0
      %1401 = vmatprep.subr.mxu0 0.0
      %1402 = vmatpush1.msra.mxu0 0.0
      %1403 = vmatprep.subr.mxu0 0.0
      %1404 = vmatpush1.msra.mxu0 0.0
      %1405 = vmatprep.subr.mxu0 0.0
      %1406 = vmatpush1.msra.mxu0 0.0
      %1407 = vmatprep.subr.mxu0 0.0
      %1408 = vmatpush1.msra.mxu0 0.0
      %1409 = vmatprep.subr.mxu0 0.0
      %1410 = vmatpush1.msra.mxu0 0.0
      %1411 = vmatprep.subr.mxu0 0.0
      %1412 = vmatpush1.msra.mxu0 0.0
      %1413 = vmatprep.subr.mxu0 0.0
      %1414 = vmatpush1.msra.mxu0 0.0
      %1415 = vmatprep.subr.mxu0 0.0
      %1416 = vmatpush1.msra.mxu0 0.0
      %1417 = vmatprep.subr.mxu0 0.0
      %1418 = vmatpush1.msra.mxu0 0.0
      %1419 = vmatprep.subr.mxu0 0.0
      %1420 = vmatpush1.msra.mxu0 0.0
      %1421 = vmatprep.subr.mxu0 0.0
      %1422 = vmatpush1.msra.mxu0 0.0
      %1423 = vmatprep.subr.mxu0 0.0
      %1424 = vmatpush1.msra.mxu0 0.0
      %1425 = vmatprep.subr.mxu0 0.0
      %1426 = vmatpush1.msra.mxu0 0.0
      %1427 = vmatprep.subr.mxu0 0.0
      %1428 = vmatpush1.msra.mxu0 0.0
      %1429 = vmatprep.subr.mxu0 0.0
      %1430 = vmatpush1.msra.mxu0 0.0
      %1431 = vmatprep.mubr.f32.mxu0 0.0
      %1432 = vmatmul.mubr.f32.gmra.mrb[0].mxu0 %v1365
      %v1433 = vpop.f32.mrb[0].mxu0
      %v1434 = vadd.f32 0.0, %v1433
      %v1435 = vpop.f32.mrb[0].mxu0
      %1436 = vdwg.mxu0
      %1437 = vrot.lane.b32.xlu0 %v279, 112
      %v1438 = vpop.permute.xlu0 %1437
      %v1441 = vsel %vm280, %v1319, 0
      %1443 = vmatprep.subr.mxu0 0.0
      %1444 = vmatpush1.msra.mxu0 %v1438
      %1445 = vmatprep.subr.mxu0 0.0
      %1446 = vmatpush1.msra.mxu0 0.0
      %1447 = vmatprep.subr.mxu0 0.0
      %1448 = vmatpush1.msra.mxu0 0.0
      %1449 = vmatprep.subr.mxu0 0.0
      %1450 = vmatpush1.msra.mxu0 0.0
      %1451 = vmatprep.subr.mxu0 0.0
      %1452 = vmatpush1.msra.mxu0 0.0
      %1453 = vmatprep.subr.mxu0 0.0
      %1454 = vmatpush1.msra.mxu0 0.0
      %1455 = vmatprep.subr.mxu0 0.0
      %1456 = vmatpush1.msra.mxu0 0.0
      %1457 = vmatprep.subr.mxu0 0.0
      %1458 = vmatpush1.msra.mxu0 0.0
      %1459 = vmatprep.subr.mxu0 0.0
      %1460 = vmatpush1.msra.mxu0 0.0
      %1461 = vmatprep.subr.mxu0 0.0
      %1462 = vmatpush1.msra.mxu0 0.0
      %1463 = vmatprep.subr.mxu0 0.0
      %1464 = vmatpush1.msra.mxu0 0.0
      %1465 = vmatprep.subr.mxu0 0.0
      %1466 = vmatpush1.msra.mxu0 0.0
      %1467 = vmatprep.subr.mxu0 0.0
      %1468 = vmatpush1.msra.mxu0 0.0
      %1469 = vmatprep.subr.mxu0 0.0
      %1470 = vmatpush1.msra.mxu0 0.0
      %1471 = vmatprep.subr.mxu0 0.0
      %1472 = vmatpush1.msra.mxu0 0.0
      %1473 = vmatprep.subr.mxu0 0.0
      %1474 = vmatpush1.msra.mxu0 0.0
      %1475 = vmatprep.subr.mxu0 0.0
      %1476 = vmatpush1.msra.mxu0 0.0
      %1477 = vmatprep.subr.mxu0 0.0
      %1478 = vmatpush1.msra.mxu0 0.0
      %1479 = vmatprep.subr.mxu0 0.0
      %1480 = vmatpush1.msra.mxu0 0.0
      %1481 = vmatprep.subr.mxu0 0.0
      %1482 = vmatpush1.msra.mxu0 0.0
      %1483 = vmatprep.subr.mxu0 0.0
      %1484 = vmatpush1.msra.mxu0 0.0
      %1485 = vmatprep.subr.mxu0 0.0
      %1486 = vmatpush1.msra.mxu0 0.0
      %1487 = vmatprep.subr.mxu0 0.0
      %1488 = vmatpush1.msra.mxu0 0.0
      %1489 = vmatprep.subr.mxu0 0.0
      %1490 = vmatpush1.msra.mxu0 0.0
      %1491 = vmatprep.subr.mxu0 0.0
      %1492 = vmatpush1.msra.mxu0 0.0
      %1493 = vmatprep.subr.mxu0 0.0
      %1494 = vmatpush1.msra.mxu0 0.0
      %1495 = vmatprep.subr.mxu0 0.0
      %1496 = vmatpush1.msra.mxu0 0.0
      %1497 = vmatprep.subr.mxu0 0.0
      %1498 = vmatpush1.msra.mxu0 0.0
      %1499 = vmatprep.subr.mxu0 0.0
      %1500 = vmatpush1.msra.mxu0 0.0
      %1501 = vmatprep.subr.mxu0 0.0
      %1502 = vmatpush1.msra.mxu0 0.0
      %1503 = vmatprep.subr.mxu0 0.0
      %1504 = vmatpush1.msra.mxu0 0.0
      %1505 = vmatprep.subr.mxu0 0.0
      %1506 = vmatpush1.msra.mxu0 0.0
      %1507 = vmatprep.mubr.f32.mxu0 0.0
      %1508 = vmatmul.mubr.f32.gmra.mrb[0].mxu0 %v1441
      %v1509 = vpop.f32.mrb[0].mxu0
      %v1510 = vadd.f32 %v1434, %v1509
      %v1511 = vpop.f32.mrb[0].mxu0
      %1512 = vdwg.mxu0
      %1513 = vrot.lane.b32.xlu0 %v277, 104
      %v1514 = vpop.permute.xlu0 %1513
      %v1515 = vsel %vm280, %v1514, 0
      %1517 = vmatprep.subr.mxu0 0.0
      %1518 = vmatpush1.xpose.msra.mxu0 %v285
      %1519 = vmatprep.subr.mxu0 0.0
      %1520 = vmatpush1.xpose.msra.mxu0 %v288
      %1521 = vmatprep.subr.mxu0 0.0
      %1522 = vmatpush1.xpose.msra.mxu0 0.0
      %1523 = vmatprep.subr.mxu0 0.0
      %1524 = vmatpush1.xpose.msra.mxu0 0.0
      %1525 = vmatprep.subr.mxu0 0.0
      %1526 = vmatpush1.xpose.msra.mxu0 0.0
      %1527 = vmatprep.subr.mxu0 0.0
      %1528 = vmatpush1.xpose.msra.mxu0 0.0
      %1529 = vmatprep.subr.mxu0 0.0
      %1530 = vmatpush1.xpose.msra.mxu0 0.0
      %1531 = vmatprep.subr.mxu0 0.0
      %1532 = vmatpush1.xpose.msra.mxu0 0.0
      %1533 = vmatprep.subr.mxu0 0.0
      %1534 = vmatpush1.xpose.msra.mxu0 0.0
      %1535 = vmatprep.subr.mxu0 0.0
      %1536 = vmatpush1.xpose.msra.mxu0 0.0
      %1537 = vmatprep.subr.mxu0 0.0
      %1538 = vmatpush1.xpose.msra.mxu0 0.0
      %1539 = vmatprep.subr.mxu0 0.0
      %1540 = vmatpush1.xpose.msra.mxu0 0.0
      %1541 = vmatprep.subr.mxu0 0.0
      %1542 = vmatpush1.xpose.msra.mxu0 0.0
      %1543 = vmatprep.subr.mxu0 0.0
      %1544 = vmatpush1.xpose.msra.mxu0 0.0
      %1545 = vmatprep.subr.mxu0 0.0
      %1546 = vmatpush1.xpose.msra.mxu0 0.0
      %1547 = vmatprep.subr.mxu0 0.0
      %1548 = vmatpush1.xpose.msra.mxu0 0.0
      %1549 = vmatprep.subr.mxu0 0.0
      %1550 = vmatpush1.xpose.msra.mxu0 0.0
      %1551 = vmatprep.subr.mxu0 0.0
      %1552 = vmatpush1.xpose.msra.mxu0 0.0
      %1553 = vmatprep.subr.mxu0 0.0
      %1554 = vmatpush1.xpose.msra.mxu0 0.0
      %1555 = vmatprep.subr.mxu0 0.0
      %1556 = vmatpush1.xpose.msra.mxu0 0.0
      %1557 = vmatprep.subr.mxu0 0.0
      %1558 = vmatpush1.xpose.msra.mxu0 0.0
      %1559 = vmatprep.subr.mxu0 0.0
      %1560 = vmatpush1.xpose.msra.mxu0 0.0
      %1561 = vmatprep.subr.mxu0 0.0
      %1562 = vmatpush1.xpose.msra.mxu0 0.0
      %1563 = vmatprep.subr.mxu0 0.0
      %1564 = vmatpush1.xpose.msra.mxu0 0.0
      %1565 = vmatprep.subr.mxu0 0.0
      %1566 = vmatpush1.xpose.msra.mxu0 0.0
      %1567 = vmatprep.subr.mxu0 0.0
      %1568 = vmatpush1.xpose.msra.mxu0 0.0
      %1569 = vmatprep.subr.mxu0 0.0
      %1570 = vmatpush1.xpose.msra.mxu0 0.0
      %1571 = vmatprep.subr.mxu0 0.0
      %1572 = vmatpush1.xpose.msra.mxu0 0.0
      %1573 = vmatprep.subr.mxu0 0.0
      %1574 = vmatpush1.xpose.msra.mxu0 0.0
      %1575 = vmatprep.subr.mxu0 0.0
      %1576 = vmatpush1.xpose.msra.mxu0 0.0
      %1577 = vmatprep.subr.mxu0 0.0
      %1578 = vmatpush1.xpose.msra.mxu0 0.0
      %1579 = vmatprep.subr.mxu0 0.0
      %1580 = vmatpush1.xpose.msra.mxu0 0.0
      %1581 = vmatprep.mubr.f32.mxu0 0.0
      %1582 = vmatmul.mubr.f32.gmra.mrb[0].mxu0 %v1515
      %v1583 = vpop.f32.mrb[0].mxu0
      %v1584 = vadd.f32 0.0, %v1583
      %v1585 = vpop.f32.mrb[0].mxu0
      %1586 = vdwg.mxu0
      %1588 = vset.pattern.permute.xlu0 0
      %1589 = vperm.xlu0 %1588, %v1584
      %v1590 = vpop.permute.xlu0 %1589
      %v1592 = vsel %vm264, %v1590, 0.0
      %1593 = vrot.lane.b32.xlu0 %v278, 104
      %v1594 = vpop.permute.xlu0 %1593
      %v1595 = vsel %vm280, %v1594, 0
      %1597 = vmatprep.subr.mxu0 0.0
      %1598 = vmatpush1.xpose.msra.mxu0 %v1595
      %1599 = vmatprep.subr.mxu0 0.0
      %1600 = vmatpush1.xpose.msra.mxu0 0.0
      %1601 = vmatprep.subr.mxu0 0.0
      %1602 = vmatpush1.xpose.msra.mxu0 0.0
      %1603 = vmatprep.subr.mxu0 0.0
      %1604 = vmatpush1.xpose.msra.mxu0 0.0
      %1605 = vmatprep.subr.mxu0 0.0
      %1606 = vmatpush1.xpose.msra.mxu0 0.0
      %1607 = vmatprep.subr.mxu0 0.0
      %1608 = vmatpush1.xpose.msra.mxu0 0.0
      %1609 = vmatprep.subr.mxu0 0.0
      %1610 = vmatpush1.xpose.msra.mxu0 0.0
      %1611 = vmatprep.subr.mxu0 0.0
      %1612 = vmatpush1.xpose.msra.mxu0 0.0
      %1613 = vmatprep.subr.mxu0 0.0
      %1614 = vmatpush1.xpose.msra.mxu0 0.0
      %1615 = vmatprep.subr.mxu0 0.0
      %1616 = vmatpush1.xpose.msra.mxu0 0.0
      %1617 = vmatprep.subr.mxu0 0.0
      %1618 = vmatpush1.xpose.msra.mxu0 0.0
      %1619 = vmatprep.subr.mxu0 0.0
      %1620 = vmatpush1.xpose.msra.mxu0 0.0
      %1621 = vmatprep.subr.mxu0 0.0
      %1622 = vmatpush1.xpose.msra.mxu0 0.0
      %1623 = vmatprep.subr.mxu0 0.0
      %1624 = vmatpush1.xpose.msra.mxu0 0.0
      %1625 = vmatprep.subr.mxu0 0.0
      %1626 = vmatpush1.xpose.msra.mxu0 0.0
      %1627 = vmatprep.subr.mxu0 0.0
      %1628 = vmatpush1.xpose.msra.mxu0 0.0
      %1629 = vmatprep.subr.mxu0 0.0
      %1630 = vmatpush1.xpose.msra.mxu0 0.0
      %1631 = vmatprep.subr.mxu0 0.0
      %1632 = vmatpush1.xpose.msra.mxu0 0.0
      %1633 = vmatprep.subr.mxu0 0.0
      %1634 = vmatpush1.xpose.msra.mxu0 0.0
      %1635 = vmatprep.subr.mxu0 0.0
      %1636 = vmatpush1.xpose.msra.mxu0 0.0
      %1637 = vmatprep.subr.mxu0 0.0
      %1638 = vmatpush1.xpose.msra.mxu0 0.0
      %1639 = vmatprep.subr.mxu0 0.0
      %1640 = vmatpush1.xpose.msra.mxu0 0.0
      %1641 = vmatprep.subr.mxu0 0.0
      %1642 = vmatpush1.xpose.msra.mxu0 0.0
      %1643 = vmatprep.subr.mxu0 0.0
      %1644 = vmatpush1.xpose.msra.mxu0 0.0
      %1645 = vmatprep.subr.mxu0 0.0
      %1646 = vmatpush1.xpose.msra.mxu0 0.0
      %1647 = vmatprep.subr.mxu0 0.0
      %1648 = vmatpush1.xpose.msra.mxu0 0.0
      %1649 = vmatprep.subr.mxu0 0.0
      %1650 = vmatpush1.xpose.msra.mxu0 0.0
      %1651 = vmatprep.subr.mxu0 0.0
      %1652 = vmatpush1.xpose.msra.mxu0 0.0
      %1653 = vmatprep.subr.mxu0 0.0
      %1654 = vmatpush1.xpose.msra.mxu0 0.0
      %1655 = vmatprep.subr.mxu0 0.0
      %1656 = vmatpush1.xpose.msra.mxu0 0.0
      %1657 = vmatprep.subr.mxu0 0.0
      %1658 = vmatpush1.xpose.msra.mxu0 0.0
      %1659 = vmatprep.subr.mxu0 0.0
      %1660 = vmatpush1.xpose.msra.mxu0 0.0
      %1661 = vmatprep.mubr.f32.mxu0 0.0
      %1662 = vmatmul.mubr.f32.gmra.mrb[0].mxu0 %v1515
      %v1663 = vpop.f32.mrb[0].mxu0
      %v1664 = vadd.f32 %v1592, %v1663
      %v1665 = vpop.f32.mrb[0].mxu0
      %1666 = vdwg.mxu0
      %1667 = vset.pattern.permute.xlu0 1
      %1668 = vperm.xlu0 %1667, %v1584
      %v1669 = vpop.permute.xlu0 %1668
      %v1671 = vsel %vm265, %v1669, 0.0
      %v1672 = vadd.f32 %v1664, %v1671
      %1673 = vset.pattern.permute.xlu0 2
      %1674 = vperm.xlu0 %1673, %v1584
      %v1675 = vpop.permute.xlu0 %1674
      %v1677 = vsel %vm266, %v1675, 0.0
      %v1678 = vadd.f32 %v1672, %v1677
      %1679 = vset.pattern.permute.xlu0 3
      %1680 = vperm.xlu0 %1679, %v1584
      %v1681 = vpop.permute.xlu0 %1680
      %v1683 = vsel %vm267, %v1681, 0.0
      %v1684 = vadd.f32 %v1678, %v1683
      %1685 = vset.pattern.permute.xlu0 4
      %1686 = vperm.xlu0 %1685, %v1584
      %v1687 = vpop.permute.xlu0 %1686
      %v1689 = vsel %vm268, %v1687, 0.0
      %v1690 = vadd.f32 %v1684, %v1689
      %1691 = vset.pattern.permute.xlu0 5
      %1692 = vperm.xlu0 %1691, %v1584
      %v1693 = vpop.permute.xlu0 %1692
      %v1695 = vsel %vm269, %v1693, 0.0
      %v1696 = vadd.f32 %v1690, %v1695
      %1697 = vset.pattern.permute.xlu0 6
      %1698 = vperm.xlu0 %1697, %v1584
      %v1699 = vpop.permute.xlu0 %1698
      %v1701 = vsel %vm270, %v1699, 0.0
      %v1702 = vadd.f32 %v1696, %v1701
      %1703 = vset.pattern.permute.xlu0 7
      %1704 = vperm.xlu0 %1703, %v1584
      %v1705 = vpop.permute.xlu0 %1704
      %v1707 = vsel %vm271, %v1705, 0.0
      %v1708 = vadd.f32 %v1702, %v1707
      %1709 = vset.pattern.permute.xlu0 8
      %1710 = vperm.xlu0 %1709, %v1584
      %v1711 = vpop.permute.xlu0 %1710
      %v1713 = vsel %vm272, %v1711, 0.0
      %v1714 = vadd.f32 %v1708, %v1713
      %v1715 = vsel %vm280, %v1714, -inf
      %1716 = vmax.xlane.f32.xlu0 %v1715
      %v1717 = vpop.xlane.xlu0 %1716
      %v1718 = vsub.f32 %v1714, %v1717
      %v1719 = vmul.f32 %v1718, 1.442695
      %v1720 = vpow.pop %v1719
      %v1721 = vsel %vm280, %v1720, 0.0
      %1722 = vadd.xlane.f32.xlu0 %v1721
      %v1723 = vpop.xlane.xlu0 %1722
      %v1724 = vrcp.pop %v1723
      %v1725 = vmul.f32 %v1720, %v1724
      %v1726 = vsel %vm264, %v1725, 0.0
      %v1727 = vsel %vm280, %v1726, 0.0
      %1728 = vadd.xlane.f32.xlu0 %v1727
      %v1729 = vpop.xlane.xlu0 %1728
      %v1730 = vsel %vm265, %v1725, 0.0
      %v1731 = vsel %vm280, %v1730, 0.0
      %1732 = vadd.xlane.f32.xlu0 %v1731
      %v1733 = vpop.xlane.xlu0 %1732
      %v1734 = vsel %vm266, %v1725, 0.0
      %v1735 = vsel %vm280, %v1734, 0.0
      %1736 = vadd.xlane.f32.xlu0 %v1735
      %v1737 = vpop.xlane.xlu0 %1736
      %v1738 = vsel %vm267, %v1725, 0.0
      %v1739 = vsel %vm280, %v1738, 0.0
      %1740 = vadd.xlane.f32.xlu0 %v1739
      %v1741 = vpop.xlane.xlu0 %1740
      %v1742 = vsel %vm268, %v1725, 0.0
      %v1743 = vsel %vm280, %v1742, 0.0
      %1744 = vadd.xlane.f32.xlu0 %v1743
      %v1745 = vpop.xlane.xlu0 %1744
      %v1746 = vsel %vm269, %v1725, 0.0
      %v1747 = vsel %vm280, %v1746, 0.0
      %1748 = vadd.xlane.f32.xlu0 %v1747
      %v1749 = vpop.xlane.xlu0 %1748
      %v1750 = vsel %vm270, %v1725, 0.0
      %v1751 = vsel %vm280, %v1750, 0.0
      %1752 = vadd.xlane.f32.xlu0 %v1751
      %v1753 = vpop.xlane.xlu0 %1752
      %v1754 = vsel %vm271, %v1725, 0.0
      %v1755 = vsel %vm280, %v1754, 0.0
      %1756 = vadd.xlane.f32.xlu0 %v1755
      %v1757 = vpop.xlane.xlu0 %1756
      %v1758 = vsel %vm272, %v1725, 0.0
      %v1759 = vsel %vm280, %v1758, 0.0
      %1760 = vadd.xlane.f32.xlu0 %v1759
      %v1761 = vpop.xlane.xlu0 %1760
      %v1762 = vsel %vm534, %v1729, %v1733
      %v1763 = vsel %vm536, %v1762, %v1737
      %v1764 = vsel %vm538, %v1763, %v1741
      %v1765 = vsel %vm540, %v1764, %v1745
      %v1766 = vsel %vm542, %v1765, %v1749
      %v1767 = vsel %vm544, %v1766, %v1753
      %v1768 = vsel %vm546, %v1767, %v1757
      %v1769 = vsel %vm280, %v1768, %v1761
      %v1771 = vsel %vm549, %v1769, 0
      %1773 = vmatprep.subr.mxu0 0.0
      %1774 = vmatpush1.msra.mxu0 %v275
      %1775 = vmatprep.subr.mxu0 0.0
      %1776 = vmatpush1.msra.mxu0 %v555
      %1777 = vmatprep.subr.mxu0 0.0
      %1778 = vmatpush1.msra.mxu0 0.0
      %1779 = vmatprep.subr.mxu0 0.0
      %1780 = vmatpush1.msra.mxu0 0.0
      %1781 = vmatprep.subr.mxu0 0.0
      %1782 = vmatpush1.msra.mxu0 0.0
      %1783 = vmatprep.subr.mxu0 0.0
      %1784 = vmatpush1.msra.mxu0 0.0
      %1785 = vmatprep.subr.mxu0 0.0
      %1786 = vmatpush1.msra.mxu0 0.0
      %1787 = vmatprep.subr.mxu0 0.0
      %1788 = vmatpush1.msra.mxu0 0.0
      %1789 = vmatprep.subr.mxu0 0.0
      %1790 = vmatpush1.msra.mxu0 0.0
      %1791 = vmatprep.subr.mxu0 0.0
      %1792 = vmatpush1.msra.mxu0 0.0
      %1793 = vmatprep.subr.mxu0 0.0
      %1794 = vmatpush1.msra.mxu0 0.0
      %1795 = vmatprep.subr.mxu0 0.0
      %1796 = vmatpush1.msra.mxu0 0.0
      %1797 = vmatprep.subr.mxu0 0.0
      %1798 = vmatpush1.msra.mxu0 0.0
      %1799 = vmatprep.subr.mxu0 0.0
      %1800 = vmatpush1.msra.mxu0 0.0
      %1801 = vmatprep.subr.mxu0 0.0
      %1802 = vmatpush1.msra.mxu0 0.0
      %1803 = vmatprep.subr.mxu0 0.0
      %1804 = vmatpush1.msra.mxu0 0.0
      %1805 = vmatprep.subr.mxu0 0.0
      %1806 = vmatpush1.msra.mxu0 0.0
      %1807 = vmatprep.subr.mxu0 0.0
      %1808 = vmatpush1.msra.mxu0 0.0
      %1809 = vmatprep.subr.mxu0 0.0
      %1810 = vmatpush1.msra.mxu0 0.0
      %1811 = vmatprep.subr.mxu0 0.0
      %1812 = vmatpush1.msra.mxu0 0.0
      %1813 = vmatprep.subr.mxu0 0.0
      %1814 = vmatpush1.msra.mxu0 0.0
      %1815 = vmatprep.subr.mxu0 0.0
      %1816 = vmatpush1.msra.mxu0 0.0
      %1817 = vmatprep.subr.mxu0 0.0
      %1818 = vmatpush1.msra.mxu0 0.0
      %1819 = vmatprep.subr.mxu0 0.0
      %1820 = vmatpush1.msra.mxu0 0.0
      %1821 = vmatprep.subr.mxu0 0.0
      %1822 = vmatpush1.msra.mxu0 0.0
      %1823 = vmatprep.subr.mxu0 0.0
      %1824 = vmatpush1.msra.mxu0 0.0
      %1825 = vmatprep.subr.mxu0 0.0
      %1826 = vmatpush1.msra.mxu0 0.0
      %1827 = vmatprep.subr.mxu0 0.0
      %1828 = vmatpush1.msra.mxu0 0.0
      %1829 = vmatprep.subr.mxu0 0.0
      %1830 = vmatpush1.msra.mxu0 0.0
      %1831 = vmatprep.subr.mxu0 0.0
      %1832 = vmatpush1.msra.mxu0 0.0
      %1833 = vmatprep.subr.mxu0 0.0
      %1834 = vmatpush1.msra.mxu0 0.0
      %1835 = vmatprep.subr.mxu0 0.0
      %1836 = vmatpush1.msra.mxu0 0.0
      %1837 = vmatprep.mubr.f32.mxu0 0.0
      %1838 = vmatmul.mubr.f32.gmra.mrb[0].mxu0 %v1771
      %v1839 = vpop.f32.mrb[0].mxu0
      %v1840 = vadd.f32 0.0, %v1839
      %v1841 = vpop.f32.mrb[0].mxu0
      %1842 = vdwg.mxu0
      %1843 = vrot.lane.b32.xlu0 %v279, 104
      %v1844 = vpop.permute.xlu0 %1843
      %v1847 = vsel %vm280, %v1725, 0
      %1849 = vmatprep.subr.mxu0 0.0
      %1850 = vmatpush1.msra.mxu0 %v1844
      %1851 = vmatprep.subr.mxu0 0.0
      %1852 = vmatpush1.msra.mxu0 0.0
      %1853 = vmatprep.subr.mxu0 0.0
      %1854 = vmatpush1.msra.mxu0 0.0
      %1855 = vmatprep.subr.mxu0 0.0
      %1856 = vmatpush1.msra.mxu0 0.0
      %1857 = vmatprep.subr.mxu0 0.0
      %1858 = vmatpush1.msra.mxu0 0.0
      %1859 = vmatprep.subr.mxu0 0.0
      %1860 = vmatpush1.msra.mxu0 0.0
      %1861 = vmatprep.subr.mxu0 0.0
      %1862 = vmatpush1.msra.mxu0 0.0
      %1863 = vmatprep.subr.mxu0 0.0
      %1864 = vmatpush1.msra.mxu0 0.0
      %1865 = vmatprep.subr.mxu0 0.0
      %1866 = vmatpush1.msra.mxu0 0.0
      %1867 = vmatprep.subr.mxu0 0.0
      %1868 = vmatpush1.msra.mxu0 0.0
      %1869 = vmatprep.subr.mxu0 0.0
      %1870 = vmatpush1.msra.mxu0 0.0
      %1871 = vmatprep.subr.mxu0 0.0
      %1872 = vmatpush1.msra.mxu0 0.0
      %1873 = vmatprep.subr.mxu0 0.0
      %1874 = vmatpush1.msra.mxu0 0.0
      %1875 = vmatprep.subr.mxu0 0.0
      %1876 = vmatpush1.msra.mxu0 0.0
      %1877 = vmatprep.subr.mxu0 0.0
      %1878 = vmatpush1.msra.mxu0 0.0
      %1879 = vmatprep.subr.mxu0 0.0
      %1880 = vmatpush1.msra.mxu0 0.0
      %1881 = vmatprep.subr.mxu0 0.0
      %1882 = vmatpush1.msra.mxu0 0.0
      %1883 = vmatprep.subr.mxu0 0.0
      %1884 = vmatpush1.msra.mxu0 0.0
      %1885 = vmatprep.subr.mxu0 0.0
      %1886 = vmatpush1.msra.mxu0 0.0
      %1887 = vmatprep.subr.mxu0 0.0
      %1888 = vmatpush1.msra.mxu0 0.0
      %1889 = vmatprep.subr.mxu0 0.0
      %1890 = vmatpush1.msra.mxu0 0.0
      %1891 = vmatprep.subr.mxu0 0.0
      %1892 = vmatpush1.msra.mxu0 0.0
      %1893 = vmatprep.subr.mxu0 0.0
      %1894 = vmatpush1.msra.mxu0 0.0
      %1895 = vmatprep.subr.mxu0 0.0
      %1896 = vmatpush1.msra.mxu0 0.0
      %1897 = vmatprep.subr.mxu0 0.0
      %1898 = vmatpush1.msra.mxu0 0.0
      %1899 = vmatprep.subr.mxu0 0.0
      %1900 = vmatpush1.msra.mxu0 0.0
      %1901 = vmatprep.subr.mxu0 0.0
      %1902 = vmatpush1.msra.mxu0 0.0
      %1903 = vmatprep.subr.mxu0 0.0
      %1904 = vmatpush1.msra.mxu0 0.0
      %1905 = vmatprep.subr.mxu0 0.0
      %1906 = vmatpush1.msra.mxu0 0.0
      %1907 = vmatprep.subr.mxu0 0.0
      %1908 = vmatpush1.msra.mxu0 0.0
      %1909 = vmatprep.subr.mxu0 0.0
      %1910 = vmatpush1.msra.mxu0 0.0
      %1911 = vmatprep.subr.mxu0 0.0
      %1912 = vmatpush1.msra.mxu0 0.0
      %1913 = vmatprep.mubr.f32.mxu0 0.0
      %1914 = vmatmul.mubr.f32.gmra.mrb[0].mxu0 %v1847
      %v1915 = vpop.f32.mrb[0].mxu0
      %v1916 = vadd.f32 %v1840, %v1915
      %v1917 = vpop.f32.mrb[0].mxu0
      %1918 = vdwg.mxu0
      %1920 = vrot.lane.b32.xlu0 %v1104, 8
      %v1921 = vpop.permute.xlu0 %1920
      %1924 = vrot.lane.b32.xlu0 %v1510, 16
      %v1925 = vpop.permute.xlu0 %1924
      %1928 = vrot.lane.b32.xlu0 %v1916, 24
      %v1929 = vpop.permute.xlu0 %1928
      %v1931 = vsel %vm280, %v697, %v1921
      %vm1932 = vcmask 130048
      %v1933 = vsel %vm1932, %v1931, %v1925
      %vm1934 = vcmask 195584
      %v1935 = vsel %vm1934, %v1933, %v1929
      %vm1936 = vcmask 261120
      %1937 = vst.msk [vmem:[%s253] sm:$0xff] %vm1936, %v1935
      %p1938 = scmp.lt.s32.totalorder %s16, 1
      %s1939 = scalar_select %p1938, %s16, 1
      %s1940 = smul.addr %s1939, 8
      %s1941 = scalar_lea.vmem %s5, %s1940
      // Predicated region
      $region41: #{multi_headed_attention_rpr.4} parent=39 // pred_check
        %p1942 = pneg %p154
      $region42: #{multi_headed_attention_rpr.4} parent=39 // pred_check_branch
        %1944 = sbr.rel (%p1942) target = $region44
      $region43: #{multi_headed_attention_rpr.4} parent=39 // pred_region
        _
      $region44: #{multi_headed_attention_rpr.4} parent=39 // pred_fallthru
        _
    $region40: #{multi_headed_attention_rpr.4} parent=5 // pred_fallthru
      _
    %p1945 = scmp.le.s32.totalorder 2, %s11
    // Predicated region
    $region45: #{multi_headed_attention_rpr.4} parent=5 // pred_check
      %p1946 = pneg %p1945
    $region46: #{multi_headed_attention_rpr.4} parent=5 // pred_check_branch
      %1948 = sbr.rel (%p1946) target = $region48
    $region47: #{multi_headed_attention_rpr.4} parent=5 // pred_region
      %s1949 = ssub.s32 %s11, 2
      // Predicated region
      $region49: #{multi_headed_attention_rpr.4} parent=47 // pred_check
        %p1950 = pneg %p160
      $region50: #{multi_headed_attention_rpr.4} parent=47 // pred_check_branch
        %1952 = sbr.rel (%p1950) target = $region52
      $region51: #{multi_headed_attention_rpr.4} parent=47 // pred_region
        %p1953 = scmp.lt.s32.totalorder %s17, 1
        %s1954 = scalar_select %p1953, %s17, 1
        %s1955 = smul.addr %s1954, 8
        %s1956 = scalar_lea.vmem %s5, %s1955
      $region52: #{multi_headed_attention_rpr.4} parent=47 // pred_fallthru
        _
    $region48: #{multi_headed_attention_rpr.4} parent=5 // pred_fallthru
      _
  $region6: #{multi_headed_attention_rpr.4} parent=0 // loop_footer
    %s15 = sadd.s32 1, %s11
  $region7: #{multi_headed_attention_rpr.4} parent=0 // loop_footer_branch
    %10 = sbr.rel target = $region3
  $region8: #{multi_headed_attention_rpr.4} parent=0 // loop_exit
    _

</llo_original>
